<compile_context>
chip_gen: v7x
topology: tpu7x:2x2x1
jax: 0.10.0
libtpu: 0.0.40
codegen_flags: <defaults>
</compile_context>

<pallas_src>
import jax
import jax.numpy as jnp
import numpy as np
from jax.experimental import pallas as pl
from jax.experimental.pallas import tpu as pltpu

LANE = 128


def _zero_halo_border(ref, H, W):
    """Zero the 1-pixel border of a (H+2, W+2, C) halo scratch (interior untouched)."""
    C = ref.shape[-1]
    ref[0:1, :, :] = jnp.zeros((1, W + 2, C), jnp.float32)
    ref[H + 1:H + 2, :, :] = jnp.zeros((1, W + 2, C), jnp.float32)
    ref[:, 0:1, :] = jnp.zeros((H + 2, 1, C), jnp.float32)
    ref[:, W + 1:W + 2, :] = jnp.zeros((H + 2, 1, C), jnp.float32)


def _double_conv_kernel(p_ref, w1_ref, s1_ref, b1_ref, w2_ref, s2_ref, b2_ref,
                        out_ref, mid_ref, acc_ref):
    # p_ref:   (1, H*W, 9*Cin)  pre-im2col'd input patches (built in the wrapper)
    # w1_ref:  (9*Cin, Cp)      conv1 weights, 9 taps folded into K, Cout padded to Cp
    # w2_ref:  (3, 3, Cp, Cp)   conv2 weights, channels zero-padded to Cp
    # s*/b*:   (1, Cp)          fused BN(eval) scale / (conv-bias + BN) bias
    # out_ref: (1, H*W, Cp)     lane-dense padded output (sliced to Cout in wrapper)
    # mid_ref: (H+2, W+2, Cp)   VMEM halo scratch for the intermediate (lane-dense)
    # acc_ref: (H*W, Cp)        VMEM accumulator for conv2
    HW, Cp = acc_ref.shape
    H = mid_ref.shape[0] - 2
    W = mid_ref.shape[1] - 2

    # ---- conv1: one lane-dense (H*W, 9*Cin) @ (9*Cin, Cp) matmul (no in-kernel
    # concat, no shifted window slices) followed by fused BN(eval)+bias+ReLU. ----
    acc1 = jnp.dot(p_ref[0], w1_ref[...], preferred_element_type=jnp.float32)
    y1 = jnp.maximum(acc1 * s1_ref[...] + b1_ref[...], 0.0)          # (H*W, Cp)

    # Stage the intermediate into the lane-dense halo scratch. Only the 1-pixel
    # border strips are re-zeroed each step (cheap; correct even when the batch axis
    # is sharded across TensorCores). Interior is fully overwritten every step.
    _zero_halo_border(mid_ref, H, W)
    mid_ref[1:H + 1, 1:W + 1, :] = y1.reshape(H, W, Cp)

    # ---- conv2: 9 accumulated K = Cp matmuls into a VMEM scratch accumulator ----
    acc_ref[...] = jnp.dot(mid_ref[0:H, 0:W, :].reshape(HW, Cp), w2_ref[0, 0],
                           preferred_element_type=jnp.float32)
    for di in range(3):
        for dj in range(3):
            if di == 0 and dj == 0:
                continue
            acc_ref[...] += jnp.dot(
                mid_ref[di:di + H, dj:dj + W, :].reshape(HW, Cp),
                w2_ref[di, dj],
                preferred_element_type=jnp.float32)

    # Fused BN(eval) + bias + ReLU epilogue; full-Cp lane-dense unmasked store.
    out_ref[0] = jnp.maximum(acc_ref[...] * s2_ref[...] + b2_ref[...], 0.0)


def _vmem_budget_bytes(H, W, Cin, Cp):
    """Working-set estimate with headroom, clamped to stay inside v7x's 64 MiB."""
    f32 = 4
    hw = H * W
    scratch = ((H + 2) * (W + 2) * Cp + hw * Cp) * f32           # mid halo + conv2 acc
    blocks = 2 * (hw * 9 * Cin + hw * Cp) * f32                  # double-buffered in/out
    consts = 2 * (9 * Cin * Cp + 9 * Cp * Cp + 4 * Cp) * f32     # weights/scales (x2 bufs)
    need = scratch + blocks + consts
    return int(min(max(need * 3 // 2, 32 * 1024 * 1024), 48 * 1024 * 1024))


def double_conv(x_nchw, w1, s1, b1, w2, s2, b2):
    """x_nchw: (N, Cin, H, W) f32.  w1: (3,3,Cin,Cout), w2: (3,3,Cout,Cout) HWIO.
    s*, b*: (1, Cout) fused BN(eval) scale / bias (conv bias folded in)."""
    N, Cin, H, W = x_nchw.shape
    Cout = w1.shape[-1]
    Cp = ((Cout + LANE - 1) // LANE) * LANE          # lane-dense padded channel count
    pc = Cp - Cout
    K1 = 9 * Cin

    # NCHW -> NHWC, then pre-im2col in the wrapper (one cheap HBM pass; Cin is tiny
    # in the UNet stem). Tap order (di, dj, cin) matches w1's reshape below.
    x_nhwc = jnp.transpose(x_nchw, (0, 2, 3, 1))
    xpad = jnp.pad(x_nhwc, ((0, 0), (1, 1), (1, 1), (0, 0)))
    patches = jnp.concatenate(
        [xpad[:, di:di + H, dj:dj + W, :] for di in range(3) for dj in range(3)],
        axis=-1).reshape(N, H * W, K1)

    # Zero-pad channels to Cp; fold conv1's 9 taps into its K dimension.
    # Invariant: padded scale/bias entries stay exactly zero so padded mid channels
    # remain zero through ReLU and conv2.
    w1p = jnp.pad(w1, ((0, 0), (0, 0), (0, 0), (0, pc))).reshape(K1, Cp)
    w2p = jnp.pad(w2, ((0, 0), (0, 0), (0, pc), (0, pc)))
    s1p = jnp.pad(s1, ((0, 0), (0, pc)))
    b1p = jnp.pad(b1, ((0, 0), (0, pc)))
    s2p = jnp.pad(s2, ((0, 0), (0, pc)))
    b2p = jnp.pad(b2, ((0, 0), (0, pc)))

    out_flat = pl.pallas_call(
        _double_conv_kernel,
        out_shape=jax.ShapeDtypeStruct((N, H * W, Cp), jnp.float32),
        grid_spec=pltpu.PrefetchScalarGridSpec(
            num_scalar_prefetch=0,
            grid=(N,),
            in_specs=[
                pl.BlockSpec((1, H * W, K1), lambda n: (n, 0, 0)),
                pl.BlockSpec((K1, Cp), lambda n: (0, 0)),
                pl.BlockSpec((1, Cp), lambda n: (0, 0)),
                pl.BlockSpec((1, Cp), lambda n: (0, 0)),
                pl.BlockSpec((3, 3, Cp, Cp), lambda n: (0, 0, 0, 0)),
                pl.BlockSpec((1, Cp), lambda n: (0, 0)),
                pl.BlockSpec((1, Cp), lambda n: (0, 0)),
            ],
            out_specs=pl.BlockSpec((1, H * W, Cp), lambda n: (n, 0, 0)),
            scratch_shapes=[
                pltpu.VMEM((H + 2, W + 2, Cp), jnp.float32),   # mid halo scratch
                pltpu.VMEM((H * W, Cp), jnp.float32),          # conv2 accumulator
            ],
        ),
        compiler_params=pltpu.CompilerParams(
            # Batch elements are independent -> let v7x shard them over its 2 TCs.
            dimension_semantics=("parallel",),
            vmem_limit_bytes=_vmem_budget_bytes(H, W, Cin, Cp),
        ),
    )(patches, w1p, s1p, b1p, w2p, s2p, b2p)

    # Lane-dense kernel output -> slice padded channels + NHWC->NCHW in the wrapper.
    out_nhwc = out_flat.reshape(N, H, W, Cp)[..., :Cout]
    return jnp.transpose(out_nhwc, (0, 3, 1, 2))


def _reference(x_nchw, w1, cb1, g1, be1, rm1, rv1, w2, cb2, g2, be2, rm2, rv2, eps=1e-5):
    x = jnp.transpose(x_nchw, (0, 2, 3, 1))

    def block(x, w, cb, g, be, rm, rv):
        y = jax.lax.conv_general_dilated(
            x, w, window_strides=(1, 1), padding="SAME",
            dimension_numbers=("NHWC", "HWIO", "NHWC")) + cb
        y = (y - rm) / jnp.sqrt(rv + eps) * g + be
        return jnp.maximum(y, 0.0)

    y = block(x, w1, cb1, g1, be1, rm1, rv1)
    y = block(y, w2, cb2, g2, be2, rm2, rv2)
    return jnp.transpose(y, (0, 3, 1, 2))


if __name__ == "__main__":
    key = jax.random.PRNGKey(0)
    N, Cin, Cout, H, W = 2, 4, 8, 16, 16
    eps = 1e-5

    keys = jax.random.split(key, 12)
    x = jax.random.normal(keys[0], (N, Cin, H, W), jnp.float32)

    # conv weights in HWIO, conv biases, BN params (deterministic, synthetic).
    w1 = jax.random.normal(keys[1], (3, 3, Cin, Cout), jnp.float32) * 0.2
    cb1 = jax.random.normal(keys[2], (Cout,), jnp.float32) * 0.1
    g1 = 1.0 + 0.1 * jax.random.normal(keys[3], (Cout,), jnp.float32)
    be1 = 0.1 * jax.random.normal(keys[4], (Cout,), jnp.float32)
    rm1 = 0.1 * jax.random.normal(keys[5], (Cout,), jnp.float32)
    rv1 = 1.0 + 0.1 * jax.nn.softplus(jax.random.normal(keys[6], (Cout,), jnp.float32))

    w2 = jax.random.normal(keys[7], (3, 3, Cout, Cout), jnp.float32) * 0.2
    cb2 = jax.random.normal(keys[8], (Cout,), jnp.float32) * 0.1
    g2 = 1.0 + 0.1 * jax.random.normal(keys[9], (Cout,), jnp.float32)
    be2 = 0.1 * jax.random.normal(keys[10], (Cout,), jnp.float32)
    rm2 = 0.1 * jax.random.normal(keys[11], (Cout,), jnp.float32)
    rv2 = jnp.ones((Cout,), jnp.float32)

    # Fold conv bias + BatchNorm(eval) into per-channel scale/bias for the kernel.
    s1 = (g1 / jnp.sqrt(rv1 + eps)).reshape(1, Cout)
    b1 = ((cb1 - rm1) * g1 / jnp.sqrt(rv1 + eps) + be1).reshape(1, Cout)
    s2 = (g2 / jnp.sqrt(rv2 + eps)).reshape(1, Cout)
    b2 = ((cb2 - rm2) * g2 / jnp.sqrt(rv2 + eps) + be2).reshape(1, Cout)

    out = double_conv(x, w1, s1, b1, w2, s2, b2)
    out = jax.block_until_ready(out)

    ref = _reference(x, w1, cb1, g1, be1, rm1, rv1, w2, cb2, g2, be2, rm2, rv2, eps)
    np.testing.assert_allclose(np.asarray(out), np.asarray(ref), rtol=1e-4, atol=1e-4)

    assert out.shape == (N, Cout, H, W)
    print("KERNEL_OK")
</pallas_src>

<mosaic_0001>
module attributes {stable_mosaic.version = 11 : i64} {
  func.func @_double_conv_kernel(%arg0: i32, %arg1: memref<1x256x36xf32, #tpu.memory_space<vmem>>, %arg2: memref<36x128xf32, #tpu.memory_space<vmem>>, %arg3: memref<1x128xf32, #tpu.memory_space<vmem>>, %arg4: memref<1x128xf32, #tpu.memory_space<vmem>>, %arg5: memref<3x3x128x128xf32, #tpu.memory_space<vmem>>, %arg6: memref<1x128xf32, #tpu.memory_space<vmem>>, %arg7: memref<1x128xf32, #tpu.memory_space<vmem>>, %arg8: memref<1x256x128xf32, #tpu.memory_space<vmem>>, %arg9: memref<18x18x128xf32, #tpu.memory_space<vmem>>, %arg10: memref<256x128xf32, #tpu.memory_space<vmem>>) attributes {dimension_semantics = [#tpu.dimension_semantics<parallel>], iteration_bounds = array<i64: 2>, scalar_prefetch = 0 : i64, scratch_operands = 2 : i64, tpu.core_type = #tpu.core_type<tc>, window_params = [{transform_indices = @transform_0, window_bounds = array<i64: 1, 256, 36>}, {pipeline_mode = #tpu.pipeline_mode<synchronous>, transform_indices = @transform_1, window_bounds = array<i64: 36, 128>}, {pipeline_mode = #tpu.pipeline_mode<synchronous>, transform_indices = @transform_2, window_bounds = array<i64: 1, 128>}, {pipeline_mode = #tpu.pipeline_mode<synchronous>, transform_indices = @transform_3, window_bounds = array<i64: 1, 128>}, {pipeline_mode = #tpu.pipeline_mode<synchronous>, transform_indices = @transform_4, window_bounds = array<i64: 3, 3, 128, 128>}, {pipeline_mode = #tpu.pipeline_mode<synchronous>, transform_indices = @transform_5, window_bounds = array<i64: 1, 128>}, {pipeline_mode = #tpu.pipeline_mode<synchronous>, transform_indices = @transform_6, window_bounds = array<i64: 1, 128>}, {transform_indices = @transform_7, window_bounds = array<i64: 1, 256, 128>}]} {
    %c0 = arith.constant 0 : index
    %c0_0 = arith.constant 0 : index
    %c0_1 = arith.constant 0 : index
    %0 = vector.load %arg1[%c0, %c0_0, %c0_1] : memref<1x256x36xf32, #tpu.memory_space<vmem>>, vector<1x256x36xf32>
    %1 = vector.shape_cast %0 : vector<1x256x36xf32> to vector<256x36xf32>
    %c0_2 = arith.constant 0 : index
    %c0_3 = arith.constant 0 : index
    %2 = vector.load %arg2[%c0_2, %c0_3] : memref<36x128xf32, #tpu.memory_space<vmem>>, vector<36x128xf32>
    %cst = arith.constant dense<0.000000e+00> : vector<256x128xf32>
    %3 = tpu.matmul %1, %2, %cst {dimension_numbers = #tpu.dot_dimension_numbers<[1], [0], [0], [1], [0, 0, 1, 1], [], []>} : vector<256x36xf32>, vector<36x128xf32>, vector<256x128xf32> -> vector<256x128xf32>
    %c0_4 = arith.constant 0 : index
    %c0_5 = arith.constant 0 : index
    %4 = vector.load %arg3[%c0_4, %c0_5] : memref<1x128xf32, #tpu.memory_space<vmem>>, vector<1x128xf32>
    %5 = vector.broadcast %4 : vector<1x128xf32> to vector<256x128xf32>
    %6 = arith.mulf %3, %5 : vector<256x128xf32>
    %c0_6 = arith.constant 0 : index
    %c0_7 = arith.constant 0 : index
    %7 = vector.load %arg4[%c0_6, %c0_7] : memref<1x128xf32, #tpu.memory_space<vmem>>, vector<1x128xf32>
    %8 = vector.broadcast %7 : vector<1x128xf32> to vector<256x128xf32>
    %9 = arith.addf %6, %8 : vector<256x128xf32>
    %cst_8 = arith.constant 0.000000e+00 : f32
    %10 = vector.broadcast %cst_8 : f32 to vector<256x128xf32>
    %11 = arith.maximumf %9, %10 : vector<256x128xf32>
    %cst_9 = arith.constant 0.000000e+00 : f32
    %12 = vector.broadcast %cst_9 : f32 to vector<1x18x128xf32>
    %c0_10 = arith.constant 0 : index
    %c0_11 = arith.constant 0 : index
    %c0_12 = arith.constant 0 : index
    %13 = vector.load %arg9[%c0_10, %c0_11, %c0_12] : memref<18x18x128xf32, #tpu.memory_space<vmem>>, vector<1x18x128xf32>
    tpu.vector_store %arg9[%c0_10, %c0_11, %c0_12], %12 {strides = array<i32>} : memref<18x18x128xf32, #tpu.memory_space<vmem>>, vector<1x18x128xf32>,
    %cst_13 = arith.constant 0.000000e+00 : f32
    %14 = vector.broadcast %cst_13 : f32 to vector<1x18x128xf32>
    %c17 = arith.constant 17 : index
    %c0_14 = arith.constant 0 : index
    %c0_15 = arith.constant 0 : index
    %15 = vector.load %arg9[%c17, %c0_14, %c0_15] : memref<18x18x128xf32, #tpu.memory_space<vmem>>, vector<1x18x128xf32>
    tpu.vector_store %arg9[%c17, %c0_14, %c0_15], %14 {strides = array<i32>} : memref<18x18x128xf32, #tpu.memory_space<vmem>>, vector<1x18x128xf32>,
    %cst_16 = arith.constant 0.000000e+00 : f32
    %16 = vector.broadcast %cst_16 : f32 to vector<18x1x128xf32>
    %c0_17 = arith.constant 0 : index
    %c0_18 = arith.constant 0 : index
    %c0_19 = arith.constant 0 : index
    %17 = vector.load %arg9[%c0_17, %c0_18, %c0_19] : memref<18x18x128xf32, #tpu.memory_space<vmem>>, vector<18x1x128xf32>
    tpu.vector_store %arg9[%c0_17, %c0_18, %c0_19], %16 {strides = array<i32>} : memref<18x18x128xf32, #tpu.memory_space<vmem>>, vector<18x1x128xf32>,
    %cst_20 = arith.constant 0.000000e+00 : f32
    %18 = vector.broadcast %cst_20 : f32 to vector<18x1x128xf32>
    %c0_21 = arith.constant 0 : index
    %c17_22 = arith.constant 17 : index
    %c0_23 = arith.constant 0 : index
    %19 = vector.load %arg9[%c0_21, %c17_22, %c0_23] : memref<18x18x128xf32, #tpu.memory_space<vmem>>, vector<18x1x128xf32>
    tpu.vector_store %arg9[%c0_21, %c17_22, %c0_23], %18 {strides = array<i32>} : memref<18x18x128xf32, #tpu.memory_space<vmem>>, vector<18x1x128xf32>,
    %20 = vector.shape_cast %11 : vector<256x128xf32> to vector<16x16x128xf32>
    %c1 = arith.constant 1 : index
    %c1_24 = arith.constant 1 : index
    %c0_25 = arith.constant 0 : index
    %21 = vector.load %arg9[%c1, %c1_24, %c0_25] : memref<18x18x128xf32, #tpu.memory_space<vmem>>, vector<16x16x128xf32>
    tpu.vector_store %arg9[%c1, %c1_24, %c0_25], %20 {strides = array<i32>} : memref<18x18x128xf32, #tpu.memory_space<vmem>>, vector<16x16x128xf32>,
    %c0_26 = arith.constant 0 : index
    %c0_27 = arith.constant 0 : index
    %c0_28 = arith.constant 0 : index
    %22 = vector.load %arg9[%c0_26, %c0_27, %c0_28] : memref<18x18x128xf32, #tpu.memory_space<vmem>>, vector<16x16x128xf32>
    %23 = vector.shape_cast %22 : vector<16x16x128xf32> to vector<256x128xf32>
    %c0_29 = arith.constant 0 : index
    %c0_30 = arith.constant 0 : index
    %c0_31 = arith.constant 0 : index
    %c0_32 = arith.constant 0 : index
    %24 = vector.load %arg5[%c0_29, %c0_30, %c0_31, %c0_32] : memref<3x3x128x128xf32, #tpu.memory_space<vmem>>, vector<1x1x128x128xf32>
    %25 = vector.shape_cast %24 : vector<1x1x128x128xf32> to vector<128x128xf32>
    %cst_33 = arith.constant dense<0.000000e+00> : vector<256x128xf32>
    %26 = tpu.matmul %23, %25, %cst_33 {dimension_numbers = #tpu.dot_dimension_numbers<[1], [0], [0], [1], [0, 0, 1, 1], [], []>} : vector<256x128xf32>, vector<128x128xf32>, vector<256x128xf32> -> vector<256x128xf32>
    %c0_34 = arith.constant 0 : index
    %c0_35 = arith.constant 0 : index
    %27 = vector.load %arg10[%c0_34, %c0_35] : memref<256x128xf32, #tpu.memory_space<vmem>>, vector<256x128xf32>
    tpu.vector_store %arg10[%c0_34, %c0_35], %26 {strides = array<i32>} : memref<256x128xf32, #tpu.memory_space<vmem>>, vector<256x128xf32>,
    %c0_36 = arith.constant 0 : index
    %c0_37 = arith.constant 0 : index
    %28 = vector.load %arg10[%c0_36, %c0_37] : memref<256x128xf32, #tpu.memory_space<vmem>>, vector<256x128xf32>
    %c0_38 = arith.constant 0 : index
    %c1_39 = arith.constant 1 : index
    %c0_40 = arith.constant 0 : index
    %29 = vector.load %arg9[%c0_38, %c1_39, %c0_40] : memref<18x18x128xf32, #tpu.memory_space<vmem>>, vector<16x16x128xf32>
    %30 = vector.shape_cast %29 : vector<16x16x128xf32> to vector<256x128xf32>
    %c0_41 = arith.constant 0 : index
    %c1_42 = arith.constant 1 : index
    %c0_43 = arith.constant 0 : index
    %c0_44 = arith.constant 0 : index
    %31 = vector.load %arg5[%c0_41, %c1_42, %c0_43, %c0_44] : memref<3x3x128x128xf32, #tpu.memory_space<vmem>>, vector<1x1x128x128xf32>
    %32 = vector.shape_cast %31 : vector<1x1x128x128xf32> to vector<128x128xf32>
    %cst_45 = arith.constant dense<0.000000e+00> : vector<256x128xf32>
    %33 = tpu.matmul %30, %32, %cst_45 {dimension_numbers = #tpu.dot_dimension_numbers<[1], [0], [0], [1], [0, 0, 1, 1], [], []>} : vector<256x128xf32>, vector<128x128xf32>, vector<256x128xf32> -> vector<256x128xf32>
    %34 = arith.addf %28, %33 : vector<256x128xf32>
    %c0_46 = arith.constant 0 : index
    %c0_47 = arith.constant 0 : index
    %35 = vector.load %arg10[%c0_46, %c0_47] : memref<256x128xf32, #tpu.memory_space<vmem>>, vector<256x128xf32>
    tpu.vector_store %arg10[%c0_46, %c0_47], %34 {strides = array<i32>} : memref<256x128xf32, #tpu.memory_space<vmem>>, vector<256x128xf32>,
    %c0_48 = arith.constant 0 : index
    %c0_49 = arith.constant 0 : index
    %36 = vector.load %arg10[%c0_48, %c0_49] : memref<256x128xf32, #tpu.memory_space<vmem>>, vector<256x128xf32>
    %c0_50 = arith.constant 0 : index
    %c2 = arith.constant 2 : index
    %c0_51 = arith.constant 0 : index
    %37 = vector.load %arg9[%c0_50, %c2, %c0_51] : memref<18x18x128xf32, #tpu.memory_space<vmem>>, vector<16x16x128xf32>
    %38 = vector.shape_cast %37 : vector<16x16x128xf32> to vector<256x128xf32>
    %c0_52 = arith.constant 0 : index
    %c2_53 = arith.constant 2 : index
    %c0_54 = arith.constant 0 : index
    %c0_55 = arith.constant 0 : index
    %39 = vector.load %arg5[%c0_52, %c2_53, %c0_54, %c0_55] : memref<3x3x128x128xf32, #tpu.memory_space<vmem>>, vector<1x1x128x128xf32>
    %40 = vector.shape_cast %39 : vector<1x1x128x128xf32> to vector<128x128xf32>
    %cst_56 = arith.constant dense<0.000000e+00> : vector<256x128xf32>
    %41 = tpu.matmul %38, %40, %cst_56 {dimension_numbers = #tpu.dot_dimension_numbers<[1], [0], [0], [1], [0, 0, 1, 1], [], []>} : vector<256x128xf32>, vector<128x128xf32>, vector<256x128xf32> -> vector<256x128xf32>
    %42 = arith.addf %36, %41 : vector<256x128xf32>
    %c0_57 = arith.constant 0 : index
    %c0_58 = arith.constant 0 : index
    %43 = vector.load %arg10[%c0_57, %c0_58] : memref<256x128xf32, #tpu.memory_space<vmem>>, vector<256x128xf32>
    tpu.vector_store %arg10[%c0_57, %c0_58], %42 {strides = array<i32>} : memref<256x128xf32, #tpu.memory_space<vmem>>, vector<256x128xf32>,
    %c0_59 = arith.constant 0 : index
    %c0_60 = arith.constant 0 : index
    %44 = vector.load %arg10[%c0_59, %c0_60] : memref<256x128xf32, #tpu.memory_space<vmem>>, vector<256x128xf32>
    %c1_61 = arith.constant 1 : index
    %c0_62 = arith.constant 0 : index
    %c0_63 = arith.constant 0 : index
    %45 = vector.load %arg9[%c1_61, %c0_62, %c0_63] : memref<18x18x128xf32, #tpu.memory_space<vmem>>, vector<16x16x128xf32>
    %46 = vector.shape_cast %45 : vector<16x16x128xf32> to vector<256x128xf32>
    %c1_64 = arith.constant 1 : index
    %c0_65 = arith.constant 0 : index
    %c0_66 = arith.constant 0 : index
    %c0_67 = arith.constant 0 : index
    %47 = vector.load %arg5[%c1_64, %c0_65, %c0_66, %c0_67] : memref<3x3x128x128xf32, #tpu.memory_space<vmem>>, vector<1x1x128x128xf32>
    %48 = vector.shape_cast %47 : vector<1x1x128x128xf32> to vector<128x128xf32>
    %cst_68 = arith.constant dense<0.000000e+00> : vector<256x128xf32>
    %49 = tpu.matmul %46, %48, %cst_68 {dimension_numbers = #tpu.dot_dimension_numbers<[1], [0], [0], [1], [0, 0, 1, 1], [], []>} : vector<256x128xf32>, vector<128x128xf32>, vector<256x128xf32> -> vector<256x128xf32>
    %50 = arith.addf %44, %49 : vector<256x128xf32>
    %c0_69 = arith.constant 0 : index
    %c0_70 = arith.constant 0 : index
    %51 = vector.load %arg10[%c0_69, %c0_70] : memref<256x128xf32, #tpu.memory_space<vmem>>, vector<256x128xf32>
    tpu.vector_store %arg10[%c0_69, %c0_70], %50 {strides = array<i32>} : memref<256x128xf32, #tpu.memory_space<vmem>>, vector<256x128xf32>,
    %c0_71 = arith.constant 0 : index
    %c0_72 = arith.constant 0 : index
    %52 = vector.load %arg10[%c0_71, %c0_72] : memref<256x128xf32, #tpu.memory_space<vmem>>, vector<256x128xf32>
    %c1_73 = arith.constant 1 : index
    %c1_74 = arith.constant 1 : index
    %c0_75 = arith.constant 0 : index
    %53 = vector.load %arg9[%c1_73, %c1_74, %c0_75] : memref<18x18x128xf32, #tpu.memory_space<vmem>>, vector<16x16x128xf32>
    %54 = vector.shape_cast %53 : vector<16x16x128xf32> to vector<256x128xf32>
    %c1_76 = arith.constant 1 : index
    %c1_77 = arith.constant 1 : index
    %c0_78 = arith.constant 0 : index
    %c0_79 = arith.constant 0 : index
    %55 = vector.load %arg5[%c1_76, %c1_77, %c0_78, %c0_79] : memref<3x3x128x128xf32, #tpu.memory_space<vmem>>, vector<1x1x128x128xf32>
    %56 = vector.shape_cast %55 : vector<1x1x128x128xf32> to vector<128x128xf32>
    %cst_80 = arith.constant dense<0.000000e+00> : vector<256x128xf32>
    %57 = tpu.matmul %54, %56, %cst_80 {dimension_numbers = #tpu.dot_dimension_numbers<[1], [0], [0], [1], [0, 0, 1, 1], [], []>} : vector<256x128xf32>, vector<128x128xf32>, vector<256x128xf32> -> vector<256x128xf32>
    %58 = arith.addf %52, %57 : vector<256x128xf32>
    %c0_81 = arith.constant 0 : index
    %c0_82 = arith.constant 0 : index
    %59 = vector.load %arg10[%c0_81, %c0_82] : memref<256x128xf32, #tpu.memory_space<vmem>>, vector<256x128xf32>
    tpu.vector_store %arg10[%c0_81, %c0_82], %58 {strides = array<i32>} : memref<256x128xf32, #tpu.memory_space<vmem>>, vector<256x128xf32>,
    %c0_83 = arith.constant 0 : index
    %c0_84 = arith.constant 0 : index
    %60 = vector.load %arg10[%c0_83, %c0_84] : memref<256x128xf32, #tpu.memory_space<vmem>>, vector<256x128xf32>
    %c1_85 = arith.constant 1 : index
    %c2_86 = arith.constant 2 : index
    %c0_87 = arith.constant 0 : index
    %61 = vector.load %arg9[%c1_85, %c2_86, %c0_87] : memref<18x18x128xf32, #tpu.memory_space<vmem>>, vector<16x16x128xf32>
    %62 = vector.shape_cast %61 : vector<16x16x128xf32> to vector<256x128xf32>
    %c1_88 = arith.constant 1 : index
    %c2_89 = arith.constant 2 : index
    %c0_90 = arith.constant 0 : index
    %c0_91 = arith.constant 0 : index
    %63 = vector.load %arg5[%c1_88, %c2_89, %c0_90, %c0_91] : memref<3x3x128x128xf32, #tpu.memory_space<vmem>>, vector<1x1x128x128xf32>
    %64 = vector.shape_cast %63 : vector<1x1x128x128xf32> to vector<128x128xf32>
    %cst_92 = arith.constant dense<0.000000e+00> : vector<256x128xf32>
    %65 = tpu.matmul %62, %64, %cst_92 {dimension_numbers = #tpu.dot_dimension_numbers<[1], [0], [0], [1], [0, 0, 1, 1], [], []>} : vector<256x128xf32>, vector<128x128xf32>, vector<256x128xf32> -> vector<256x128xf32>
    %66 = arith.addf %60, %65 : vector<256x128xf32>
    %c0_93 = arith.constant 0 : index
    %c0_94 = arith.constant 0 : index
    %67 = vector.load %arg10[%c0_93, %c0_94] : memref<256x128xf32, #tpu.memory_space<vmem>>, vector<256x128xf32>
    tpu.vector_store %arg10[%c0_93, %c0_94], %66 {strides = array<i32>} : memref<256x128xf32, #tpu.memory_space<vmem>>, vector<256x128xf32>,
    %c0_95 = arith.constant 0 : index
    %c0_96 = arith.constant 0 : index
    %68 = vector.load %arg10[%c0_95, %c0_96] : memref<256x128xf32, #tpu.memory_space<vmem>>, vector<256x128xf32>
    %c2_97 = arith.constant 2 : index
    %c0_98 = arith.constant 0 : index
    %c0_99 = arith.constant 0 : index
    %69 = vector.load %arg9[%c2_97, %c0_98, %c0_99] : memref<18x18x128xf32, #tpu.memory_space<vmem>>, vector<16x16x128xf32>
    %70 = vector.shape_cast %69 : vector<16x16x128xf32> to vector<256x128xf32>
    %c2_100 = arith.constant 2 : index
    %c0_101 = arith.constant 0 : index
    %c0_102 = arith.constant 0 : index
    %c0_103 = arith.constant 0 : index
    %71 = vector.load %arg5[%c2_100, %c0_101, %c0_102, %c0_103] : memref<3x3x128x128xf32, #tpu.memory_space<vmem>>, vector<1x1x128x128xf32>
    %72 = vector.shape_cast %71 : vector<1x1x128x128xf32> to vector<128x128xf32>
    %cst_104 = arith.constant dense<0.000000e+00> : vector<256x128xf32>
    %73 = tpu.matmul %70, %72, %cst_104 {dimension_numbers = #tpu.dot_dimension_numbers<[1], [0], [0], [1], [0, 0, 1, 1], [], []>} : vector<256x128xf32>, vector<128x128xf32>, vector<256x128xf32> -> vector<256x128xf32>
    %74 = arith.addf %68, %73 : vector<256x128xf32>
    %c0_105 = arith.constant 0 : index
    %c0_106 = arith.constant 0 : index
    %75 = vector.load %arg10[%c0_105, %c0_106] : memref<256x128xf32, #tpu.memory_space<vmem>>, vector<256x128xf32>
    tpu.vector_store %arg10[%c0_105, %c0_106], %74 {strides = array<i32>} : memref<256x128xf32, #tpu.memory_space<vmem>>, vector<256x128xf32>,
    %c0_107 = arith.constant 0 : index
    %c0_108 = arith.constant 0 : index
    %76 = vector.load %arg10[%c0_107, %c0_108] : memref<256x128xf32, #tpu.memory_space<vmem>>, vector<256x128xf32>
    %c2_109 = arith.constant 2 : index
    %c1_110 = arith.constant 1 : index
    %c0_111 = arith.constant 0 : index
    %77 = vector.load %arg9[%c2_109, %c1_110, %c0_111] : memref<18x18x128xf32, #tpu.memory_space<vmem>>, vector<16x16x128xf32>
    %78 = vector.shape_cast %77 : vector<16x16x128xf32> to vector<256x128xf32>
    %c2_112 = arith.constant 2 : index
    %c1_113 = arith.constant 1 : index
    %c0_114 = arith.constant 0 : index
    %c0_115 = arith.constant 0 : index
    %79 = vector.load %arg5[%c2_112, %c1_113, %c0_114, %c0_115] : memref<3x3x128x128xf32, #tpu.memory_space<vmem>>, vector<1x1x128x128xf32>
    %80 = vector.shape_cast %79 : vector<1x1x128x128xf32> to vector<128x128xf32>
    %cst_116 = arith.constant dense<0.000000e+00> : vector<256x128xf32>
    %81 = tpu.matmul %78, %80, %cst_116 {dimension_numbers = #tpu.dot_dimension_numbers<[1], [0], [0], [1], [0, 0, 1, 1], [], []>} : vector<256x128xf32>, vector<128x128xf32>, vector<256x128xf32> -> vector<256x128xf32>
    %82 = arith.addf %76, %81 : vector<256x128xf32>
    %c0_117 = arith.constant 0 : index
    %c0_118 = arith.constant 0 : index
    %83 = vector.load %arg10[%c0_117, %c0_118] : memref<256x128xf32, #tpu.memory_space<vmem>>, vector<256x128xf32>
    tpu.vector_store %arg10[%c0_117, %c0_118], %82 {strides = array<i32>} : memref<256x128xf32, #tpu.memory_space<vmem>>, vector<256x128xf32>,
    %c0_119 = arith.constant 0 : index
    %c0_120 = arith.constant 0 : index
    %84 = vector.load %arg10[%c0_119, %c0_120] : memref<256x128xf32, #tpu.memory_space<vmem>>, vector<256x128xf32>
    %c2_121 = arith.constant 2 : index
    %c2_122 = arith.constant 2 : index
    %c0_123 = arith.constant 0 : index
    %85 = vector.load %arg9[%c2_121, %c2_122, %c0_123] : memref<18x18x128xf32, #tpu.memory_space<vmem>>, vector<16x16x128xf32>
    %86 = vector.shape_cast %85 : vector<16x16x128xf32> to vector<256x128xf32>
    %c2_124 = arith.constant 2 : index
    %c2_125 = arith.constant 2 : index
    %c0_126 = arith.constant 0 : index
    %c0_127 = arith.constant 0 : index
    %87 = vector.load %arg5[%c2_124, %c2_125, %c0_126, %c0_127] : memref<3x3x128x128xf32, #tpu.memory_space<vmem>>, vector<1x1x128x128xf32>
    %88 = vector.shape_cast %87 : vector<1x1x128x128xf32> to vector<128x128xf32>
    %cst_128 = arith.constant dense<0.000000e+00> : vector<256x128xf32>
    %89 = tpu.matmul %86, %88, %cst_128 {dimension_numbers = #tpu.dot_dimension_numbers<[1], [0], [0], [1], [0, 0, 1, 1], [], []>} : vector<256x128xf32>, vector<128x128xf32>, vector<256x128xf32> -> vector<256x128xf32>
    %90 = arith.addf %84, %89 : vector<256x128xf32>
    %c0_129 = arith.constant 0 : index
    %c0_130 = arith.constant 0 : index
    %91 = vector.load %arg10[%c0_129, %c0_130] : memref<256x128xf32, #tpu.memory_space<vmem>>, vector<256x128xf32>
    tpu.vector_store %arg10[%c0_129, %c0_130], %90 {strides = array<i32>} : memref<256x128xf32, #tpu.memory_space<vmem>>, vector<256x128xf32>,
    %c0_131 = arith.constant 0 : index
    %c0_132 = arith.constant 0 : index
    %92 = vector.load %arg10[%c0_131, %c0_132] : memref<256x128xf32, #tpu.memory_space<vmem>>, vector<256x128xf32>
    %c0_133 = arith.constant 0 : index
    %c0_134 = arith.constant 0 : index
    %93 = vector.load %arg6[%c0_133, %c0_134] : memref<1x128xf32, #tpu.memory_space<vmem>>, vector<1x128xf32>
    %94 = vector.broadcast %93 : vector<1x128xf32> to vector<256x128xf32>
    %95 = arith.mulf %92, %94 : vector<256x128xf32>
    %c0_135 = arith.constant 0 : index
    %c0_136 = arith.constant 0 : index
    %96 = vector.load %arg7[%c0_135, %c0_136] : memref<1x128xf32, #tpu.memory_space<vmem>>, vector<1x128xf32>
    %97 = vector.broadcast %96 : vector<1x128xf32> to vector<256x128xf32>
    %98 = arith.addf %95, %97 : vector<256x128xf32>
    %cst_137 = arith.constant 0.000000e+00 : f32
    %99 = vector.broadcast %cst_137 : f32 to vector<256x128xf32>
    %100 = arith.maximumf %98, %99 : vector<256x128xf32>
    %c0_138 = arith.constant 0 : index
    %c0_139 = arith.constant 0 : index
    %c0_140 = arith.constant 0 : index
    %101 = vector.load %arg8[%c0_138, %c0_139, %c0_140] : memref<1x256x128xf32, #tpu.memory_space<vmem>>, vector<1x256x128xf32>
    %102 = vector.shape_cast %101 : vector<1x256x128xf32> to vector<256x128xf32>
    %103 = vector.shape_cast %100 : vector<256x128xf32> to vector<1x256x128xf32>
    tpu.vector_store %arg8[%c0_138, %c0_139, %c0_140], %103 {strides = array<i32>} : memref<1x256x128xf32, #tpu.memory_space<vmem>>, vector<1x256x128xf32>,
    return
  }
  func.func @transform_0(%arg0: i32) -> (i32, i32, i32) {
    %c0_i32 = arith.constant 0 : i32
    %c0_i32_0 = arith.constant 0 : i32
    %c0_i32_1 = arith.constant 0 : i32
    return %arg0, %c0_i32, %c0_i32_0 : i32, i32, i32
  }
  func.func @transform_1(%arg0: i32) -> (i32, i32) {
    %c0_i32 = arith.constant 0 : i32
    %c0_i32_0 = arith.constant 0 : i32
    %c0_i32_1 = arith.constant 0 : i32
    return %c0_i32, %c0_i32_0 : i32, i32
  }
  func.func @transform_2(%arg0: i32) -> (i32, i32) {
    %c0_i32 = arith.constant 0 : i32
    %c0_i32_0 = arith.constant 0 : i32
    %c0_i32_1 = arith.constant 0 : i32
    return %c0_i32, %c0_i32_0 : i32, i32
  }
  func.func @transform_3(%arg0: i32) -> (i32, i32) {
    %c0_i32 = arith.constant 0 : i32
    %c0_i32_0 = arith.constant 0 : i32
    %c0_i32_1 = arith.constant 0 : i32
    return %c0_i32, %c0_i32_0 : i32, i32
  }
  func.func @transform_4(%arg0: i32) -> (i32, i32, i32, i32) {
    %c0_i32 = arith.constant 0 : i32
    %c0_i32_0 = arith.constant 0 : i32
    %c0_i32_1 = arith.constant 0 : i32
    %c0_i32_2 = arith.constant 0 : i32
    %c0_i32_3 = arith.constant 0 : i32
    return %c0_i32, %c0_i32_0, %c0_i32_1, %c0_i32_2 : i32, i32, i32, i32
  }
  func.func @transform_5(%arg0: i32) -> (i32, i32) {
    %c0_i32 = arith.constant 0 : i32
    %c0_i32_0 = arith.constant 0 : i32
    %c0_i32_1 = arith.constant 0 : i32
    return %c0_i32, %c0_i32_0 : i32, i32
  }
  func.func @transform_6(%arg0: i32) -> (i32, i32) {
    %c0_i32 = arith.constant 0 : i32
    %c0_i32_0 = arith.constant 0 : i32
    %c0_i32_1 = arith.constant 0 : i32
    return %c0_i32, %c0_i32_0 : i32, i32
  }
  func.func @transform_7(%arg0: i32) -> (i32, i32, i32) {
    %c0_i32 = arith.constant 0 : i32
    %c0_i32_0 = arith.constant 0 : i32
    %c0_i32_1 = arith.constant 0 : i32
    return %arg0, %c0_i32, %c0_i32_0 : i32, i32, i32
  }
}

</mosaic_0001>

<llo_original>
// kernel: tpu_custom_call.1
$region0: #{tpu_custom_call.1}
  #allocation0 [shape = 'u32[]', space=smem, size = 0x4, offset = 0x4, fixed_abs, tag = 'smem constant byte address 0x4 - core index']
  #allocation1 [shape = 'u32[144,128]{1,0:T(1,128)}', space=vmem, size = 0x12000, scoped, tag = 'internal scratch']
  #allocation2 [shape = 'f32[18,18,128]{2,1,0:T(8,128)}', space=vmem, size = 0x36000, scoped, tag = 'scratch operand']
  #allocation3 [shape = 'f32[256,128]{1,0:T(8,128)}', space=vmem, size = 0x20000, scoped, tag = 'scratch operand']
  %s0 = inlined_call_operand.vmem [shape: f32[2,256,36], index: 0, kind: input, shape index: {}]
  %s1 = inlined_call_operand.vmem [shape: f32[36,128], index: 1, kind: input, shape index: {}]
  %s2 = inlined_call_operand.vmem [shape: f32[1,128], index: 2, kind: input, shape index: {}]
  %s3 = inlined_call_operand.vmem [shape: f32[1,128], index: 3, kind: input, shape index: {}]
  %s4 = inlined_call_operand.hbm [shape: f32[3,3,128,128], index: 4, kind: input, shape index: {}]
  %s5 = inlined_call_operand.vmem [shape: f32[1,128], index: 5, kind: input, shape index: {}]
  %s6 = inlined_call_operand.vmem [shape: f32[1,128], index: 6, kind: input, shape index: {}]
  %s7 = inlined_call_operand.hbm [shape: f32[2,256,128], index: 7, kind: output, shape index: {}]
  %s8 = sld [smem:[#allocation0]]
  $region65: #{tpu_custom_call.1} parent=0
    _
  %s10 = ssub.s32 1, %s8
  %s11 = scalar_select 0, %s10, %s8
  $region1: #{tpu_custom_call.1} parent=0
    #allocation4 [shape = 'u8[589824]{0}', space=vmem, size = 0x90000, scoped, tag = 'input window, operand 4, single buffered']
    #allocation5 [shape = 's32[2]{0}', space=sflag, size = 0x8, scoped, tag = 'scoped memory for tpu_custom_call.1']
    #allocation6 [shape = 's32[2]{0}', space=sflag, size = 0x8, scoped, tag = 'scoped memory for tpu_custom_call.1']
    #allocation7 [shape = 'u8[262144]{0}', space=vmem, size = 0x40000, scoped, tag = 'output window, operand 0']
    %12 = vsyncpa [#allocation5], 0
    %13 = vsyncpa [#allocation6], 0
    %s14 = scalar_lea.sflag [#allocation6], 1
    %15 = vsyncpa %s14, 0
    loop: start=0, step=1, limit=4
    $region2: #{tpu_custom_call.1} parent=1 // loop_pre_header
      _
    $region3: #{tpu_custom_call.1} parent=1 // loop_header
      %s17 = sphi 0, %s21
      %p18 = scmp.ge.s32.totalorder %s17, 4
      %s27 = sphi 0, %s29
      %s30 = sphi 0, %s27
      %s31 = sphi 0, %s30
      %s47 = sphi 0, %s31
      %s51 = sphi 0, %s51
      %s53 = sphi 0, %s51
      %s54 = sphi 0, %s53
      %s68 = sphi 0, %s54
      %s72 = sphi 0, %s72
      %s74 = sphi 0, %s72
      %s75 = sphi 0, %s74
      %s89 = sphi 0, %s75
      %s93 = sphi 0, %s93
      %s95 = sphi 0, %s93
      %s96 = sphi 0, %s95
      %s110 = sphi 0, %s96
      %s114 = sphi 0, %s114
      %s116 = sphi 0, %s114
      %s117 = sphi 0, %s116
      %s131 = sphi 0, %s117
      %s135 = sphi 0, %s135
      %s137 = sphi 0, %s135
      %s138 = sphi 0, %s137
      %s152 = sphi 0, %s138
      %s156 = sphi 0, %s156
      %s158 = sphi 0, %s156
      %s159 = sphi 0, %s158
      %s173 = sphi 0, %s159
      %s179 = sphi 0, %s181
      %s182 = sphi 0, %s179
      %s183 = sphi 0, %s182
      %s199 = sphi 0, %s183
    $region4: #{tpu_custom_call.1} parent=1 // loop_header_branch
      %20 = sbr.rel (%p18) target = $region8
    $region5: #{tpu_custom_call.1} parent=1 // loop_body
      %s22 = ssub.s32 %s17, 1
      %s23 = ssub.s32 %s17, 2
      %s24 = sadd.s32 %s17, 1
      %s25 = ssub.s32 %s17, %s24
      %p26 = scmp.eq.s32.totalorder %s25, 0
      %s28 = sadd.s32 %s27, 1
      %s29 = scalar_select %p26, %s27, %s28
      %p32 = pneg %p26
      %p33 = scmp.eq.s32.totalorder %s17, 1
      %p34 = por %p32, %p33
      %p35 = scmp.ne.s32.totalorder %s27, %s30
      %p36 = scmp.eq.s32.totalorder %s17, 0
      %p37 = por %p35, %p36
      %p38 = scmp.ne.s32.totalorder %s27, %s30
      %p39 = scmp.eq.s32.totalorder %s22, 1
      %p40 = por %p38, %p39
      %p41 = scmp.ne.s32.totalorder %s30, %s31
      %p42 = scmp.eq.s32.totalorder %s22, 0
      %p43 = por %p41, %p42
      %p44 = scmp.ne.s32.totalorder %s30, %s31
      %p45 = scmp.eq.s32.totalorder %s23, 1
      %p46 = por %p44, %p45
      %p48 = scmp.ne.s32.totalorder %s31, %s47
      %p49 = scmp.eq.s32.totalorder %s23, 0
      %p50 = por %p48, %p49
      %s52 = sadd.s32 %s51, 1
      %p55 = scmp.eq.s32.totalorder %s17, 1
      %p56 = scmp.ne.s32.totalorder %s51, %s53
      %p57 = scmp.eq.s32.totalorder %s17, 0
      %p58 = por %p56, %p57
      %p59 = scmp.ne.s32.totalorder %s51, %s53
      %p60 = scmp.eq.s32.totalorder %s22, 1
      %p61 = por %p59, %p60
      %p62 = scmp.ne.s32.totalorder %s53, %s54
      %p63 = scmp.eq.s32.totalorder %s22, 0
      %p64 = por %p62, %p63
      %p65 = scmp.ne.s32.totalorder %s53, %s54
      %p66 = scmp.eq.s32.totalorder %s23, 1
      %p67 = por %p65, %p66
      %p69 = scmp.ne.s32.totalorder %s54, %s68
      %p70 = scmp.eq.s32.totalorder %s23, 0
      %p71 = por %p69, %p70
      %s73 = sadd.s32 %s72, 1
      %p76 = scmp.eq.s32.totalorder %s17, 1
      %p77 = scmp.ne.s32.totalorder %s72, %s74
      %p78 = scmp.eq.s32.totalorder %s17, 0
      %p79 = por %p77, %p78
      %p80 = scmp.ne.s32.totalorder %s72, %s74
      %p81 = scmp.eq.s32.totalorder %s22, 1
      %p82 = por %p80, %p81
      %p83 = scmp.ne.s32.totalorder %s74, %s75
      %p84 = scmp.eq.s32.totalorder %s22, 0
      %p85 = por %p83, %p84
      %p86 = scmp.ne.s32.totalorder %s74, %s75
      %p87 = scmp.eq.s32.totalorder %s23, 1
      %p88 = por %p86, %p87
      %p90 = scmp.ne.s32.totalorder %s75, %s89
      %p91 = scmp.eq.s32.totalorder %s23, 0
      %p92 = por %p90, %p91
      %s94 = sadd.s32 %s93, 1
      %p97 = scmp.eq.s32.totalorder %s17, 1
      %p98 = scmp.ne.s32.totalorder %s93, %s95
      %p99 = scmp.eq.s32.totalorder %s17, 0
      %p100 = por %p98, %p99
      %p101 = scmp.ne.s32.totalorder %s93, %s95
      %p102 = scmp.eq.s32.totalorder %s22, 1
      %p103 = por %p101, %p102
      %p104 = scmp.ne.s32.totalorder %s95, %s96
      %p105 = scmp.eq.s32.totalorder %s22, 0
      %p106 = por %p104, %p105
      %p107 = scmp.ne.s32.totalorder %s95, %s96
      %p108 = scmp.eq.s32.totalorder %s23, 1
      %p109 = por %p107, %p108
      %p111 = scmp.ne.s32.totalorder %s96, %s110
      %p112 = scmp.eq.s32.totalorder %s23, 0
      %p113 = por %p111, %p112
      %s115 = sadd.s32 %s114, 1
      %p118 = scmp.eq.s32.totalorder %s17, 1
      %p119 = scmp.ne.s32.totalorder %s114, %s116
      %p120 = scmp.eq.s32.totalorder %s17, 0
      %p121 = por %p119, %p120
      %p122 = scmp.ne.s32.totalorder %s114, %s116
      %p123 = scmp.eq.s32.totalorder %s22, 1
      %p124 = por %p122, %p123
      %p125 = scmp.ne.s32.totalorder %s116, %s117
      %p126 = scmp.eq.s32.totalorder %s22, 0
      %p127 = por %p125, %p126
      %p128 = scmp.ne.s32.totalorder %s116, %s117
      %p129 = scmp.eq.s32.totalorder %s23, 1
      %p130 = por %p128, %p129
      %p132 = scmp.ne.s32.totalorder %s117, %s131
      %p133 = scmp.eq.s32.totalorder %s23, 0
      %p134 = por %p132, %p133
      %s136 = sadd.s32 %s135, 1
      %p139 = scmp.eq.s32.totalorder %s17, 1
      %p140 = scmp.ne.s32.totalorder %s135, %s137
      %p141 = scmp.eq.s32.totalorder %s17, 0
      %p142 = por %p140, %p141
      %p143 = scmp.ne.s32.totalorder %s135, %s137
      %p144 = scmp.eq.s32.totalorder %s22, 1
      %p145 = por %p143, %p144
      %p146 = scmp.ne.s32.totalorder %s137, %s138
      %p147 = scmp.eq.s32.totalorder %s22, 0
      %p148 = por %p146, %p147
      %p149 = scmp.ne.s32.totalorder %s137, %s138
      %p150 = scmp.eq.s32.totalorder %s23, 1
      %p151 = por %p149, %p150
      %p153 = scmp.ne.s32.totalorder %s138, %s152
      %p154 = scmp.eq.s32.totalorder %s23, 0
      %p155 = por %p153, %p154
      %s157 = sadd.s32 %s156, 1
      %p160 = scmp.eq.s32.totalorder %s17, 1
      %p161 = scmp.ne.s32.totalorder %s156, %s158
      %p162 = scmp.eq.s32.totalorder %s17, 0
      %p163 = por %p161, %p162
      %p164 = scmp.ne.s32.totalorder %s156, %s158
      %p165 = scmp.eq.s32.totalorder %s22, 1
      %p166 = por %p164, %p165
      %p167 = scmp.ne.s32.totalorder %s158, %s159
      %p168 = scmp.eq.s32.totalorder %s22, 0
      %p169 = por %p167, %p168
      %p170 = scmp.ne.s32.totalorder %s158, %s159
      %p171 = scmp.eq.s32.totalorder %s23, 1
      %p172 = por %p170, %p171
      %p174 = scmp.ne.s32.totalorder %s159, %s173
      %p175 = scmp.eq.s32.totalorder %s23, 0
      %p176 = por %p174, %p175
      %s177 = ssub.s32 %s17, %s24
      %p178 = scmp.eq.s32.totalorder %s177, 0
      %s180 = sadd.s32 %s179, 1
      %s181 = scalar_select %p178, %s179, %s180
      %p184 = pneg %p178
      %p185 = scmp.eq.s32.totalorder %s17, 1
      %p186 = por %p184, %p185
      %p187 = scmp.ne.s32.totalorder %s179, %s182
      %p188 = scmp.eq.s32.totalorder %s17, 0
      %p189 = por %p187, %p188
      %p190 = scmp.ne.s32.totalorder %s179, %s182
      %p191 = scmp.eq.s32.totalorder %s22, 1
      %p192 = por %p190, %p191
      %p193 = scmp.ne.s32.totalorder %s182, %s183
      %p194 = scmp.eq.s32.totalorder %s22, 0
      %p195 = por %p193, %p194
      %p196 = scmp.ne.s32.totalorder %s182, %s183
      %p197 = scmp.eq.s32.totalorder %s23, 1
      %p198 = por %p196, %p197
      %p200 = scmp.ne.s32.totalorder %s183, %s199
      %p201 = scmp.eq.s32.totalorder %s23, 0
      %p202 = por %p200, %p201
      %p203 = scmp.le.s32.totalorder 1, %s17
      %p204 = scmp.lt.s32.totalorder %s17, 3
      %p205 = pnand %p203, %p204
      %p206 = pneg %p205
      // Predicated region
      $region9: #{tpu_custom_call.1} parent=5 // pred_check
        _
      $region10: #{tpu_custom_call.1} parent=5 // pred_check_branch
        %208 = sbr.rel (%p205) target = $region12
      $region11: #{tpu_custom_call.1} parent=5 // pred_region
        %s209 = ssub.s32 %s17, 1
        // Predicated region
        $region13: #{tpu_custom_call.1} parent=11 // pred_check
          %p210 = pneg %p64
        $region14: #{tpu_custom_call.1} parent=11 // pred_check_branch
          %212 = sbr.rel (%p210) target = $region16
        $region15: #{tpu_custom_call.1} parent=11 // pred_region
          _
        $region16: #{tpu_custom_call.1} parent=11 // pred_fallthru
          _
        // Predicated region
        $region17: #{tpu_custom_call.1} parent=11 // pred_check
          %p213 = pneg %p85
        $region18: #{tpu_custom_call.1} parent=11 // pred_check_branch
          %215 = sbr.rel (%p213) target = $region20
        $region19: #{tpu_custom_call.1} parent=11 // pred_region
          _
        $region20: #{tpu_custom_call.1} parent=11 // pred_fallthru
          _
        // Predicated region
        $region21: #{tpu_custom_call.1} parent=11 // pred_check
          %p216 = pneg %p106
        $region22: #{tpu_custom_call.1} parent=11 // pred_check_branch
          %218 = sbr.rel (%p216) target = $region24
        $region23: #{tpu_custom_call.1} parent=11 // pred_region
          _
        $region24: #{tpu_custom_call.1} parent=11 // pred_fallthru
          _
        // Predicated region
        $region25: #{tpu_custom_call.1} parent=11 // pred_check
          %p219 = pneg %p127
        $region26: #{tpu_custom_call.1} parent=11 // pred_check_branch
          %221 = sbr.rel (%p219) target = $region28
        $region27: #{tpu_custom_call.1} parent=11 // pred_region
          %s223 = ssub.s32 18432, 18432
          %224 = vsyncadd [#allocation5], %s223
          %s225 = sshll.u32 [#allocation4], 4
          %s226 = int_to_ptr.vmem [resolvable:$true] %s225
          %231 = dma.hbm_to_vmem [thread:$0]  %s4, 18432, %s226, [#allocation5], 128, 128, 8
        $region28: #{tpu_custom_call.1} parent=11 // pred_fallthru
          _
        // Predicated region
        $region29: #{tpu_custom_call.1} parent=11 // pred_check
          %p232 = pneg %p148
        $region30: #{tpu_custom_call.1} parent=11 // pred_check_branch
          %234 = sbr.rel (%p232) target = $region32
        $region31: #{tpu_custom_call.1} parent=11 // pred_region
          _
        $region32: #{tpu_custom_call.1} parent=11 // pred_fallthru
          _
        // Predicated region
        $region33: #{tpu_custom_call.1} parent=11 // pred_check
          %p235 = pneg %p169
        $region34: #{tpu_custom_call.1} parent=11 // pred_check_branch
          %237 = sbr.rel (%p235) target = $region36
        $region35: #{tpu_custom_call.1} parent=11 // pred_region
          _
        $region36: #{tpu_custom_call.1} parent=11 // pred_fallthru
          _
      $region12: #{tpu_custom_call.1} parent=5 // pred_fallthru
        _
      %p238 = scmp.lt.s32.totalorder %s17, 2
      // Predicated region
      $region37: #{tpu_custom_call.1} parent=5 // pred_check
        %p239 = pneg %p238
      $region38: #{tpu_custom_call.1} parent=5 // pred_check_branch
        %241 = sbr.rel (%p239) target = $region40
      $region39: #{tpu_custom_call.1} parent=5 // pred_region
        // Predicated region
        $region41: #{tpu_custom_call.1} parent=39 // pred_check
          %p242 = pneg %p37
        $region42: #{tpu_custom_call.1} parent=39 // pred_check_branch
          %244 = sbr.rel (%p242) target = $region44
        $region43: #{tpu_custom_call.1} parent=39 // pred_region
          %p245 = scmp.lt.s32.totalorder %s17, 1
          %s246 = scalar_select %p245, %s17, 1
          %s247 = smul.addr %s246, 32
          %s248 = smul.addr %s247, 8
          %s249 = scalar_lea.vmem %s0, %s248
        $region44: #{tpu_custom_call.1} parent=39 // pred_fallthru
          _
      $region40: #{tpu_custom_call.1} parent=5 // pred_fallthru
        _
      %p250 = scmp.le.s32.totalorder 1, %s17
      %p251 = scmp.lt.s32.totalorder %s17, 3
      %p252 = pnand %p250, %p251
      %p253 = pneg %p252
      // Predicated region
      $region45: #{tpu_custom_call.1} parent=5 // pred_check
        _
      $region46: #{tpu_custom_call.1} parent=5 // pred_check_branch
        %255 = sbr.rel (%p252) target = $region48
      $region47: #{tpu_custom_call.1} parent=5 // pred_region
        %s256 = ssub.s32 %s17, 1
        // Predicated region
        $region49: #{tpu_custom_call.1} parent=47 // pred_check
          %p257 = pneg %p127
        $region50: #{tpu_custom_call.1} parent=47 // pred_check_branch
          %259 = sbr.rel (%p257) target = $region52
        $region51: #{tpu_custom_call.1} parent=47 // pred_region
          %260 = dma.done [#allocation5], 18432
        $region52: #{tpu_custom_call.1} parent=47 // pred_fallthru
          _
        %p261 = scmp.lt.s32.totalorder %s22, 1
        %s262 = scalar_select %p261, %s22, 1
        %s263 = smul.addr %s262, 32
        %s264 = smul.addr %s263, 8
        %s265 = scalar_lea.vmem %s0, %s264
        %p266 = pneg %p43
        %p267 = pneg %p40
        %p268 = pneg %p64
        %p269 = pneg %p61
        %p270 = pneg %p85
        %p271 = pneg %p82
        %p272 = pneg %p106
        %p273 = pneg %p103
        %p274 = pneg %p127
        %p275 = pneg %p124
        %p276 = pneg %p148
        %p277 = pneg %p145
        %p278 = pneg %p169
        %p279 = pneg %p166
        %p280 = pneg %p195
        %p281 = pneg %p192
        %s282 = sand.u32 %s182, 1
        %s283 = scalar_lea.sflag [#allocation6], %s282
        %s284 = sand.u32 %s182, 1
        %s285 = smul.addr %s284, 256
        %s286 = scalar_lea.vmem [#allocation7], %s285
        %p287 = scmp.lt.s32.totalorder %s22, 1
        %s288 = scalar_select %p287, %s22, 1
        %s289 = smul.addr %s288, 32
        %s290 = smul.addr %s289, 8
        %s291 = scalar_lea.vmem %s0, %s290
        %v292 = vld [vmem:[%s291] sm:$0xff]
        %v293 = vld [vmem:[%s291 + $0x8] sm:$0xff]
        %v294 = vld [vmem:[%s291 + $0x10] sm:$0xff]
        %v295 = vld [vmem:[%s291 + $0x18] sm:$0xff]
        %v296 = vld [vmem:[%s291 + $0x20] sm:$0xff]
        %v297 = vld [vmem:[%s291 + $0x28] sm:$0xff]
        %v298 = vld [vmem:[%s291 + $0x30] sm:$0xff]
        %v299 = vld [vmem:[%s291 + $0x38] sm:$0xff]
        %v300 = vld [vmem:[%s291 + $0x40] sm:$0xff]
        %v301 = vld [vmem:[%s291 + $0x48] sm:$0xff]
        %v302 = vld [vmem:[%s291 + $0x50] sm:$0xff]
        %v303 = vld [vmem:[%s291 + $0x58] sm:$0xff]
        %v304 = vld [vmem:[%s291 + $0x60] sm:$0xff]
        %v305 = vld [vmem:[%s291 + $0x68] sm:$0xff]
        %v306 = vld [vmem:[%s291 + $0x70] sm:$0xff]
        %v307 = vld [vmem:[%s291 + $0x78] sm:$0xff]
        %v308 = vld [vmem:[%s291 + $0x80] sm:$0xff]
        %v309 = vld [vmem:[%s291 + $0x88] sm:$0xff]
        %v310 = vld [vmem:[%s291 + $0x90] sm:$0xff]
        %v311 = vld [vmem:[%s291 + $0x98] sm:$0xff]
        %v312 = vld [vmem:[%s291 + $0xa0] sm:$0xff]
        %v313 = vld [vmem:[%s291 + $0xa8] sm:$0xff]
        %v314 = vld [vmem:[%s291 + $0xb0] sm:$0xff]
        %v315 = vld [vmem:[%s291 + $0xb8] sm:$0xff]
        %v316 = vld [vmem:[%s291 + $0xc0] sm:$0xff]
        %v317 = vld [vmem:[%s291 + $0xc8] sm:$0xff]
        %v318 = vld [vmem:[%s291 + $0xd0] sm:$0xff]
        %v319 = vld [vmem:[%s291 + $0xd8] sm:$0xff]
        %v320 = vld [vmem:[%s291 + $0xe0] sm:$0xff]
        %v321 = vld [vmem:[%s291 + $0xe8] sm:$0xff]
        %v322 = vld [vmem:[%s291 + $0xf0] sm:$0xff]
        %v323 = vld [vmem:[%s291 + $0xf8] sm:$0xff]
        %v324 = vld [vmem:[%s1] sm:$0xff]
        %v325 = vld [vmem:[%s1 + $0x8] sm:$0xff]
        %v326 = vld [vmem:[%s1 + $0x10] sm:$0xff]
        %v327 = vld [vmem:[%s1 + $0x18] sm:$0xff]
        %v328 = vld [vmem:[%s1 + $0x20] sm:$0xf]
        %vm329 = vcmask 293888
        %v331 = vsel %vm329, %v292, 0
        %v334 = vsel %vm329, %v293, 0
        %v337 = vsel %vm329, %v294, 0
        %v340 = vsel %vm329, %v295, 0
        %v343 = vsel %vm329, %v296, 0
        %v346 = vsel %vm329, %v297, 0
        %v349 = vsel %vm329, %v298, 0
        %v352 = vsel %vm329, %v299, 0
        %v355 = vsel %vm329, %v300, 0
        %v358 = vsel %vm329, %v301, 0
        %v361 = vsel %vm329, %v302, 0
        %v364 = vsel %vm329, %v303, 0
        %v367 = vsel %vm329, %v304, 0
        %v370 = vsel %vm329, %v305, 0
        %v373 = vsel %vm329, %v306, 0
        %v376 = vsel %vm329, %v307, 0
        %v379 = vsel %vm329, %v308, 0
        %v382 = vsel %vm329, %v309, 0
        %v385 = vsel %vm329, %v310, 0
        %v388 = vsel %vm329, %v311, 0
        %v391 = vsel %vm329, %v312, 0
        %v394 = vsel %vm329, %v313, 0
        %v397 = vsel %vm329, %v314, 0
        %v400 = vsel %vm329, %v315, 0
        %v403 = vsel %vm329, %v316, 0
        %v406 = vsel %vm329, %v317, 0
        %v409 = vsel %vm329, %v318, 0
        %v412 = vsel %vm329, %v319, 0
        %v415 = vsel %vm329, %v320, 0
        %v418 = vsel %vm329, %v321, 0
        %v421 = vsel %vm329, %v322, 0
        %v424 = vsel %vm329, %v323, 0
        %vm426 = vcmask 1043456
        %v428 = vsel %vm426, %v328, 0
        %430 = vmatprep.subr.mxu0 0.0
        %431 = vmatpush1.msra.mxu0 %v324
        %432 = vmatprep.subr.mxu0 0.0
        %433 = vmatpush1.msra.mxu0 %v325
        %434 = vmatprep.subr.mxu0 0.0
        %435 = vmatpush1.msra.mxu0 %v326
        %436 = vmatprep.subr.mxu0 0.0
        %437 = vmatpush1.msra.mxu0 %v327
        %438 = vmatprep.subr.mxu0 0.0
        %439 = vmatpush1.msra.mxu0 %v428
        %440 = vmatprep.subr.mxu0 0.0
        %441 = vmatpush1.msra.mxu0 0.0
        %442 = vmatprep.subr.mxu0 0.0
        %443 = vmatpush1.msra.mxu0 0.0
        %444 = vmatprep.subr.mxu0 0.0
        %445 = vmatpush1.msra.mxu0 0.0
        %446 = vmatprep.subr.mxu0 0.0
        %447 = vmatpush1.msra.mxu0 0.0
        %448 = vmatprep.subr.mxu0 0.0
        %449 = vmatpush1.msra.mxu0 0.0
        %450 = vmatprep.subr.mxu0 0.0
        %451 = vmatpush1.msra.mxu0 0.0
        %452 = vmatprep.subr.mxu0 0.0
        %453 = vmatpush1.msra.mxu0 0.0
        %454 = vmatprep.subr.mxu0 0.0
        %455 = vmatpush1.msra.mxu0 0.0
        %456 = vmatprep.subr.mxu0 0.0
        %457 = vmatpush1.msra.mxu0 0.0
        %458 = vmatprep.subr.mxu0 0.0
        %459 = vmatpush1.msra.mxu0 0.0
        %460 = vmatprep.subr.mxu0 0.0
        %461 = vmatpush1.msra.mxu0 0.0
        %462 = vmatprep.subr.mxu0 0.0
        %463 = vmatpush1.msra.mxu0 0.0
        %464 = vmatprep.subr.mxu0 0.0
        %465 = vmatpush1.msra.mxu0 0.0
        %466 = vmatprep.subr.mxu0 0.0
        %467 = vmatpush1.msra.mxu0 0.0
        %468 = vmatprep.subr.mxu0 0.0
        %469 = vmatpush1.msra.mxu0 0.0
        %470 = vmatprep.subr.mxu0 0.0
        %471 = vmatpush1.msra.mxu0 0.0
        %472 = vmatprep.subr.mxu0 0.0
        %473 = vmatpush1.msra.mxu0 0.0
        %474 = vmatprep.subr.mxu0 0.0
        %475 = vmatpush1.msra.mxu0 0.0
        %476 = vmatprep.subr.mxu0 0.0
        %477 = vmatpush1.msra.mxu0 0.0
        %478 = vmatprep.subr.mxu0 0.0
        %479 = vmatpush1.msra.mxu0 0.0
        %480 = vmatprep.subr.mxu0 0.0
        %481 = vmatpush1.msra.mxu0 0.0
        %482 = vmatprep.subr.mxu0 0.0
        %483 = vmatpush1.msra.mxu0 0.0
        %484 = vmatprep.subr.mxu0 0.0
        %485 = vmatpush1.msra.mxu0 0.0
        %486 = vmatprep.subr.mxu0 0.0
        %487 = vmatpush1.msra.mxu0 0.0
        %488 = vmatprep.subr.mxu0 0.0
        %489 = vmatpush1.msra.mxu0 0.0
        %490 = vmatprep.subr.mxu0 0.0
        %491 = vmatpush1.msra.mxu0 0.0
        %492 = vmatprep.subr.mxu0 0.0
        %493 = vmatpush1.msra.mxu0 0.0
        %494 = vmatprep.mubr.f32.mxu0 0.0
        %495 = vmatmul.mubr.f32.gmra.mrb[0].mxu0 %v331
        %v496 = vpop.f32.mrb[0].mxu0
        %v497 = vadd.f32 0.0, %v496
        %v498 = vpop.f32.mrb[0].mxu0
        %499 = vmatprep.mubr.f32.mxu0 0.0
        %500 = vmatmul.mubr.f32.gmra.mrb[0].mxu0 %v334
        %v501 = vpop.f32.mrb[0].mxu0
        %v502 = vadd.f32 0.0, %v501
        %v503 = vpop.f32.mrb[0].mxu0
        %504 = vmatprep.mubr.f32.mxu0 0.0
        %505 = vmatmul.mubr.f32.gmra.mrb[0].mxu0 %v337
        %v506 = vpop.f32.mrb[0].mxu0
        %v507 = vadd.f32 0.0, %v506
        %v508 = vpop.f32.mrb[0].mxu0
        %509 = vmatprep.mubr.f32.mxu0 0.0
        %510 = vmatmul.mubr.f32.gmra.mrb[0].mxu0 %v340
        %v511 = vpop.f32.mrb[0].mxu0
        %v512 = vadd.f32 0.0, %v511
        %v513 = vpop.f32.mrb[0].mxu0
        %514 = vmatprep.mubr.f32.mxu0 0.0
        %515 = vmatmul.mubr.f32.gmra.mrb[0].mxu0 %v343
        %v516 = vpop.f32.mrb[0].mxu0
        %v517 = vadd.f32 0.0, %v516
        %v518 = vpop.f32.mrb[0].mxu0
        %519 = vmatprep.mubr.f32.mxu0 0.0
        %520 = vmatmul.mubr.f32.gmra.mrb[0].mxu0 %v346
        %v521 = vpop.f32.mrb[0].mxu0
        %v522 = vadd.f32 0.0, %v521
        %v523 = vpop.f32.mrb[0].mxu0
        %524 = vmatprep.mubr.f32.mxu0 0.0
        %525 = vmatmul.mubr.f32.gmra.mrb[0].mxu0 %v349
        %v526 = vpop.f32.mrb[0].mxu0
        %v527 = vadd.f32 0.0, %v526
        %v528 = vpop.f32.mrb[0].mxu0
        %529 = vmatprep.mubr.f32.mxu0 0.0
        %530 = vmatmul.mubr.f32.gmra.mrb[0].mxu0 %v352
        %v531 = vpop.f32.mrb[0].mxu0
        %v532 = vadd.f32 0.0, %v531
        %v533 = vpop.f32.mrb[0].mxu0
        %534 = vmatprep.mubr.f32.mxu0 0.0
        %535 = vmatmul.mubr.f32.gmra.mrb[0].mxu0 %v355
        %v536 = vpop.f32.mrb[0].mxu0
        %v537 = vadd.f32 0.0, %v536
        %v538 = vpop.f32.mrb[0].mxu0
        %539 = vmatprep.mubr.f32.mxu0 0.0
        %540 = vmatmul.mubr.f32.gmra.mrb[0].mxu0 %v358
        %v541 = vpop.f32.mrb[0].mxu0
        %v542 = vadd.f32 0.0, %v541
        %v543 = vpop.f32.mrb[0].mxu0
        %544 = vmatprep.mubr.f32.mxu0 0.0
        %545 = vmatmul.mubr.f32.gmra.mrb[0].mxu0 %v361
        %v546 = vpop.f32.mrb[0].mxu0
        %v547 = vadd.f32 0.0, %v546
        %v548 = vpop.f32.mrb[0].mxu0
        %549 = vmatprep.mubr.f32.mxu0 0.0
        %550 = vmatmul.mubr.f32.gmra.mrb[0].mxu0 %v364
        %v551 = vpop.f32.mrb[0].mxu0
        %v552 = vadd.f32 0.0, %v551
        %v553 = vpop.f32.mrb[0].mxu0
        %554 = vmatprep.mubr.f32.mxu0 0.0
        %555 = vmatmul.mubr.f32.gmra.mrb[0].mxu0 %v367
        %v556 = vpop.f32.mrb[0].mxu0
        %v557 = vadd.f32 0.0, %v556
        %v558 = vpop.f32.mrb[0].mxu0
        %559 = vmatprep.mubr.f32.mxu0 0.0
        %560 = vmatmul.mubr.f32.gmra.mrb[0].mxu0 %v370
        %v561 = vpop.f32.mrb[0].mxu0
        %v562 = vadd.f32 0.0, %v561
        %v563 = vpop.f32.mrb[0].mxu0
        %564 = vmatprep.mubr.f32.mxu0 0.0
        %565 = vmatmul.mubr.f32.gmra.mrb[0].mxu0 %v373
        %v566 = vpop.f32.mrb[0].mxu0
        %v567 = vadd.f32 0.0, %v566
        %v568 = vpop.f32.mrb[0].mxu0
        %569 = vmatprep.mubr.f32.mxu0 0.0
        %570 = vmatmul.mubr.f32.gmra.mrb[0].mxu0 %v376
        %v571 = vpop.f32.mrb[0].mxu0
        %v572 = vadd.f32 0.0, %v571
        %v573 = vpop.f32.mrb[0].mxu0
        %574 = vmatprep.mubr.f32.mxu0 0.0
        %575 = vmatmul.mubr.f32.gmra.mrb[0].mxu0 %v379
        %v576 = vpop.f32.mrb[0].mxu0
        %v577 = vadd.f32 0.0, %v576
        %v578 = vpop.f32.mrb[0].mxu0
        %579 = vmatprep.mubr.f32.mxu0 0.0
        %580 = vmatmul.mubr.f32.gmra.mrb[0].mxu0 %v382
        %v581 = vpop.f32.mrb[0].mxu0
        %v582 = vadd.f32 0.0, %v581
        %v583 = vpop.f32.mrb[0].mxu0
        %584 = vmatprep.mubr.f32.mxu0 0.0
        %585 = vmatmul.mubr.f32.gmra.mrb[0].mxu0 %v385
        %v586 = vpop.f32.mrb[0].mxu0
        %v587 = vadd.f32 0.0, %v586
        %v588 = vpop.f32.mrb[0].mxu0
        %589 = vmatprep.mubr.f32.mxu0 0.0
        %590 = vmatmul.mubr.f32.gmra.mrb[0].mxu0 %v388
        %v591 = vpop.f32.mrb[0].mxu0
        %v592 = vadd.f32 0.0, %v591
        %v593 = vpop.f32.mrb[0].mxu0
        %594 = vmatprep.mubr.f32.mxu0 0.0
        %595 = vmatmul.mubr.f32.gmra.mrb[0].mxu0 %v391
        %v596 = vpop.f32.mrb[0].mxu0
        %v597 = vadd.f32 0.0, %v596
        %v598 = vpop.f32.mrb[0].mxu0
        %599 = vmatprep.mubr.f32.mxu0 0.0
        %600 = vmatmul.mubr.f32.gmra.mrb[0].mxu0 %v394
        %v601 = vpop.f32.mrb[0].mxu0
        %v602 = vadd.f32 0.0, %v601
        %v603 = vpop.f32.mrb[0].mxu0
        %604 = vmatprep.mubr.f32.mxu0 0.0
        %605 = vmatmul.mubr.f32.gmra.mrb[0].mxu0 %v397
        %v606 = vpop.f32.mrb[0].mxu0
        %v607 = vadd.f32 0.0, %v606
        %v608 = vpop.f32.mrb[0].mxu0
        %609 = vmatprep.mubr.f32.mxu0 0.0
        %610 = vmatmul.mubr.f32.gmra.mrb[0].mxu0 %v400
        %v611 = vpop.f32.mrb[0].mxu0
        %v612 = vadd.f32 0.0, %v611
        %v613 = vpop.f32.mrb[0].mxu0
        %614 = vmatprep.mubr.f32.mxu0 0.0
        %615 = vmatmul.mubr.f32.gmra.mrb[0].mxu0 %v403
        %v616 = vpop.f32.mrb[0].mxu0
        %v617 = vadd.f32 0.0, %v616
        %v618 = vpop.f32.mrb[0].mxu0
        %619 = vmatprep.mubr.f32.mxu0 0.0
        %620 = vmatmul.mubr.f32.gmra.mrb[0].mxu0 %v406
        %v621 = vpop.f32.mrb[0].mxu0
        %v622 = vadd.f32 0.0, %v621
        %v623 = vpop.f32.mrb[0].mxu0
        %624 = vmatprep.mubr.f32.mxu0 0.0
        %625 = vmatmul.mubr.f32.gmra.mrb[0].mxu0 %v409
        %v626 = vpop.f32.mrb[0].mxu0
        %v627 = vadd.f32 0.0, %v626
        %v628 = vpop.f32.mrb[0].mxu0
        %629 = vmatprep.mubr.f32.mxu0 0.0
        %630 = vmatmul.mubr.f32.gmra.mrb[0].mxu0 %v412
        %v631 = vpop.f32.mrb[0].mxu0
        %v632 = vadd.f32 0.0, %v631
        %v633 = vpop.f32.mrb[0].mxu0
        %634 = vmatprep.mubr.f32.mxu0 0.0
        %635 = vmatmul.mubr.f32.gmra.mrb[0].mxu0 %v415
        %v636 = vpop.f32.mrb[0].mxu0
        %v637 = vadd.f32 0.0, %v636
        %v638 = vpop.f32.mrb[0].mxu0
        %639 = vmatprep.mubr.f32.mxu0 0.0
        %640 = vmatmul.mubr.f32.gmra.mrb[0].mxu0 %v418
        %v641 = vpop.f32.mrb[0].mxu0
        %v642 = vadd.f32 0.0, %v641
        %v643 = vpop.f32.mrb[0].mxu0
        %644 = vmatprep.mubr.f32.mxu0 0.0
        %645 = vmatmul.mubr.f32.gmra.mrb[0].mxu0 %v421
        %v646 = vpop.f32.mrb[0].mxu0
        %v647 = vadd.f32 0.0, %v646
        %v648 = vpop.f32.mrb[0].mxu0
        %649 = vmatprep.mubr.f32.mxu0 0.0
        %650 = vmatmul.mubr.f32.gmra.mrb[0].mxu0 %v424
        %v651 = vpop.f32.mrb[0].mxu0
        %v652 = vadd.f32 0.0, %v651
        %v653 = vpop.f32.mrb[0].mxu0
        %654 = vdwg.mxu0
        %v655 = vld [vmem:[%s2] sm:$0x1]
        %v657 = vlaneseq
        %v658 = vshrl.u32 %v657, 7
        %v659 = vsub.s32 0, %v658
        %v660 = vrot.slane %v655, %v659
        %v662 = vmul.f32 %v497, %v660
        %v663 = vmul.f32 %v502, %v660
        %v664 = vmul.f32 %v507, %v660
        %v665 = vmul.f32 %v512, %v660
        %v666 = vmul.f32 %v517, %v660
        %v667 = vmul.f32 %v522, %v660
        %v668 = vmul.f32 %v527, %v660
        %v669 = vmul.f32 %v532, %v660
        %v670 = vmul.f32 %v537, %v660
        %v671 = vmul.f32 %v542, %v660
        %v672 = vmul.f32 %v547, %v660
        %v673 = vmul.f32 %v552, %v660
        %v674 = vmul.f32 %v557, %v660
        %v675 = vmul.f32 %v562, %v660
        %v676 = vmul.f32 %v567, %v660
        %v677 = vmul.f32 %v572, %v660
        %v678 = vmul.f32 %v577, %v660
        %v679 = vmul.f32 %v582, %v660
        %v680 = vmul.f32 %v587, %v660
        %v681 = vmul.f32 %v592, %v660
        %v682 = vmul.f32 %v597, %v660
        %v683 = vmul.f32 %v602, %v660
        %v684 = vmul.f32 %v607, %v660
        %v685 = vmul.f32 %v612, %v660
        %v686 = vmul.f32 %v617, %v660
        %v687 = vmul.f32 %v622, %v660
        %v688 = vmul.f32 %v627, %v660
        %v689 = vmul.f32 %v632, %v660
        %v690 = vmul.f32 %v637, %v660
        %v691 = vmul.f32 %v642, %v660
        %v692 = vmul.f32 %v647, %v660
        %v693 = vmul.f32 %v652, %v660
        %v694 = vld [vmem:[%s3] sm:$0x1]
        %v696 = vlaneseq
        %v697 = vshrl.u32 %v696, 7
        %v698 = vsub.s32 0, %v697
        %v699 = vrot.slane %v694, %v698
        %v701 = vadd.f32 %v662, %v699
        %v702 = vadd.f32 %v663, %v699
        %v703 = vadd.f32 %v664, %v699
        %v704 = vadd.f32 %v665, %v699
        %v705 = vadd.f32 %v666, %v699
        %v706 = vadd.f32 %v667, %v699
        %v707 = vadd.f32 %v668, %v699
        %v708 = vadd.f32 %v669, %v699
        %v709 = vadd.f32 %v670, %v699
        %v710 = vadd.f32 %v671, %v699
        %v711 = vadd.f32 %v672, %v699
        %v712 = vadd.f32 %v673, %v699
        %v713 = vadd.f32 %v674, %v699
        %v714 = vadd.f32 %v675, %v699
        %v715 = vadd.f32 %v676, %v699
        %v716 = vadd.f32 %v677, %v699
        %v717 = vadd.f32 %v678, %v699
        %v718 = vadd.f32 %v679, %v699
        %v719 = vadd.f32 %v680, %v699
        %v720 = vadd.f32 %v681, %v699
        %v721 = vadd.f32 %v682, %v699
        %v722 = vadd.f32 %v683, %v699
        %v723 = vadd.f32 %v684, %v699
        %v724 = vadd.f32 %v685, %v699
        %v725 = vadd.f32 %v686, %v699
        %v726 = vadd.f32 %v687, %v699
        %v727 = vadd.f32 %v688, %v699
        %v728 = vadd.f32 %v689, %v699
        %v729 = vadd.f32 %v690, %v699
        %v730 = vadd.f32 %v691, %v699
        %v731 = vadd.f32 %v692, %v699
        %v732 = vadd.f32 %v693, %v699
        %v733 = vmax.f32 %v701, 0.0
        %v734 = vmax.f32 %v702, 0.0
        %v735 = vmax.f32 %v703, 0.0
        %v736 = vmax.f32 %v704, 0.0
        %v737 = vmax.f32 %v705, 0.0
        %v738 = vmax.f32 %v706, 0.0
        %v739 = vmax.f32 %v707, 0.0
        %v740 = vmax.f32 %v708, 0.0
        %v741 = vmax.f32 %v709, 0.0
        %v742 = vmax.f32 %v710, 0.0
        %v743 = vmax.f32 %v711, 0.0
        %v744 = vmax.f32 %v712, 0.0
        %v745 = vmax.f32 %v713, 0.0
        %v746 = vmax.f32 %v714, 0.0
        %v747 = vmax.f32 %v715, 0.0
        %v748 = vmax.f32 %v716, 0.0
        %v749 = vmax.f32 %v717, 0.0
        %v750 = vmax.f32 %v718, 0.0
        %v751 = vmax.f32 %v719, 0.0
        %v752 = vmax.f32 %v720, 0.0
        %v753 = vmax.f32 %v721, 0.0
        %v754 = vmax.f32 %v722, 0.0
        %v755 = vmax.f32 %v723, 0.0
        %v756 = vmax.f32 %v724, 0.0
        %v757 = vmax.f32 %v725, 0.0
        %v758 = vmax.f32 %v726, 0.0
        %v759 = vmax.f32 %v727, 0.0
        %v760 = vmax.f32 %v728, 0.0
        %v761 = vmax.f32 %v729, 0.0
        %v762 = vmax.f32 %v730, 0.0
        %v763 = vmax.f32 %v731, 0.0
        %v764 = vmax.f32 %v732, 0.0
        %765 = vst [vmem:[#allocation2] sm:$0xff] 0.0
        %766 = vst [vmem:[#allocation2 + $0x8] sm:$0xff] 0.0
        %767 = vst [vmem:[#allocation2 + $0x10] sm:$0x3] 0.0
        %s768 = scalar_lea.vmem [#allocation2], 408
        %769 = vst [vmem:[%s768] sm:$0xff] 0.0
        %770 = vst [vmem:[%s768 + $0x8] sm:$0xff] 0.0
        %771 = vst [vmem:[%s768 + $0x10] sm:$0x3] 0.0
        %772 = vst [vmem:[#allocation2] sm:$0x1] 0.0
        %773 = vst [vmem:[#allocation2 + $0x18] sm:$0x1] 0.0
        %774 = vst [vmem:[#allocation2 + $0x30] sm:$0x1] 0.0
        %775 = vst [vmem:[#allocation2 + $0x48] sm:$0x1] 0.0
        %776 = vst [vmem:[#allocation2 + $0x60] sm:$0x1] 0.0
        %777 = vst [vmem:[#allocation2 + $0x78] sm:$0x1] 0.0
        %778 = vst [vmem:[#allocation2 + $0x90] sm:$0x1] 0.0
        %779 = vst [vmem:[#allocation2 + $0xa8] sm:$0x1] 0.0
        %780 = vst [vmem:[#allocation2 + $0xc0] sm:$0x1] 0.0
        %781 = vst [vmem:[#allocation2 + $0xd8] sm:$0x1] 0.0
        %782 = vst [vmem:[#allocation2 + $0xf0] sm:$0x1] 0.0
        %783 = vst [vmem:[#allocation2 + $0x108] sm:$0x1] 0.0
        %784 = vst [vmem:[#allocation2 + $0x120] sm:$0x1] 0.0
        %785 = vst [vmem:[#allocation2 + $0x138] sm:$0x1] 0.0
        %786 = vst [vmem:[#allocation2 + $0x150] sm:$0x1] 0.0
        %787 = vst [vmem:[#allocation2 + $0x168] sm:$0x1] 0.0
        %788 = vst [vmem:[#allocation2 + $0x180] sm:$0x1] 0.0
        %789 = vst [vmem:[#allocation2 + $0x198] sm:$0x1] 0.0
        %790 = vst [vmem:[#allocation2 + $0x11] sm:$0x1] 0.0
        %791 = vst [vmem:[#allocation2 + $0x29] sm:$0x1] 0.0
        %792 = vst [vmem:[#allocation2 + $0x41] sm:$0x1] 0.0
        %793 = vst [vmem:[#allocation2 + $0x59] sm:$0x1] 0.0
        %794 = vst [vmem:[#allocation2 + $0x71] sm:$0x1] 0.0
        %795 = vst [vmem:[#allocation2 + $0x89] sm:$0x1] 0.0
        %796 = vst [vmem:[#allocation2 + $0xa1] sm:$0x1] 0.0
        %797 = vst [vmem:[#allocation2 + $0xb9] sm:$0x1] 0.0
        %798 = vst [vmem:[#allocation2 + $0xd1] sm:$0x1] 0.0
        %799 = vst [vmem:[#allocation2 + $0xe9] sm:$0x1] 0.0
        %800 = vst [vmem:[#allocation2 + $0x101] sm:$0x1] 0.0
        %801 = vst [vmem:[#allocation2 + $0x119] sm:$0x1] 0.0
        %802 = vst [vmem:[#allocation2 + $0x131] sm:$0x1] 0.0
        %803 = vst [vmem:[#allocation2 + $0x149] sm:$0x1] 0.0
        %804 = vst [vmem:[#allocation2 + $0x161] sm:$0x1] 0.0
        %805 = vst [vmem:[#allocation2 + $0x179] sm:$0x1] 0.0
        %806 = vst [vmem:[#allocation2 + $0x191] sm:$0x1] 0.0
        %807 = vst [vmem:[#allocation2 + $0x1a9] sm:$0x1] 0.0
        %s808 = scalar_lea.vmem [#allocation2], 24
        %809 = vst [vmem:[%s808 + $0x1] sm:$0xff] %v733
        %810 = vst [vmem:[%s808 + $0x9] sm:$0xff] %v734
        %811 = vst [vmem:[%s808 + $0x19] sm:$0xff] %v735
        %812 = vst [vmem:[%s808 + $0x21] sm:$0xff] %v736
        %813 = vst [vmem:[%s808 + $0x31] sm:$0xff] %v737
        %814 = vst [vmem:[%s808 + $0x39] sm:$0xff] %v738
        %815 = vst [vmem:[%s808 + $0x49] sm:$0xff] %v739
        %816 = vst [vmem:[%s808 + $0x51] sm:$0xff] %v740
        %817 = vst [vmem:[%s808 + $0x61] sm:$0xff] %v741
        %818 = vst [vmem:[%s808 + $0x69] sm:$0xff] %v742
        %819 = vst [vmem:[%s808 + $0x79] sm:$0xff] %v743
        %820 = vst [vmem:[%s808 + $0x81] sm:$0xff] %v744
        %821 = vst [vmem:[%s808 + $0x91] sm:$0xff] %v745
        %822 = vst [vmem:[%s808 + $0x99] sm:$0xff] %v746
        %823 = vst [vmem:[%s808 + $0xa9] sm:$0xff] %v747
        %824 = vst [vmem:[%s808 + $0xb1] sm:$0xff] %v748
        %825 = vst [vmem:[%s808 + $0xc1] sm:$0xff] %v749
        %826 = vst [vmem:[%s808 + $0xc9] sm:$0xff] %v750
        %827 = vst [vmem:[%s808 + $0xd9] sm:$0xff] %v751
        %828 = vst [vmem:[%s808 + $0xe1] sm:$0xff] %v752
        %829 = vst [vmem:[%s808 + $0xf1] sm:$0xff] %v753
        %830 = vst [vmem:[%s808 + $0xf9] sm:$0xff] %v754
        %831 = vst [vmem:[%s808 + $0x109] sm:$0xff] %v755
        %832 = vst [vmem:[%s808 + $0x111] sm:$0xff] %v756
        %833 = vst [vmem:[%s808 + $0x121] sm:$0xff] %v757
        %834 = vst [vmem:[%s808 + $0x129] sm:$0xff] %v758
        %835 = vst [vmem:[%s808 + $0x139] sm:$0xff] %v759
        %836 = vst [vmem:[%s808 + $0x141] sm:$0xff] %v760
        %837 = vst [vmem:[%s808 + $0x151] sm:$0xff] %v761
        %838 = vst [vmem:[%s808 + $0x159] sm:$0xff] %v762
        %839 = vst [vmem:[%s808 + $0x169] sm:$0xff] %v763
        %840 = vst [vmem:[%s808 + $0x171] sm:$0xff] %v764
        %v841 = vld [vmem:[#allocation2] sm:$0xff]
        %v842 = vld [vmem:[#allocation2 + $0x8] sm:$0xff]
        %v843 = vld [vmem:[#allocation2 + $0x18] sm:$0xff]
        %v844 = vld [vmem:[#allocation2 + $0x20] sm:$0xff]
        %v845 = vld [vmem:[#allocation2 + $0x30] sm:$0xff]
        %v846 = vld [vmem:[#allocation2 + $0x38] sm:$0xff]
        %v847 = vld [vmem:[#allocation2 + $0x48] sm:$0xff]
        %v848 = vld [vmem:[#allocation2 + $0x50] sm:$0xff]
        %v849 = vld [vmem:[#allocation2 + $0x60] sm:$0xff]
        %v850 = vld [vmem:[#allocation2 + $0x68] sm:$0xff]
        %v851 = vld [vmem:[#allocation2 + $0x78] sm:$0xff]
        %v852 = vld [vmem:[#allocation2 + $0x80] sm:$0xff]
        %v853 = vld [vmem:[#allocation2 + $0x90] sm:$0xff]
        %v854 = vld [vmem:[#allocation2 + $0x98] sm:$0xff]
        %v855 = vld [vmem:[#allocation2 + $0xa8] sm:$0xff]
        %v856 = vld [vmem:[#allocation2 + $0xb0] sm:$0xff]
        %v857 = vld [vmem:[#allocation2 + $0xc0] sm:$0xff]
        %v858 = vld [vmem:[#allocation2 + $0xc8] sm:$0xff]
        %v859 = vld [vmem:[#allocation2 + $0xd8] sm:$0xff]
        %v860 = vld [vmem:[#allocation2 + $0xe0] sm:$0xff]
        %v861 = vld [vmem:[#allocation2 + $0xf0] sm:$0xff]
        %v862 = vld [vmem:[#allocation2 + $0xf8] sm:$0xff]
        %v863 = vld [vmem:[#allocation2 + $0x108] sm:$0xff]
        %v864 = vld [vmem:[#allocation2 + $0x110] sm:$0xff]
        %v865 = vld [vmem:[#allocation2 + $0x120] sm:$0xff]
        %v866 = vld [vmem:[#allocation2 + $0x128] sm:$0xff]
        %v867 = vld [vmem:[#allocation2 + $0x138] sm:$0xff]
        %v868 = vld [vmem:[#allocation2 + $0x140] sm:$0xff]
        %v869 = vld [vmem:[#allocation2 + $0x150] sm:$0xff]
        %v870 = vld [vmem:[#allocation2 + $0x158] sm:$0xff]
        %v871 = vld [vmem:[#allocation2 + $0x168] sm:$0xff]
        %v872 = vld [vmem:[#allocation2 + $0x170] sm:$0xff]
        %v873 = vld [vmem:[#allocation4] sm:$0xff]
        %v874 = vld [vmem:[#allocation4 + $0x8] sm:$0xff]
        %v875 = vld [vmem:[#allocation4 + $0x10] sm:$0xff]
        %v876 = vld [vmem:[#allocation4 + $0x18] sm:$0xff]
        %v877 = vld [vmem:[#allocation4 + $0x20] sm:$0xff]
        %v878 = vld [vmem:[#allocation4 + $0x28] sm:$0xff]
        %v879 = vld [vmem:[#allocation4 + $0x30] sm:$0xff]
        %v880 = vld [vmem:[#allocation4 + $0x38] sm:$0xff]
        %v881 = vld [vmem:[#allocation4 + $0x40] sm:$0xff]
        %v882 = vld [vmem:[#allocation4 + $0x48] sm:$0xff]
        %v883 = vld [vmem:[#allocation4 + $0x50] sm:$0xff]
        %v884 = vld [vmem:[#allocation4 + $0x58] sm:$0xff]
        %v885 = vld [vmem:[#allocation4 + $0x60] sm:$0xff]
        %v886 = vld [vmem:[#allocation4 + $0x68] sm:$0xff]
        %v887 = vld [vmem:[#allocation4 + $0x70] sm:$0xff]
        %v888 = vld [vmem:[#allocation4 + $0x78] sm:$0xff]
        %889 = vmatprep.subr.mxu0 0.0
        %890 = vmatpush1.msra.mxu0 %v873
        %891 = vmatprep.subr.mxu0 0.0
        %892 = vmatpush1.msra.mxu0 %v874
        %893 = vmatprep.subr.mxu0 0.0
        %894 = vmatpush1.msra.mxu0 %v875
        %895 = vmatprep.subr.mxu0 0.0
        %896 = vmatpush1.msra.mxu0 %v876
        %897 = vmatprep.subr.mxu0 0.0
        %898 = vmatpush1.msra.mxu0 %v877
        %899 = vmatprep.subr.mxu0 0.0
        %900 = vmatpush1.msra.mxu0 %v878
        %901 = vmatprep.subr.mxu0 0.0
        %902 = vmatpush1.msra.mxu0 %v879
        %903 = vmatprep.subr.mxu0 0.0
        %904 = vmatpush1.msra.mxu0 %v880
        %905 = vmatprep.subr.mxu0 0.0
        %906 = vmatpush1.msra.mxu0 %v881
        %907 = vmatprep.subr.mxu0 0.0
        %908 = vmatpush1.msra.mxu0 %v882
        %909 = vmatprep.subr.mxu0 0.0
        %910 = vmatpush1.msra.mxu0 %v883
        %911 = vmatprep.subr.mxu0 0.0
        %912 = vmatpush1.msra.mxu0 %v884
        %913 = vmatprep.subr.mxu0 0.0
        %914 = vmatpush1.msra.mxu0 %v885
        %915 = vmatprep.subr.mxu0 0.0
        %916 = vmatpush1.msra.mxu0 %v886
        %917 = vmatprep.subr.mxu0 0.0
        %918 = vmatpush1.msra.mxu0 %v887
        %919 = vmatprep.subr.mxu0 0.0
        %920 = vmatpush1.msra.mxu0 %v888
        %921 = vmatprep.subr.mxu0 0.0
        %922 = vmatpush1.msra.mxu0 0.0
        %923 = vmatprep.subr.mxu0 0.0
        %924 = vmatpush1.msra.mxu0 0.0
        %925 = vmatprep.subr.mxu0 0.0
        %926 = vmatpush1.msra.mxu0 0.0
        %927 = vmatprep.subr.mxu0 0.0
        %928 = vmatpush1.msra.mxu0 0.0
        %929 = vmatprep.subr.mxu0 0.0
        %930 = vmatpush1.msra.mxu0 0.0
        %931 = vmatprep.subr.mxu0 0.0
        %932 = vmatpush1.msra.mxu0 0.0
        %933 = vmatprep.subr.mxu0 0.0
        %934 = vmatpush1.msra.mxu0 0.0
        %935 = vmatprep.subr.mxu0 0.0
        %936 = vmatpush1.msra.mxu0 0.0
        %937 = vmatprep.subr.mxu0 0.0
        %938 = vmatpush1.msra.mxu0 0.0
        %939 = vmatprep.subr.mxu0 0.0
        %940 = vmatpush1.msra.mxu0 0.0
        %941 = vmatprep.subr.mxu0 0.0
        %942 = vmatpush1.msra.mxu0 0.0
        %943 = vmatprep.subr.mxu0 0.0
        %944 = vmatpush1.msra.mxu0 0.0
        %945 = vmatprep.subr.mxu0 0.0
        %946 = vmatpush1.msra.mxu0 0.0
        %947 = vmatprep.subr.mxu0 0.0
        %948 = vmatpush1.msra.mxu0 0.0
        %949 = vmatprep.subr.mxu0 0.0
        %950 = vmatpush1.msra.mxu0 0.0
        %951 = vmatprep.subr.mxu0 0.0
        %952 = vmatpush1.msra.mxu0 0.0
        %953 = vmatprep.mubr.f32.mxu0 0.0
        %954 = vmatmul.mubr.f32.gmra.mrb[0].mxu0 %v841
        %v955 = vpop.f32.mrb[0].mxu0
        %v956 = vadd.f32 0.0, %v955
        %v957 = vpop.f32.mrb[0].mxu0
        %958 = vmatprep.mubr.f32.mxu0 0.0
        %959 = vmatmul.mubr.f32.gmra.mrb[0].mxu0 %v842
        %v960 = vpop.f32.mrb[0].mxu0
        %v961 = vadd.f32 0.0, %v960
        %v962 = vpop.f32.mrb[0].mxu0
        %963 = vmatprep.mubr.f32.mxu0 0.0
        %964 = vmatmul.mubr.f32.gmra.mrb[0].mxu0 %v843
        %v965 = vpop.f32.mrb[0].mxu0
        %v966 = vadd.f32 0.0, %v965
        %v967 = vpop.f32.mrb[0].mxu0
        %968 = vmatprep.mubr.f32.mxu0 0.0
        %969 = vmatmul.mubr.f32.gmra.mrb[0].mxu0 %v844
        %v970 = vpop.f32.mrb[0].mxu0
        %v971 = vadd.f32 0.0, %v970
        %v972 = vpop.f32.mrb[0].mxu0
        %973 = vmatprep.mubr.f32.mxu0 0.0
        %974 = vmatmul.mubr.f32.gmra.mrb[0].mxu0 %v845
        %v975 = vpop.f32.mrb[0].mxu0
        %v976 = vadd.f32 0.0, %v975
        %v977 = vpop.f32.mrb[0].mxu0
        %978 = vmatprep.mubr.f32.mxu0 0.0
        %979 = vmatmul.mubr.f32.gmra.mrb[0].mxu0 %v846
        %v980 = vpop.f32.mrb[0].mxu0
        %v981 = vadd.f32 0.0, %v980
        %v982 = vpop.f32.mrb[0].mxu0
        %983 = vmatprep.mubr.f32.mxu0 0.0
        %984 = vmatmul.mubr.f32.gmra.mrb[0].mxu0 %v847
        %v985 = vpop.f32.mrb[0].mxu0
        %v986 = vadd.f32 0.0, %v985
        %v987 = vpop.f32.mrb[0].mxu0
        %988 = vmatprep.mubr.f32.mxu0 0.0
        %989 = vmatmul.mubr.f32.gmra.mrb[0].mxu0 %v848
        %v990 = vpop.f32.mrb[0].mxu0
        %v991 = vadd.f32 0.0, %v990
        %v992 = vpop.f32.mrb[0].mxu0
        %993 = vmatprep.mubr.f32.mxu0 0.0
        %994 = vmatmul.mubr.f32.gmra.mrb[0].mxu0 %v849
        %v995 = vpop.f32.mrb[0].mxu0
        %v996 = vadd.f32 0.0, %v995
        %v997 = vpop.f32.mrb[0].mxu0
        %998 = vmatprep.mubr.f32.mxu0 0.0
        %999 = vmatmul.mubr.f32.gmra.mrb[0].mxu0 %v850
        %v1000 = vpop.f32.mrb[0].mxu0
        %v1001 = vadd.f32 0.0, %v1000
        %v1002 = vpop.f32.mrb[0].mxu0
        %1003 = vmatprep.mubr.f32.mxu0 0.0
        %1004 = vmatmul.mubr.f32.gmra.mrb[0].mxu0 %v851
        %v1005 = vpop.f32.mrb[0].mxu0
        %v1006 = vadd.f32 0.0, %v1005
        %v1007 = vpop.f32.mrb[0].mxu0
        %1008 = vmatprep.mubr.f32.mxu0 0.0
        %1009 = vmatmul.mubr.f32.gmra.mrb[0].mxu0 %v852
        %v1010 = vpop.f32.mrb[0].mxu0
        %v1011 = vadd.f32 0.0, %v1010
        %v1012 = vpop.f32.mrb[0].mxu0
        %1013 = vmatprep.mubr.f32.mxu0 0.0
        %1014 = vmatmul.mubr.f32.gmra.mrb[0].mxu0 %v853
        %v1015 = vpop.f32.mrb[0].mxu0
        %v1016 = vadd.f32 0.0, %v1015
        %v1017 = vpop.f32.mrb[0].mxu0
        %1018 = vmatprep.mubr.f32.mxu0 0.0
        %1019 = vmatmul.mubr.f32.gmra.mrb[0].mxu0 %v854
        %v1020 = vpop.f32.mrb[0].mxu0
        %v1021 = vadd.f32 0.0, %v1020
        %v1022 = vpop.f32.mrb[0].mxu0
        %1023 = vmatprep.mubr.f32.mxu0 0.0
        %1024 = vmatmul.mubr.f32.gmra.mrb[0].mxu0 %v855
        %v1025 = vpop.f32.mrb[0].mxu0
        %v1026 = vadd.f32 0.0, %v1025
        %v1027 = vpop.f32.mrb[0].mxu0
        %1028 = vmatprep.mubr.f32.mxu0 0.0
        %1029 = vmatmul.mubr.f32.gmra.mrb[0].mxu0 %v856
        %v1030 = vpop.f32.mrb[0].mxu0
        %v1031 = vadd.f32 0.0, %v1030
        %v1032 = vpop.f32.mrb[0].mxu0
        %1033 = vmatprep.mubr.f32.mxu0 0.0
        %1034 = vmatmul.mubr.f32.gmra.mrb[0].mxu0 %v857
        %v1035 = vpop.f32.mrb[0].mxu0
        %v1036 = vadd.f32 0.0, %v1035
        %v1037 = vpop.f32.mrb[0].mxu0
        %1038 = vmatprep.mubr.f32.mxu0 0.0
        %1039 = vmatmul.mubr.f32.gmra.mrb[0].mxu0 %v858
        %v1040 = vpop.f32.mrb[0].mxu0
        %v1041 = vadd.f32 0.0, %v1040
        %v1042 = vpop.f32.mrb[0].mxu0
        %1043 = vmatprep.mubr.f32.mxu0 0.0
        %1044 = vmatmul.mubr.f32.gmra.mrb[0].mxu0 %v859
        %v1045 = vpop.f32.mrb[0].mxu0
        %v1046 = vadd.f32 0.0, %v1045
        %v1047 = vpop.f32.mrb[0].mxu0
        %1048 = vmatprep.mubr.f32.mxu0 0.0
        %1049 = vmatmul.mubr.f32.gmra.mrb[0].mxu0 %v860
        %v1050 = vpop.f32.mrb[0].mxu0
        %v1051 = vadd.f32 0.0, %v1050
        %v1052 = vpop.f32.mrb[0].mxu0
        %1053 = vmatprep.mubr.f32.mxu0 0.0
        %1054 = vmatmul.mubr.f32.gmra.mrb[0].mxu0 %v861
        %v1055 = vpop.f32.mrb[0].mxu0
        %v1056 = vadd.f32 0.0, %v1055
        %v1057 = vpop.f32.mrb[0].mxu0
        %1058 = vmatprep.mubr.f32.mxu0 0.0
        %1059 = vmatmul.mubr.f32.gmra.mrb[0].mxu0 %v862
        %v1060 = vpop.f32.mrb[0].mxu0
        %v1061 = vadd.f32 0.0, %v1060
        %v1062 = vpop.f32.mrb[0].mxu0
        %1063 = vmatprep.mubr.f32.mxu0 0.0
        %1064 = vmatmul.mubr.f32.gmra.mrb[0].mxu0 %v863
        %v1065 = vpop.f32.mrb[0].mxu0
        %v1066 = vadd.f32 0.0, %v1065
        %v1067 = vpop.f32.mrb[0].mxu0
        %1068 = vmatprep.mubr.f32.mxu0 0.0
        %1069 = vmatmul.mubr.f32.gmra.mrb[0].mxu0 %v864
        %v1070 = vpop.f32.mrb[0].mxu0
        %v1071 = vadd.f32 0.0, %v1070
        %v1072 = vpop.f32.mrb[0].mxu0
        %1073 = vmatprep.mubr.f32.mxu0 0.0
        %1074 = vmatmul.mubr.f32.gmra.mrb[0].mxu0 %v865
        %v1075 = vpop.f32.mrb[0].mxu0
        %v1076 = vadd.f32 0.0, %v1075
        %v1077 = vpop.f32.mrb[0].mxu0
        %1078 = vmatprep.mubr.f32.mxu0 0.0
        %1079 = vmatmul.mubr.f32.gmra.mrb[0].mxu0 %v866
        %v1080 = vpop.f32.mrb[0].mxu0
        %v1081 = vadd.f32 0.0, %v1080
        %v1082 = vpop.f32.mrb[0].mxu0
        %1083 = vmatprep.mubr.f32.mxu0 0.0
        %1084 = vmatmul.mubr.f32.gmra.mrb[0].mxu0 %v867
        %v1085 = vpop.f32.mrb[0].mxu0
        %v1086 = vadd.f32 0.0, %v1085
        %v1087 = vpop.f32.mrb[0].mxu0
        %1088 = vmatprep.mubr.f32.mxu0 0.0
        %1089 = vmatmul.mubr.f32.gmra.mrb[0].mxu0 %v868
        %v1090 = vpop.f32.mrb[0].mxu0
        %v1091 = vadd.f32 0.0, %v1090
        %v1092 = vpop.f32.mrb[0].mxu0
        %1093 = vmatprep.mubr.f32.mxu0 0.0
        %1094 = vmatmul.mubr.f32.gmra.mrb[0].mxu0 %v869
        %v1095 = vpop.f32.mrb[0].mxu0
        %v1096 = vadd.f32 0.0, %v1095
        %v1097 = vpop.f32.mrb[0].mxu0
        %1098 = vmatprep.mubr.f32.mxu0 0.0
        %1099 = vmatmul.mubr.f32.gmra.mrb[0].mxu0 %v870
        %v1100 = vpop.f32.mrb[0].mxu0
        %v1101 = vadd.f32 0.0, %v1100
        %v1102 = vpop.f32.mrb[0].mxu0
        %1103 = vmatprep.mubr.f32.mxu0 0.0
        %1104 = vmatmul.mubr.f32.gmra.mrb[0].mxu0 %v871
        %v1105 = vpop.f32.mrb[0].mxu0
        %v1106 = vadd.f32 0.0, %v1105
        %v1107 = vpop.f32.mrb[0].mxu0
        %1108 = vmatprep.mubr.f32.mxu0 0.0
        %1109 = vmatmul.mubr.f32.gmra.mrb[0].mxu0 %v872
        %v1110 = vpop.f32.mrb[0].mxu0
        %v1111 = vadd.f32 0.0, %v1110
        %v1112 = vpop.f32.mrb[0].mxu0
        %1113 = vdwg.mxu0
        %1114 = vst [vmem:[#allocation3] sm:$0xff] %v956
        %1115 = vst [vmem:[#allocation3 + $0x8] sm:$0xff] %v961
        %1116 = vst [vmem:[#allocation3 + $0x10] sm:$0xff] %v966
        %1117 = vst [vmem:[#allocation3 + $0x18] sm:$0xff] %v971
        %1118 = vst [vmem:[#allocation3 + $0x20] sm:$0xff] %v976
        %1119 = vst [vmem:[#allocation3 + $0x28] sm:$0xff] %v981
        %1120 = vst [vmem:[#allocation3 + $0x30] sm:$0xff] %v986
        %1121 = vst [vmem:[#allocation3 + $0x38] sm:$0xff] %v991
        %1122 = vst [vmem:[#allocation3 + $0x40] sm:$0xff] %v996
        %1123 = vst [vmem:[#allocation3 + $0x48] sm:$0xff] %v1001
        %1124 = vst [vmem:[#allocation3 + $0x50] sm:$0xff] %v1006
        %1125 = vst [vmem:[#allocation3 + $0x58] sm:$0xff] %v1011
        %1126 = vst [vmem:[#allocation3 + $0x60] sm:$0xff] %v1016
        %1127 = vst [vmem:[#allocation3 + $0x68] sm:$0xff] %v1021
        %1128 = vst [vmem:[#allocation3 + $0x70] sm:$0xff] %v1026
        %1129 = vst [vmem:[#allocation3 + $0x78] sm:$0xff] %v1031
        %1130 = vst [vmem:[#allocation3 + $0x80] sm:$0xff] %v1036
        %1131 = vst [vmem:[#allocation3 + $0x88] sm:$0xff] %v1041
        %1132 = vst [vmem:[#allocation3 + $0x90] sm:$0xff] %v1046
        %1133 = vst [vmem:[#allocation3 + $0x98] sm:$0xff] %v1051
        %1134 = vst [vmem:[#allocation3 + $0xa0] sm:$0xff] %v1056
        %1135 = vst [vmem:[#allocation3 + $0xa8] sm:$0xff] %v1061
        %1136 = vst [vmem:[#allocation3 + $0xb0] sm:$0xff] %v1066
        %1137 = vst [vmem:[#allocation3 + $0xb8] sm:$0xff] %v1071
        %1138 = vst [vmem:[#allocation3 + $0xc0] sm:$0xff] %v1076
        %1139 = vst [vmem:[#allocation3 + $0xc8] sm:$0xff] %v1081
        %1140 = vst [vmem:[#allocation3 + $0xd0] sm:$0xff] %v1086
        %1141 = vst [vmem:[#allocation3 + $0xd8] sm:$0xff] %v1091
        %1142 = vst [vmem:[#allocation3 + $0xe0] sm:$0xff] %v1096
        %1143 = vst [vmem:[#allocation3 + $0xe8] sm:$0xff] %v1101
        %1144 = vst [vmem:[#allocation3 + $0xf0] sm:$0xff] %v1106
        %1145 = vst [vmem:[#allocation3 + $0xf8] sm:$0xff] %v1111
        %v1146 = vld [vmem:[#allocation3] sm:$0xff]
        %v1147 = vld [vmem:[#allocation3 + $0x8] sm:$0xff]
        %v1148 = vld [vmem:[#allocation3 + $0x10] sm:$0xff]
        %v1149 = vld [vmem:[#allocation3 + $0x18] sm:$0xff]
        %v1150 = vld [vmem:[#allocation3 + $0x20] sm:$0xff]
        %v1151 = vld [vmem:[#allocation3 + $0x28] sm:$0xff]
        %v1152 = vld [vmem:[#allocation3 + $0x30] sm:$0xff]
        %v1153 = vld [vmem:[#allocation3 + $0x38] sm:$0xff]
        %v1154 = vld [vmem:[#allocation3 + $0x40] sm:$0xff]
        %v1155 = vld [vmem:[#allocation3 + $0x48] sm:$0xff]
        %v1156 = vld [vmem:[#allocation3 + $0x50] sm:$0xff]
        %v1157 = vld [vmem:[#allocation3 + $0x58] sm:$0xff]
        %v1158 = vld [vmem:[#allocation3 + $0x60] sm:$0xff]
        %v1159 = vld [vmem:[#allocation3 + $0x68] sm:$0xff]
        %v1160 = vld [vmem:[#allocation3 + $0x70] sm:$0xff]
        %v1161 = vld [vmem:[#allocation3 + $0x78] sm:$0xff]
        %v1162 = vld [vmem:[#allocation3 + $0x80] sm:$0xff]
        %v1163 = vld [vmem:[#allocation3 + $0x88] sm:$0xff]
        %v1164 = vld [vmem:[#allocation3 + $0x90] sm:$0xff]
        %v1165 = vld [vmem:[#allocation3 + $0x98] sm:$0xff]
        %v1166 = vld [vmem:[#allocation3 + $0xa0] sm:$0xff]
        %v1167 = vld [vmem:[#allocation3 + $0xa8] sm:$0xff]
        %v1168 = vld [vmem:[#allocation3 + $0xb0] sm:$0xff]
        %v1169 = vld [vmem:[#allocation3 + $0xb8] sm:$0xff]
        %v1170 = vld [vmem:[#allocation3 + $0xc0] sm:$0xff]
        %v1171 = vld [vmem:[#allocation3 + $0xc8] sm:$0xff]
        %v1172 = vld [vmem:[#allocation3 + $0xd0] sm:$0xff]
        %v1173 = vld [vmem:[#allocation3 + $0xd8] sm:$0xff]
        %v1174 = vld [vmem:[#allocation3 + $0xe0] sm:$0xff]
        %v1175 = vld [vmem:[#allocation3 + $0xe8] sm:$0xff]
        %v1176 = vld [vmem:[#allocation3 + $0xf0] sm:$0xff]
        %v1177 = vld [vmem:[#allocation3 + $0xf8] sm:$0xff]
        %v1178 = vld [vmem:[#allocation2 + $0x1] sm:$0xff]
        %v1179 = vld [vmem:[#allocation2 + $0x9] sm:$0xff]
        %v1180 = vld [vmem:[#allocation2 + $0x19] sm:$0xff]
        %v1181 = vld [vmem:[#allocation2 + $0x21] sm:$0xff]
        %v1182 = vld [vmem:[#allocation2 + $0x31] sm:$0xff]
        %v1183 = vld [vmem:[#allocation2 + $0x39] sm:$0xff]
        %v1184 = vld [vmem:[#allocation2 + $0x49] sm:$0xff]
        %v1185 = vld [vmem:[#allocation2 + $0x51] sm:$0xff]
        %v1186 = vld [vmem:[#allocation2 + $0x61] sm:$0xff]
        %v1187 = vld [vmem:[#allocation2 + $0x69] sm:$0xff]
        %v1188 = vld [vmem:[#allocation2 + $0x79] sm:$0xff]
        %v1189 = vld [vmem:[#allocation2 + $0x81] sm:$0xff]
        %v1190 = vld [vmem:[#allocation2 + $0x91] sm:$0xff]
        %v1191 = vld [vmem:[#allocation2 + $0x99] sm:$0xff]
        %v1192 = vld [vmem:[#allocation2 + $0xa9] sm:$0xff]
        %v1193 = vld [vmem:[#allocation2 + $0xb1] sm:$0xff]
        %v1194 = vld [vmem:[#allocation2 + $0xc1] sm:$0xff]
        %v1195 = vld [vmem:[#allocation2 + $0xc9] sm:$0xff]
        %v1196 = vld [vmem:[#allocation2 + $0xd9] sm:$0xff]
        %v1197 = vld [vmem:[#allocation2 + $0xe1] sm:$0xff]
        %v1198 = vld [vmem:[#allocation2 + $0xf1] sm:$0xff]
        %v1199 = vld [vmem:[#allocation2 + $0xf9] sm:$0xff]
        %v1200 = vld [vmem:[#allocation2 + $0x109] sm:$0xff]
        %v1201 = vld [vmem:[#allocation2 + $0x111] sm:$0xff]
        %v1202 = vld [vmem:[#allocation2 + $0x121] sm:$0xff]
        %v1203 = vld [vmem:[#allocation2 + $0x129] sm:$0xff]
        %v1204 = vld [vmem:[#allocation2 + $0x139] sm:$0xff]
        %v1205 = vld [vmem:[#allocation2 + $0x141] sm:$0xff]
        %v1206 = vld [vmem:[#allocation2 + $0x151] sm:$0xff]
        %v1207 = vld [vmem:[#allocation2 + $0x159] sm:$0xff]
        %v1208 = vld [vmem:[#allocation2 + $0x169] sm:$0xff]
        %v1209 = vld [vmem:[#allocation2 + $0x171] sm:$0xff]
        %s1210 = scalar_lea.vmem [#allocation4], 128
        %v1211 = vld [vmem:[%s1210] sm:$0xff]
        %v1212 = vld [vmem:[%s1210 + $0x8] sm:$0xff]
        %v1213 = vld [vmem:[%s1210 + $0x10] sm:$0xff]
        %v1214 = vld [vmem:[%s1210 + $0x18] sm:$0xff]
        %v1215 = vld [vmem:[%s1210 + $0x20] sm:$0xff]
        %v1216 = vld [vmem:[%s1210 + $0x28] sm:$0xff]
        %v1217 = vld [vmem:[%s1210 + $0x30] sm:$0xff]
        %v1218 = vld [vmem:[%s1210 + $0x38] sm:$0xff]
        %v1219 = vld [vmem:[%s1210 + $0x40] sm:$0xff]
        %v1220 = vld [vmem:[%s1210 + $0x48] sm:$0xff]
        %v1221 = vld [vmem:[%s1210 + $0x50] sm:$0xff]
        %v1222 = vld [vmem:[%s1210 + $0x58] sm:$0xff]
        %v1223 = vld [vmem:[%s1210 + $0x60] sm:$0xff]
        %v1224 = vld [vmem:[%s1210 + $0x68] sm:$0xff]
        %v1225 = vld [vmem:[%s1210 + $0x70] sm:$0xff]
        %v1226 = vld [vmem:[%s1210 + $0x78] sm:$0xff]
        %1227 = vmatprep.subr.mxu0 0.0
        %1228 = vmatpush1.msra.mxu0 %v1211
        %1229 = vmatprep.subr.mxu0 0.0
        %1230 = vmatpush1.msra.mxu0 %v1212
        %1231 = vmatprep.subr.mxu0 0.0
        %1232 = vmatpush1.msra.mxu0 %v1213
        %1233 = vmatprep.subr.mxu0 0.0
        %1234 = vmatpush1.msra.mxu0 %v1214
        %1235 = vmatprep.subr.mxu0 0.0
        %1236 = vmatpush1.msra.mxu0 %v1215
        %1237 = vmatprep.subr.mxu0 0.0
        %1238 = vmatpush1.msra.mxu0 %v1216
        %1239 = vmatprep.subr.mxu0 0.0
        %1240 = vmatpush1.msra.mxu0 %v1217
        %1241 = vmatprep.subr.mxu0 0.0
        %1242 = vmatpush1.msra.mxu0 %v1218
        %1243 = vmatprep.subr.mxu0 0.0
        %1244 = vmatpush1.msra.mxu0 %v1219
        %1245 = vmatprep.subr.mxu0 0.0
        %1246 = vmatpush1.msra.mxu0 %v1220
        %1247 = vmatprep.subr.mxu0 0.0
        %1248 = vmatpush1.msra.mxu0 %v1221
        %1249 = vmatprep.subr.mxu0 0.0
        %1250 = vmatpush1.msra.mxu0 %v1222
        %1251 = vmatprep.subr.mxu0 0.0
        %1252 = vmatpush1.msra.mxu0 %v1223
        %1253 = vmatprep.subr.mxu0 0.0
        %1254 = vmatpush1.msra.mxu0 %v1224
        %1255 = vmatprep.subr.mxu0 0.0
        %1256 = vmatpush1.msra.mxu0 %v1225
        %1257 = vmatprep.subr.mxu0 0.0
        %1258 = vmatpush1.msra.mxu0 %v1226
        %1259 = vmatprep.subr.mxu0 0.0
        %1260 = vmatpush1.msra.mxu0 0.0
        %1261 = vmatprep.subr.mxu0 0.0
        %1262 = vmatpush1.msra.mxu0 0.0
        %1263 = vmatprep.subr.mxu0 0.0
        %1264 = vmatpush1.msra.mxu0 0.0
        %1265 = vmatprep.subr.mxu0 0.0
        %1266 = vmatpush1.msra.mxu0 0.0
        %1267 = vmatprep.subr.mxu0 0.0
        %1268 = vmatpush1.msra.mxu0 0.0
        %1269 = vmatprep.subr.mxu0 0.0
        %1270 = vmatpush1.msra.mxu0 0.0
        %1271 = vmatprep.subr.mxu0 0.0
        %1272 = vmatpush1.msra.mxu0 0.0
        %1273 = vmatprep.subr.mxu0 0.0
        %1274 = vmatpush1.msra.mxu0 0.0
        %1275 = vmatprep.subr.mxu0 0.0
        %1276 = vmatpush1.msra.mxu0 0.0
        %1277 = vmatprep.subr.mxu0 0.0
        %1278 = vmatpush1.msra.mxu0 0.0
        %1279 = vmatprep.subr.mxu0 0.0
        %1280 = vmatpush1.msra.mxu0 0.0
        %1281 = vmatprep.subr.mxu0 0.0
        %1282 = vmatpush1.msra.mxu0 0.0
        %1283 = vmatprep.subr.mxu0 0.0
        %1284 = vmatpush1.msra.mxu0 0.0
        %1285 = vmatprep.subr.mxu0 0.0
        %1286 = vmatpush1.msra.mxu0 0.0
        %1287 = vmatprep.subr.mxu0 0.0
        %1288 = vmatpush1.msra.mxu0 0.0
        %1289 = vmatprep.subr.mxu0 0.0
        %1290 = vmatpush1.msra.mxu0 0.0
        %1291 = vmatprep.mubr.f32.mxu0 0.0
        %1292 = vmatmul.mubr.f32.gmra.mrb[0].mxu0 %v1178
        %v1293 = vpop.f32.mrb[0].mxu0
        %v1294 = vadd.f32 0.0, %v1293
        %v1295 = vpop.f32.mrb[0].mxu0
        %1296 = vmatprep.mubr.f32.mxu0 0.0
        %1297 = vmatmul.mubr.f32.gmra.mrb[0].mxu0 %v1179
        %v1298 = vpop.f32.mrb[0].mxu0
        %v1299 = vadd.f32 0.0, %v1298
        %v1300 = vpop.f32.mrb[0].mxu0
        %1301 = vmatprep.mubr.f32.mxu0 0.0
        %1302 = vmatmul.mubr.f32.gmra.mrb[0].mxu0 %v1180
        %v1303 = vpop.f32.mrb[0].mxu0
        %v1304 = vadd.f32 0.0, %v1303
        %v1305 = vpop.f32.mrb[0].mxu0
        %1306 = vmatprep.mubr.f32.mxu0 0.0
        %1307 = vmatmul.mubr.f32.gmra.mrb[0].mxu0 %v1181
        %v1308 = vpop.f32.mrb[0].mxu0
        %v1309 = vadd.f32 0.0, %v1308
        %v1310 = vpop.f32.mrb[0].mxu0
        %1311 = vmatprep.mubr.f32.mxu0 0.0
        %1312 = vmatmul.mubr.f32.gmra.mrb[0].mxu0 %v1182
        %v1313 = vpop.f32.mrb[0].mxu0
        %v1314 = vadd.f32 0.0, %v1313
        %v1315 = vpop.f32.mrb[0].mxu0
        %1316 = vmatprep.mubr.f32.mxu0 0.0
        %1317 = vmatmul.mubr.f32.gmra.mrb[0].mxu0 %v1183
        %v1318 = vpop.f32.mrb[0].mxu0
        %v1319 = vadd.f32 0.0, %v1318
        %v1320 = vpop.f32.mrb[0].mxu0
        %1321 = vmatprep.mubr.f32.mxu0 0.0
        %1322 = vmatmul.mubr.f32.gmra.mrb[0].mxu0 %v1184
        %v1323 = vpop.f32.mrb[0].mxu0
        %v1324 = vadd.f32 0.0, %v1323
        %v1325 = vpop.f32.mrb[0].mxu0
        %1326 = vmatprep.mubr.f32.mxu0 0.0
        %1327 = vmatmul.mubr.f32.gmra.mrb[0].mxu0 %v1185
        %v1328 = vpop.f32.mrb[0].mxu0
        %v1329 = vadd.f32 0.0, %v1328
        %v1330 = vpop.f32.mrb[0].mxu0
        %1331 = vmatprep.mubr.f32.mxu0 0.0
        %1332 = vmatmul.mubr.f32.gmra.mrb[0].mxu0 %v1186
        %v1333 = vpop.f32.mrb[0].mxu0
        %v1334 = vadd.f32 0.0, %v1333
        %v1335 = vpop.f32.mrb[0].mxu0
        %1336 = vmatprep.mubr.f32.mxu0 0.0
        %1337 = vmatmul.mubr.f32.gmra.mrb[0].mxu0 %v1187
        %v1338 = vpop.f32.mrb[0].mxu0
        %v1339 = vadd.f32 0.0, %v1338
        %v1340 = vpop.f32.mrb[0].mxu0
        %1341 = vmatprep.mubr.f32.mxu0 0.0
        %1342 = vmatmul.mubr.f32.gmra.mrb[0].mxu0 %v1188
        %v1343 = vpop.f32.mrb[0].mxu0
        %v1344 = vadd.f32 0.0, %v1343
        %v1345 = vpop.f32.mrb[0].mxu0
        %1346 = vmatprep.mubr.f32.mxu0 0.0
        %1347 = vmatmul.mubr.f32.gmra.mrb[0].mxu0 %v1189
        %v1348 = vpop.f32.mrb[0].mxu0
        %v1349 = vadd.f32 0.0, %v1348
        %v1350 = vpop.f32.mrb[0].mxu0
        %1351 = vmatprep.mubr.f32.mxu0 0.0
        %1352 = vmatmul.mubr.f32.gmra.mrb[0].mxu0 %v1190
        %v1353 = vpop.f32.mrb[0].mxu0
        %v1354 = vadd.f32 0.0, %v1353
        %v1355 = vpop.f32.mrb[0].mxu0
        %1356 = vmatprep.mubr.f32.mxu0 0.0
        %1357 = vmatmul.mubr.f32.gmra.mrb[0].mxu0 %v1191
        %v1358 = vpop.f32.mrb[0].mxu0
        %v1359 = vadd.f32 0.0, %v1358
        %v1360 = vpop.f32.mrb[0].mxu0
        %1361 = vmatprep.mubr.f32.mxu0 0.0
        %1362 = vmatmul.mubr.f32.gmra.mrb[0].mxu0 %v1192
        %v1363 = vpop.f32.mrb[0].mxu0
        %v1364 = vadd.f32 0.0, %v1363
        %v1365 = vpop.f32.mrb[0].mxu0
        %1366 = vmatprep.mubr.f32.mxu0 0.0
        %1367 = vmatmul.mubr.f32.gmra.mrb[0].mxu0 %v1193
        %v1368 = vpop.f32.mrb[0].mxu0
        %v1369 = vadd.f32 0.0, %v1368
        %v1370 = vpop.f32.mrb[0].mxu0
        %1371 = vmatprep.mubr.f32.mxu0 0.0
        %1372 = vmatmul.mubr.f32.gmra.mrb[0].mxu0 %v1194
        %v1373 = vpop.f32.mrb[0].mxu0
        %v1374 = vadd.f32 0.0, %v1373
        %v1375 = vpop.f32.mrb[0].mxu0
        %1376 = vmatprep.mubr.f32.mxu0 0.0
        %1377 = vmatmul.mubr.f32.gmra.mrb[0].mxu0 %v1195
        %v1378 = vpop.f32.mrb[0].mxu0
        %v1379 = vadd.f32 0.0, %v1378
        %v1380 = vpop.f32.mrb[0].mxu0
        %1381 = vmatprep.mubr.f32.mxu0 0.0
        %1382 = vmatmul.mubr.f32.gmra.mrb[0].mxu0 %v1196
        %v1383 = vpop.f32.mrb[0].mxu0
        %v1384 = vadd.f32 0.0, %v1383
        %v1385 = vpop.f32.mrb[0].mxu0
        %1386 = vmatprep.mubr.f32.mxu0 0.0
        %1387 = vmatmul.mubr.f32.gmra.mrb[0].mxu0 %v1197
        %v1388 = vpop.f32.mrb[0].mxu0
        %v1389 = vadd.f32 0.0, %v1388
        %v1390 = vpop.f32.mrb[0].mxu0
        %1391 = vmatprep.mubr.f32.mxu0 0.0
        %1392 = vmatmul.mubr.f32.gmra.mrb[0].mxu0 %v1198
        %v1393 = vpop.f32.mrb[0].mxu0
        %v1394 = vadd.f32 0.0, %v1393
        %v1395 = vpop.f32.mrb[0].mxu0
        %1396 = vmatprep.mubr.f32.mxu0 0.0
        %1397 = vmatmul.mubr.f32.gmra.mrb[0].mxu0 %v1199
        %v1398 = vpop.f32.mrb[0].mxu0
        %v1399 = vadd.f32 0.0, %v1398
        %v1400 = vpop.f32.mrb[0].mxu0
        %1401 = vmatprep.mubr.f32.mxu0 0.0
        %1402 = vmatmul.mubr.f32.gmra.mrb[0].mxu0 %v1200
        %v1403 = vpop.f32.mrb[0].mxu0
        %v1404 = vadd.f32 0.0, %v1403
        %v1405 = vpop.f32.mrb[0].mxu0
        %1406 = vmatprep.mubr.f32.mxu0 0.0
        %1407 = vmatmul.mubr.f32.gmra.mrb[0].mxu0 %v1201
        %v1408 = vpop.f32.mrb[0].mxu0
        %v1409 = vadd.f32 0.0, %v1408
        %v1410 = vpop.f32.mrb[0].mxu0
        %1411 = vmatprep.mubr.f32.mxu0 0.0
        %1412 = vmatmul.mubr.f32.gmra.mrb[0].mxu0 %v1202
        %v1413 = vpop.f32.mrb[0].mxu0
        %v1414 = vadd.f32 0.0, %v1413
        %v1415 = vpop.f32.mrb[0].mxu0
        %1416 = vmatprep.mubr.f32.mxu0 0.0
        %1417 = vmatmul.mubr.f32.gmra.mrb[0].mxu0 %v1203
        %v1418 = vpop.f32.mrb[0].mxu0
        %v1419 = vadd.f32 0.0, %v1418
        %v1420 = vpop.f32.mrb[0].mxu0
        %1421 = vmatprep.mubr.f32.mxu0 0.0
        %1422 = vmatmul.mubr.f32.gmra.mrb[0].mxu0 %v1204
        %v1423 = vpop.f32.mrb[0].mxu0
        %v1424 = vadd.f32 0.0, %v1423
        %v1425 = vpop.f32.mrb[0].mxu0
        %1426 = vmatprep.mubr.f32.mxu0 0.0
        %1427 = vmatmul.mubr.f32.gmra.mrb[0].mxu0 %v1205
        %v1428 = vpop.f32.mrb[0].mxu0
        %v1429 = vadd.f32 0.0, %v1428
        %v1430 = vpop.f32.mrb[0].mxu0
        %1431 = vmatprep.mubr.f32.mxu0 0.0
        %1432 = vmatmul.mubr.f32.gmra.mrb[0].mxu0 %v1206
        %v1433 = vpop.f32.mrb[0].mxu0
        %v1434 = vadd.f32 0.0, %v1433
        %v1435 = vpop.f32.mrb[0].mxu0
        %1436 = vmatprep.mubr.f32.mxu0 0.0
        %1437 = vmatmul.mubr.f32.gmra.mrb[0].mxu0 %v1207
        %v1438 = vpop.f32.mrb[0].mxu0
        %v1439 = vadd.f32 0.0, %v1438
        %v1440 = vpop.f32.mrb[0].mxu0
        %1441 = vmatprep.mubr.f32.mxu0 0.0
        %1442 = vmatmul.mubr.f32.gmra.mrb[0].mxu0 %v1208
        %v1443 = vpop.f32.mrb[0].mxu0
        %v1444 = vadd.f32 0.0, %v1443
        %v1445 = vpop.f32.mrb[0].mxu0
        %1446 = vmatprep.mubr.f32.mxu0 0.0
        %1447 = vmatmul.mubr.f32.gmra.mrb[0].mxu0 %v1209
        %v1448 = vpop.f32.mrb[0].mxu0
        %v1449 = vadd.f32 0.0, %v1448
        %v1450 = vpop.f32.mrb[0].mxu0
        %1451 = vdwg.mxu0
        %v1452 = vadd.f32 %v1146, %v1294
        %v1453 = vadd.f32 %v1147, %v1299
        %v1454 = vadd.f32 %v1148, %v1304
        %v1455 = vadd.f32 %v1149, %v1309
        %v1456 = vadd.f32 %v1150, %v1314
        %v1457 = vadd.f32 %v1151, %v1319
        %v1458 = vadd.f32 %v1152, %v1324
        %v1459 = vadd.f32 %v1153, %v1329
        %v1460 = vadd.f32 %v1154, %v1334
        %v1461 = vadd.f32 %v1155, %v1339
        %v1462 = vadd.f32 %v1156, %v1344
        %v1463 = vadd.f32 %v1157, %v1349
        %v1464 = vadd.f32 %v1158, %v1354
        %v1465 = vadd.f32 %v1159, %v1359
        %v1466 = vadd.f32 %v1160, %v1364
        %v1467 = vadd.f32 %v1161, %v1369
        %v1468 = vadd.f32 %v1162, %v1374
        %v1469 = vadd.f32 %v1163, %v1379
        %v1470 = vadd.f32 %v1164, %v1384
        %v1471 = vadd.f32 %v1165, %v1389
        %v1472 = vadd.f32 %v1166, %v1394
        %v1473 = vadd.f32 %v1167, %v1399
        %v1474 = vadd.f32 %v1168, %v1404
        %v1475 = vadd.f32 %v1169, %v1409
        %v1476 = vadd.f32 %v1170, %v1414
        %v1477 = vadd.f32 %v1171, %v1419
        %v1478 = vadd.f32 %v1172, %v1424
        %v1479 = vadd.f32 %v1173, %v1429
        %v1480 = vadd.f32 %v1174, %v1434
        %v1481 = vadd.f32 %v1175, %v1439
        %v1482 = vadd.f32 %v1176, %v1444
        %v1483 = vadd.f32 %v1177, %v1449
        %1484 = vst [vmem:[#allocation3] sm:$0xff] %v1452
        %1485 = vst [vmem:[#allocation3 + $0x8] sm:$0xff] %v1453
        %1486 = vst [vmem:[#allocation3 + $0x10] sm:$0xff] %v1454
        %1487 = vst [vmem:[#allocation3 + $0x18] sm:$0xff] %v1455
        %1488 = vst [vmem:[#allocation3 + $0x20] sm:$0xff] %v1456
        %1489 = vst [vmem:[#allocation3 + $0x28] sm:$0xff] %v1457
        %1490 = vst [vmem:[#allocation3 + $0x30] sm:$0xff] %v1458
        %1491 = vst [vmem:[#allocation3 + $0x38] sm:$0xff] %v1459
        %1492 = vst [vmem:[#allocation3 + $0x40] sm:$0xff] %v1460
        %1493 = vst [vmem:[#allocation3 + $0x48] sm:$0xff] %v1461
        %1494 = vst [vmem:[#allocation3 + $0x50] sm:$0xff] %v1462
        %1495 = vst [vmem:[#allocation3 + $0x58] sm:$0xff] %v1463
        %1496 = vst [vmem:[#allocation3 + $0x60] sm:$0xff] %v1464
        %1497 = vst [vmem:[#allocation3 + $0x68] sm:$0xff] %v1465
        %1498 = vst [vmem:[#allocation3 + $0x70] sm:$0xff] %v1466
        %1499 = vst [vmem:[#allocation3 + $0x78] sm:$0xff] %v1467
        %1500 = vst [vmem:[#allocation3 + $0x80] sm:$0xff] %v1468
        %1501 = vst [vmem:[#allocation3 + $0x88] sm:$0xff] %v1469
        %1502 = vst [vmem:[#allocation3 + $0x90] sm:$0xff] %v1470
        %1503 = vst [vmem:[#allocation3 + $0x98] sm:$0xff] %v1471
        %1504 = vst [vmem:[#allocation3 + $0xa0] sm:$0xff] %v1472
        %1505 = vst [vmem:[#allocation3 + $0xa8] sm:$0xff] %v1473
        %1506 = vst [vmem:[#allocation3 + $0xb0] sm:$0xff] %v1474
        %1507 = vst [vmem:[#allocation3 + $0xb8] sm:$0xff] %v1475
        %1508 = vst [vmem:[#allocation3 + $0xc0] sm:$0xff] %v1476
        %1509 = vst [vmem:[#allocation3 + $0xc8] sm:$0xff] %v1477
        %1510 = vst [vmem:[#allocation3 + $0xd0] sm:$0xff] %v1478
        %1511 = vst [vmem:[#allocation3 + $0xd8] sm:$0xff] %v1479
        %1512 = vst [vmem:[#allocation3 + $0xe0] sm:$0xff] %v1480
        %1513 = vst [vmem:[#allocation3 + $0xe8] sm:$0xff] %v1481
        %1514 = vst [vmem:[#allocation3 + $0xf0] sm:$0xff] %v1482
        %1515 = vst [vmem:[#allocation3 + $0xf8] sm:$0xff] %v1483
        %v1516 = vld [vmem:[#allocation3] sm:$0xff]
        %v1517 = vld [vmem:[#allocation3 + $0x8] sm:$0xff]
        %v1518 = vld [vmem:[#allocation3 + $0x10] sm:$0xff]
        %v1519 = vld [vmem:[#allocation3 + $0x18] sm:$0xff]
        %v1520 = vld [vmem:[#allocation3 + $0x20] sm:$0xff]
        %v1521 = vld [vmem:[#allocation3 + $0x28] sm:$0xff]
        %v1522 = vld [vmem:[#allocation3 + $0x30] sm:$0xff]
        %v1523 = vld [vmem:[#allocation3 + $0x38] sm:$0xff]
        %v1524 = vld [vmem:[#allocation3 + $0x40] sm:$0xff]
        %v1525 = vld [vmem:[#allocation3 + $0x48] sm:$0xff]
        %v1526 = vld [vmem:[#allocation3 + $0x50] sm:$0xff]
        %v1527 = vld [vmem:[#allocation3 + $0x58] sm:$0xff]
        %v1528 = vld [vmem:[#allocation3 + $0x60] sm:$0xff]
        %v1529 = vld [vmem:[#allocation3 + $0x68] sm:$0xff]
        %v1530 = vld [vmem:[#allocation3 + $0x70] sm:$0xff]
        %v1531 = vld [vmem:[#allocation3 + $0x78] sm:$0xff]
        %v1532 = vld [vmem:[#allocation3 + $0x80] sm:$0xff]
        %v1533 = vld [vmem:[#allocation3 + $0x88] sm:$0xff]
        %v1534 = vld [vmem:[#allocation3 + $0x90] sm:$0xff]
        %v1535 = vld [vmem:[#allocation3 + $0x98] sm:$0xff]
        %v1536 = vld [vmem:[#allocation3 + $0xa0] sm:$0xff]
        %v1537 = vld [vmem:[#allocation3 + $0xa8] sm:$0xff]
        %v1538 = vld [vmem:[#allocation3 + $0xb0] sm:$0xff]
        %v1539 = vld [vmem:[#allocation3 + $0xb8] sm:$0xff]
        %v1540 = vld [vmem:[#allocation3 + $0xc0] sm:$0xff]
        %v1541 = vld [vmem:[#allocation3 + $0xc8] sm:$0xff]
        %v1542 = vld [vmem:[#allocation3 + $0xd0] sm:$0xff]
        %v1543 = vld [vmem:[#allocation3 + $0xd8] sm:$0xff]
        %v1544 = vld [vmem:[#allocation3 + $0xe0] sm:$0xff]
        %v1545 = vld [vmem:[#allocation3 + $0xe8] sm:$0xff]
        %v1546 = vld [vmem:[#allocation3 + $0xf0] sm:$0xff]
        %v1547 = vld [vmem:[#allocation3 + $0xf8] sm:$0xff]
        %v1548 = vld [vmem:[#allocation2 + $0x2] sm:$0xff]
        %v1549 = vld [vmem:[#allocation2 + $0xa] sm:$0xff]
        %v1550 = vld [vmem:[#allocation2 + $0x1a] sm:$0xff]
        %v1551 = vld [vmem:[#allocation2 + $0x22] sm:$0xff]
        %v1552 = vld [vmem:[#allocation2 + $0x32] sm:$0xff]
        %v1553 = vld [vmem:[#allocation2 + $0x3a] sm:$0xff]
        %v1554 = vld [vmem:[#allocation2 + $0x4a] sm:$0xff]
        %v1555 = vld [vmem:[#allocation2 + $0x52] sm:$0xff]
        %v1556 = vld [vmem:[#allocation2 + $0x62] sm:$0xff]
        %v1557 = vld [vmem:[#allocation2 + $0x6a] sm:$0xff]
        %v1558 = vld [vmem:[#allocation2 + $0x7a] sm:$0xff]
        %v1559 = vld [vmem:[#allocation2 + $0x82] sm:$0xff]
        %v1560 = vld [vmem:[#allocation2 + $0x92] sm:$0xff]
        %v1561 = vld [vmem:[#allocation2 + $0x9a] sm:$0xff]
        %v1562 = vld [vmem:[#allocation2 + $0xaa] sm:$0xff]
        %v1563 = vld [vmem:[#allocation2 + $0xb2] sm:$0xff]
        %v1564 = vld [vmem:[#allocation2 + $0xc2] sm:$0xff]
        %v1565 = vld [vmem:[#allocation2 + $0xca] sm:$0xff]
        %v1566 = vld [vmem:[#allocation2 + $0xda] sm:$0xff]
        %v1567 = vld [vmem:[#allocation2 + $0xe2] sm:$0xff]
        %v1568 = vld [vmem:[#allocation2 + $0xf2] sm:$0xff]
        %v1569 = vld [vmem:[#allocation2 + $0xfa] sm:$0xff]
        %v1570 = vld [vmem:[#allocation2 + $0x10a] sm:$0xff]
        %v1571 = vld [vmem:[#allocation2 + $0x112] sm:$0xff]
        %v1572 = vld [vmem:[#allocation2 + $0x122] sm:$0xff]
        %v1573 = vld [vmem:[#allocation2 + $0x12a] sm:$0xff]
        %v1574 = vld [vmem:[#allocation2 + $0x13a] sm:$0xff]
        %v1575 = vld [vmem:[#allocation2 + $0x142] sm:$0xff]
        %v1576 = vld [vmem:[#allocation2 + $0x152] sm:$0xff]
        %v1577 = vld [vmem:[#allocation2 + $0x15a] sm:$0xff]
        %v1578 = vld [vmem:[#allocation2 + $0x16a] sm:$0xff]
        %v1579 = vld [vmem:[#allocation2 + $0x172] sm:$0xff]
        %s1580 = scalar_lea.vmem [#allocation4], 256
        %v1581 = vld [vmem:[%s1580] sm:$0xff]
        %v1582 = vld [vmem:[%s1580 + $0x8] sm:$0xff]
        %v1583 = vld [vmem:[%s1580 + $0x10] sm:$0xff]
        %v1584 = vld [vmem:[%s1580 + $0x18] sm:$0xff]
        %v1585 = vld [vmem:[%s1580 + $0x20] sm:$0xff]
        %v1586 = vld [vmem:[%s1580 + $0x28] sm:$0xff]
        %v1587 = vld [vmem:[%s1580 + $0x30] sm:$0xff]
        %v1588 = vld [vmem:[%s1580 + $0x38] sm:$0xff]
        %v1589 = vld [vmem:[%s1580 + $0x40] sm:$0xff]
        %v1590 = vld [vmem:[%s1580 + $0x48] sm:$0xff]
        %v1591 = vld [vmem:[%s1580 + $0x50] sm:$0xff]
        %v1592 = vld [vmem:[%s1580 + $0x58] sm:$0xff]
        %v1593 = vld [vmem:[%s1580 + $0x60] sm:$0xff]
        %v1594 = vld [vmem:[%s1580 + $0x68] sm:$0xff]
        %v1595 = vld [vmem:[%s1580 + $0x70] sm:$0xff]
        %v1596 = vld [vmem:[%s1580 + $0x78] sm:$0xff]
        %1597 = vmatprep.subr.mxu0 0.0
        %1598 = vmatpush1.msra.mxu0 %v1581
        %1599 = vmatprep.subr.mxu0 0.0
        %1600 = vmatpush1.msra.mxu0 %v1582
        %1601 = vmatprep.subr.mxu0 0.0
        %1602 = vmatpush1.msra.mxu0 %v1583
        %1603 = vmatprep.subr.mxu0 0.0
        %1604 = vmatpush1.msra.mxu0 %v1584
        %1605 = vmatprep.subr.mxu0 0.0
        %1606 = vmatpush1.msra.mxu0 %v1585
        %1607 = vmatprep.subr.mxu0 0.0
        %1608 = vmatpush1.msra.mxu0 %v1586
        %1609 = vmatprep.subr.mxu0 0.0
        %1610 = vmatpush1.msra.mxu0 %v1587
        %1611 = vmatprep.subr.mxu0 0.0
        %1612 = vmatpush1.msra.mxu0 %v1588
        %1613 = vmatprep.subr.mxu0 0.0
        %1614 = vmatpush1.msra.mxu0 %v1589
        %1615 = vmatprep.subr.mxu0 0.0
        %1616 = vmatpush1.msra.mxu0 %v1590
        %1617 = vmatprep.subr.mxu0 0.0
        %1618 = vmatpush1.msra.mxu0 %v1591
        %1619 = vmatprep.subr.mxu0 0.0
        %1620 = vmatpush1.msra.mxu0 %v1592
        %1621 = vmatprep.subr.mxu0 0.0
        %1622 = vmatpush1.msra.mxu0 %v1593
        %1623 = vmatprep.subr.mxu0 0.0
        %1624 = vmatpush1.msra.mxu0 %v1594
        %1625 = vmatprep.subr.mxu0 0.0
        %1626 = vmatpush1.msra.mxu0 %v1595
        %1627 = vmatprep.subr.mxu0 0.0
        %1628 = vmatpush1.msra.mxu0 %v1596
        %1629 = vmatprep.subr.mxu0 0.0
        %1630 = vmatpush1.msra.mxu0 0.0
        %1631 = vmatprep.subr.mxu0 0.0
        %1632 = vmatpush1.msra.mxu0 0.0
        %1633 = vmatprep.subr.mxu0 0.0
        %1634 = vmatpush1.msra.mxu0 0.0
        %1635 = vmatprep.subr.mxu0 0.0
        %1636 = vmatpush1.msra.mxu0 0.0
        %1637 = vmatprep.subr.mxu0 0.0
        %1638 = vmatpush1.msra.mxu0 0.0
        %1639 = vmatprep.subr.mxu0 0.0
        %1640 = vmatpush1.msra.mxu0 0.0
        %1641 = vmatprep.subr.mxu0 0.0
        %1642 = vmatpush1.msra.mxu0 0.0
        %1643 = vmatprep.subr.mxu0 0.0
        %1644 = vmatpush1.msra.mxu0 0.0
        %1645 = vmatprep.subr.mxu0 0.0
        %1646 = vmatpush1.msra.mxu0 0.0
        %1647 = vmatprep.subr.mxu0 0.0
        %1648 = vmatpush1.msra.mxu0 0.0
        %1649 = vmatprep.subr.mxu0 0.0
        %1650 = vmatpush1.msra.mxu0 0.0
        %1651 = vmatprep.subr.mxu0 0.0
        %1652 = vmatpush1.msra.mxu0 0.0
        %1653 = vmatprep.subr.mxu0 0.0
        %1654 = vmatpush1.msra.mxu0 0.0
        %1655 = vmatprep.subr.mxu0 0.0
        %1656 = vmatpush1.msra.mxu0 0.0
        %1657 = vmatprep.subr.mxu0 0.0
        %1658 = vmatpush1.msra.mxu0 0.0
        %1659 = vmatprep.subr.mxu0 0.0
        %1660 = vmatpush1.msra.mxu0 0.0
        %1661 = vmatprep.mubr.f32.mxu0 0.0
        %1662 = vmatmul.mubr.f32.gmra.mrb[0].mxu0 %v1548
        %v1663 = vpop.f32.mrb[0].mxu0
        %v1664 = vadd.f32 0.0, %v1663
        %v1665 = vpop.f32.mrb[0].mxu0
        %1666 = vmatprep.mubr.f32.mxu0 0.0
        %1667 = vmatmul.mubr.f32.gmra.mrb[0].mxu0 %v1549
        %v1668 = vpop.f32.mrb[0].mxu0
        %v1669 = vadd.f32 0.0, %v1668
        %v1670 = vpop.f32.mrb[0].mxu0
        %1671 = vmatprep.mubr.f32.mxu0 0.0
        %1672 = vmatmul.mubr.f32.gmra.mrb[0].mxu0 %v1550
        %v1673 = vpop.f32.mrb[0].mxu0
        %v1674 = vadd.f32 0.0, %v1673
        %v1675 = vpop.f32.mrb[0].mxu0
        %1676 = vmatprep.mubr.f32.mxu0 0.0
        %1677 = vmatmul.mubr.f32.gmra.mrb[0].mxu0 %v1551
        %v1678 = vpop.f32.mrb[0].mxu0
        %v1679 = vadd.f32 0.0, %v1678
        %v1680 = vpop.f32.mrb[0].mxu0
        %1681 = vmatprep.mubr.f32.mxu0 0.0
        %1682 = vmatmul.mubr.f32.gmra.mrb[0].mxu0 %v1552
        %v1683 = vpop.f32.mrb[0].mxu0
        %v1684 = vadd.f32 0.0, %v1683
        %v1685 = vpop.f32.mrb[0].mxu0
        %1686 = vmatprep.mubr.f32.mxu0 0.0
        %1687 = vmatmul.mubr.f32.gmra.mrb[0].mxu0 %v1553
        %v1688 = vpop.f32.mrb[0].mxu0
        %v1689 = vadd.f32 0.0, %v1688
        %v1690 = vpop.f32.mrb[0].mxu0
        %1691 = vmatprep.mubr.f32.mxu0 0.0
        %1692 = vmatmul.mubr.f32.gmra.mrb[0].mxu0 %v1554
        %v1693 = vpop.f32.mrb[0].mxu0
        %v1694 = vadd.f32 0.0, %v1693
        %v1695 = vpop.f32.mrb[0].mxu0
        %1696 = vmatprep.mubr.f32.mxu0 0.0
        %1697 = vmatmul.mubr.f32.gmra.mrb[0].mxu0 %v1555
        %v1698 = vpop.f32.mrb[0].mxu0
        %v1699 = vadd.f32 0.0, %v1698
        %v1700 = vpop.f32.mrb[0].mxu0
        %1701 = vmatprep.mubr.f32.mxu0 0.0
        %1702 = vmatmul.mubr.f32.gmra.mrb[0].mxu0 %v1556
        %v1703 = vpop.f32.mrb[0].mxu0
        %v1704 = vadd.f32 0.0, %v1703
        %v1705 = vpop.f32.mrb[0].mxu0
        %1706 = vmatprep.mubr.f32.mxu0 0.0
        %1707 = vmatmul.mubr.f32.gmra.mrb[0].mxu0 %v1557
        %v1708 = vpop.f32.mrb[0].mxu0
        %v1709 = vadd.f32 0.0, %v1708
        %v1710 = vpop.f32.mrb[0].mxu0
        %1711 = vmatprep.mubr.f32.mxu0 0.0
        %1712 = vmatmul.mubr.f32.gmra.mrb[0].mxu0 %v1558
        %v1713 = vpop.f32.mrb[0].mxu0
        %v1714 = vadd.f32 0.0, %v1713
        %v1715 = vpop.f32.mrb[0].mxu0
        %1716 = vmatprep.mubr.f32.mxu0 0.0
        %1717 = vmatmul.mubr.f32.gmra.mrb[0].mxu0 %v1559
        %v1718 = vpop.f32.mrb[0].mxu0
        %v1719 = vadd.f32 0.0, %v1718
        %v1720 = vpop.f32.mrb[0].mxu0
        %1721 = vmatprep.mubr.f32.mxu0 0.0
        %1722 = vmatmul.mubr.f32.gmra.mrb[0].mxu0 %v1560
        %v1723 = vpop.f32.mrb[0].mxu0
        %v1724 = vadd.f32 0.0, %v1723
        %v1725 = vpop.f32.mrb[0].mxu0
        %1726 = vmatprep.mubr.f32.mxu0 0.0
        %1727 = vmatmul.mubr.f32.gmra.mrb[0].mxu0 %v1561
        %v1728 = vpop.f32.mrb[0].mxu0
        %v1729 = vadd.f32 0.0, %v1728
        %v1730 = vpop.f32.mrb[0].mxu0
        %1731 = vmatprep.mubr.f32.mxu0 0.0
        %1732 = vmatmul.mubr.f32.gmra.mrb[0].mxu0 %v1562
        %v1733 = vpop.f32.mrb[0].mxu0
        %v1734 = vadd.f32 0.0, %v1733
        %v1735 = vpop.f32.mrb[0].mxu0
        %1736 = vmatprep.mubr.f32.mxu0 0.0
        %1737 = vmatmul.mubr.f32.gmra.mrb[0].mxu0 %v1563
        %v1738 = vpop.f32.mrb[0].mxu0
        %v1739 = vadd.f32 0.0, %v1738
        %v1740 = vpop.f32.mrb[0].mxu0
        %1741 = vmatprep.mubr.f32.mxu0 0.0
        %1742 = vmatmul.mubr.f32.gmra.mrb[0].mxu0 %v1564
        %v1743 = vpop.f32.mrb[0].mxu0
        %v1744 = vadd.f32 0.0, %v1743
        %v1745 = vpop.f32.mrb[0].mxu0
        %1746 = vmatprep.mubr.f32.mxu0 0.0
        %1747 = vmatmul.mubr.f32.gmra.mrb[0].mxu0 %v1565
        %v1748 = vpop.f32.mrb[0].mxu0
        %v1749 = vadd.f32 0.0, %v1748
        %v1750 = vpop.f32.mrb[0].mxu0
        %1751 = vmatprep.mubr.f32.mxu0 0.0
        %1752 = vmatmul.mubr.f32.gmra.mrb[0].mxu0 %v1566
        %v1753 = vpop.f32.mrb[0].mxu0
        %v1754 = vadd.f32 0.0, %v1753
        %v1755 = vpop.f32.mrb[0].mxu0
        %1756 = vmatprep.mubr.f32.mxu0 0.0
        %1757 = vmatmul.mubr.f32.gmra.mrb[0].mxu0 %v1567
        %v1758 = vpop.f32.mrb[0].mxu0
        %v1759 = vadd.f32 0.0, %v1758
        %v1760 = vpop.f32.mrb[0].mxu0
        %1761 = vmatprep.mubr.f32.mxu0 0.0
        %1762 = vmatmul.mubr.f32.gmra.mrb[0].mxu0 %v1568
        %v1763 = vpop.f32.mrb[0].mxu0
        %v1764 = vadd.f32 0.0, %v1763
        %v1765 = vpop.f32.mrb[0].mxu0
        %1766 = vmatprep.mubr.f32.mxu0 0.0
        %1767 = vmatmul.mubr.f32.gmra.mrb[0].mxu0 %v1569
        %v1768 = vpop.f32.mrb[0].mxu0
        %v1769 = vadd.f32 0.0, %v1768
        %v1770 = vpop.f32.mrb[0].mxu0
        %1771 = vmatprep.mubr.f32.mxu0 0.0
        %1772 = vmatmul.mubr.f32.gmra.mrb[0].mxu0 %v1570
        %v1773 = vpop.f32.mrb[0].mxu0
        %v1774 = vadd.f32 0.0, %v1773
        %v1775 = vpop.f32.mrb[0].mxu0
        %1776 = vmatprep.mubr.f32.mxu0 0.0
        %1777 = vmatmul.mubr.f32.gmra.mrb[0].mxu0 %v1571
        %v1778 = vpop.f32.mrb[0].mxu0
        %v1779 = vadd.f32 0.0, %v1778
        %v1780 = vpop.f32.mrb[0].mxu0
        %1781 = vmatprep.mubr.f32.mxu0 0.0
        %1782 = vmatmul.mubr.f32.gmra.mrb[0].mxu0 %v1572
        %v1783 = vpop.f32.mrb[0].mxu0
        %v1784 = vadd.f32 0.0, %v1783
        %v1785 = vpop.f32.mrb[0].mxu0
        %1786 = vmatprep.mubr.f32.mxu0 0.0
        %1787 = vmatmul.mubr.f32.gmra.mrb[0].mxu0 %v1573
        %v1788 = vpop.f32.mrb[0].mxu0
        %v1789 = vadd.f32 0.0, %v1788
        %v1790 = vpop.f32.mrb[0].mxu0
        %1791 = vmatprep.mubr.f32.mxu0 0.0
        %1792 = vmatmul.mubr.f32.gmra.mrb[0].mxu0 %v1574
        %v1793 = vpop.f32.mrb[0].mxu0
        %v1794 = vadd.f32 0.0, %v1793
        %v1795 = vpop.f32.mrb[0].mxu0
        %1796 = vmatprep.mubr.f32.mxu0 0.0
        %1797 = vmatmul.mubr.f32.gmra.mrb[0].mxu0 %v1575
        %v1798 = vpop.f32.mrb[0].mxu0
        %v1799 = vadd.f32 0.0, %v1798
        %v1800 = vpop.f32.mrb[0].mxu0
        %1801 = vmatprep.mubr.f32.mxu0 0.0
        %1802 = vmatmul.mubr.f32.gmra.mrb[0].mxu0 %v1576
        %v1803 = vpop.f32.mrb[0].mxu0
        %v1804 = vadd.f32 0.0, %v1803
        %v1805 = vpop.f32.mrb[0].mxu0
        %1806 = vmatprep.mubr.f32.mxu0 0.0
        %1807 = vmatmul.mubr.f32.gmra.mrb[0].mxu0 %v1577
        %v1808 = vpop.f32.mrb[0].mxu0
        %v1809 = vadd.f32 0.0, %v1808
        %v1810 = vpop.f32.mrb[0].mxu0
        %1811 = vmatprep.mubr.f32.mxu0 0.0
        %1812 = vmatmul.mubr.f32.gmra.mrb[0].mxu0 %v1578
        %v1813 = vpop.f32.mrb[0].mxu0
        %v1814 = vadd.f32 0.0, %v1813
        %v1815 = vpop.f32.mrb[0].mxu0
        %1816 = vmatprep.mubr.f32.mxu0 0.0
        %1817 = vmatmul.mubr.f32.gmra.mrb[0].mxu0 %v1579
        %v1818 = vpop.f32.mrb[0].mxu0
        %v1819 = vadd.f32 0.0, %v1818
        %v1820 = vpop.f32.mrb[0].mxu0
        %1821 = vdwg.mxu0
        %v1822 = vadd.f32 %v1516, %v1664
        %v1823 = vadd.f32 %v1517, %v1669
        %v1824 = vadd.f32 %v1518, %v1674
        %v1825 = vadd.f32 %v1519, %v1679
        %v1826 = vadd.f32 %v1520, %v1684
        %v1827 = vadd.f32 %v1521, %v1689
        %v1828 = vadd.f32 %v1522, %v1694
        %v1829 = vadd.f32 %v1523, %v1699
        %v1830 = vadd.f32 %v1524, %v1704
        %v1831 = vadd.f32 %v1525, %v1709
        %v1832 = vadd.f32 %v1526, %v1714
        %v1833 = vadd.f32 %v1527, %v1719
        %v1834 = vadd.f32 %v1528, %v1724
        %v1835 = vadd.f32 %v1529, %v1729
        %v1836 = vadd.f32 %v1530, %v1734
        %v1837 = vadd.f32 %v1531, %v1739
        %v1838 = vadd.f32 %v1532, %v1744
        %v1839 = vadd.f32 %v1533, %v1749
        %v1840 = vadd.f32 %v1534, %v1754
        %v1841 = vadd.f32 %v1535, %v1759
        %v1842 = vadd.f32 %v1536, %v1764
        %v1843 = vadd.f32 %v1537, %v1769
        %v1844 = vadd.f32 %v1538, %v1774
        %v1845 = vadd.f32 %v1539, %v1779
        %v1846 = vadd.f32 %v1540, %v1784
        %v1847 = vadd.f32 %v1541, %v1789
        %v1848 = vadd.f32 %v1542, %v1794
        %v1849 = vadd.f32 %v1543, %v1799
        %v1850 = vadd.f32 %v1544, %v1804
        %v1851 = vadd.f32 %v1545, %v1809
        %v1852 = vadd.f32 %v1546, %v1814
        %v1853 = vadd.f32 %v1547, %v1819
        %1854 = vst [vmem:[#allocation3] sm:$0xff] %v1822
        %1855 = vst [vmem:[#allocation3 + $0x8] sm:$0xff] %v1823
        %1856 = vst [vmem:[#allocation3 + $0x10] sm:$0xff] %v1824
        %1857 = vst [vmem:[#allocation3 + $0x18] sm:$0xff] %v1825
        %1858 = vst [vmem:[#allocation3 + $0x20] sm:$0xff] %v1826
        %1859 = vst [vmem:[#allocation3 + $0x28] sm:$0xff] %v1827
        %1860 = vst [vmem:[#allocation3 + $0x30] sm:$0xff] %v1828
        %1861 = vst [vmem:[#allocation3 + $0x38] sm:$0xff] %v1829
        %1862 = vst [vmem:[#allocation3 + $0x40] sm:$0xff] %v1830
        %1863 = vst [vmem:[#allocation3 + $0x48] sm:$0xff] %v1831
        %1864 = vst [vmem:[#allocation3 + $0x50] sm:$0xff] %v1832
        %1865 = vst [vmem:[#allocation3 + $0x58] sm:$0xff] %v1833
        %1866 = vst [vmem:[#allocation3 + $0x60] sm:$0xff] %v1834
        %1867 = vst [vmem:[#allocation3 + $0x68] sm:$0xff] %v1835
        %1868 = vst [vmem:[#allocation3 + $0x70] sm:$0xff] %v1836
        %1869 = vst [vmem:[#allocation3 + $0x78] sm:$0xff] %v1837
        %1870 = vst [vmem:[#allocation3 + $0x80] sm:$0xff] %v1838
        %1871 = vst [vmem:[#allocation3 + $0x88] sm:$0xff] %v1839
        %1872 = vst [vmem:[#allocation3 + $0x90] sm:$0xff] %v1840
        %1873 = vst [vmem:[#allocation3 + $0x98] sm:$0xff] %v1841
        %1874 = vst [vmem:[#allocation3 + $0xa0] sm:$0xff] %v1842
        %1875 = vst [vmem:[#allocation3 + $0xa8] sm:$0xff] %v1843
        %1876 = vst [vmem:[#allocation3 + $0xb0] sm:$0xff] %v1844
        %1877 = vst [vmem:[#allocation3 + $0xb8] sm:$0xff] %v1845
        %1878 = vst [vmem:[#allocation3 + $0xc0] sm:$0xff] %v1846
        %1879 = vst [vmem:[#allocation3 + $0xc8] sm:$0xff] %v1847
        %1880 = vst [vmem:[#allocation3 + $0xd0] sm:$0xff] %v1848
        %1881 = vst [vmem:[#allocation3 + $0xd8] sm:$0xff] %v1849
        %1882 = vst [vmem:[#allocation3 + $0xe0] sm:$0xff] %v1850
        %1883 = vst [vmem:[#allocation3 + $0xe8] sm:$0xff] %v1851
        %1884 = vst [vmem:[#allocation3 + $0xf0] sm:$0xff] %v1852
        %1885 = vst [vmem:[#allocation3 + $0xf8] sm:$0xff] %v1853
        %v1886 = vld [vmem:[#allocation3] sm:$0xff]
        %v1887 = vld [vmem:[#allocation3 + $0x8] sm:$0xff]
        %v1888 = vld [vmem:[#allocation3 + $0x10] sm:$0xff]
        %v1889 = vld [vmem:[#allocation3 + $0x18] sm:$0xff]
        %v1890 = vld [vmem:[#allocation3 + $0x20] sm:$0xff]
        %v1891 = vld [vmem:[#allocation3 + $0x28] sm:$0xff]
        %v1892 = vld [vmem:[#allocation3 + $0x30] sm:$0xff]
        %v1893 = vld [vmem:[#allocation3 + $0x38] sm:$0xff]
        %v1894 = vld [vmem:[#allocation3 + $0x40] sm:$0xff]
        %v1895 = vld [vmem:[#allocation3 + $0x48] sm:$0xff]
        %v1896 = vld [vmem:[#allocation3 + $0x50] sm:$0xff]
        %v1897 = vld [vmem:[#allocation3 + $0x58] sm:$0xff]
        %v1898 = vld [vmem:[#allocation3 + $0x60] sm:$0xff]
        %v1899 = vld [vmem:[#allocation3 + $0x68] sm:$0xff]
        %v1900 = vld [vmem:[#allocation3 + $0x70] sm:$0xff]
        %v1901 = vld [vmem:[#allocation3 + $0x78] sm:$0xff]
        %v1902 = vld [vmem:[#allocation3 + $0x80] sm:$0xff]
        %v1903 = vld [vmem:[#allocation3 + $0x88] sm:$0xff]
        %v1904 = vld [vmem:[#allocation3 + $0x90] sm:$0xff]
        %v1905 = vld [vmem:[#allocation3 + $0x98] sm:$0xff]
        %v1906 = vld [vmem:[#allocation3 + $0xa0] sm:$0xff]
        %v1907 = vld [vmem:[#allocation3 + $0xa8] sm:$0xff]
        %v1908 = vld [vmem:[#allocation3 + $0xb0] sm:$0xff]
        %v1909 = vld [vmem:[#allocation3 + $0xb8] sm:$0xff]
        %v1910 = vld [vmem:[#allocation3 + $0xc0] sm:$0xff]
        %v1911 = vld [vmem:[#allocation3 + $0xc8] sm:$0xff]
        %v1912 = vld [vmem:[#allocation3 + $0xd0] sm:$0xff]
        %v1913 = vld [vmem:[#allocation3 + $0xd8] sm:$0xff]
        %v1914 = vld [vmem:[#allocation3 + $0xe0] sm:$0xff]
        %v1915 = vld [vmem:[#allocation3 + $0xe8] sm:$0xff]
        %v1916 = vld [vmem:[#allocation3 + $0xf0] sm:$0xff]
        %v1917 = vld [vmem:[#allocation3 + $0xf8] sm:$0xff]
        %v1918 = vld [vmem:[%s808] sm:$0xff]
        %v1919 = vld [vmem:[%s808 + $0x8] sm:$0xff]
        %v1920 = vld [vmem:[%s808 + $0x18] sm:$0xff]
        %v1921 = vld [vmem:[%s808 + $0x20] sm:$0xff]
        %v1922 = vld [vmem:[%s808 + $0x30] sm:$0xff]
        %v1923 = vld [vmem:[%s808 + $0x38] sm:$0xff]
        %v1924 = vld [vmem:[%s808 + $0x48] sm:$0xff]
        %v1925 = vld [vmem:[%s808 + $0x50] sm:$0xff]
        %v1926 = vld [vmem:[%s808 + $0x60] sm:$0xff]
        %v1927 = vld [vmem:[%s808 + $0x68] sm:$0xff]
        %v1928 = vld [vmem:[%s808 + $0x78] sm:$0xff]
        %v1929 = vld [vmem:[%s808 + $0x80] sm:$0xff]
        %v1930 = vld [vmem:[%s808 + $0x90] sm:$0xff]
        %v1931 = vld [vmem:[%s808 + $0x98] sm:$0xff]
        %v1932 = vld [vmem:[%s808 + $0xa8] sm:$0xff]
        %v1933 = vld [vmem:[%s808 + $0xb0] sm:$0xff]
        %v1934 = vld [vmem:[%s808 + $0xc0] sm:$0xff]
        %v1935 = vld [vmem:[%s808 + $0xc8] sm:$0xff]
        %v1936 = vld [vmem:[%s808 + $0xd8] sm:$0xff]
        %v1937 = vld [vmem:[%s808 + $0xe0] sm:$0xff]
        %v1938 = vld [vmem:[%s808 + $0xf0] sm:$0xff]
        %v1939 = vld [vmem:[%s808 + $0xf8] sm:$0xff]
        %v1940 = vld [vmem:[%s808 + $0x108] sm:$0xff]
        %v1941 = vld [vmem:[%s808 + $0x110] sm:$0xff]
        %v1942 = vld [vmem:[%s808 + $0x120] sm:$0xff]
        %v1943 = vld [vmem:[%s808 + $0x128] sm:$0xff]
        %v1944 = vld [vmem:[%s808 + $0x138] sm:$0xff]
        %v1945 = vld [vmem:[%s808 + $0x140] sm:$0xff]
        %v1946 = vld [vmem:[%s808 + $0x150] sm:$0xff]
        %v1947 = vld [vmem:[%s808 + $0x158] sm:$0xff]
        %v1948 = vld [vmem:[%s808 + $0x168] sm:$0xff]
        %v1949 = vld [vmem:[%s808 + $0x170] sm:$0xff]
        %s1950 = scalar_lea.vmem [#allocation4], 384
        %v1951 = vld [vmem:[%s1950] sm:$0xff]
        %v1952 = vld [vmem:[%s1950 + $0x8] sm:$0xff]
        %v1953 = vld [vmem:[%s1950 + $0x10] sm:$0xff]
        %v1954 = vld [vmem:[%s1950 + $0x18] sm:$0xff]
        %v1955 = vld [vmem:[%s1950 + $0x20] sm:$0xff]
        %v1956 = vld [vmem:[%s1950 + $0x28] sm:$0xff]
        %v1957 = vld [vmem:[%s1950 + $0x30] sm:$0xff]
        %v1958 = vld [vmem:[%s1950 + $0x38] sm:$0xff]
        %v1959 = vld [vmem:[%s1950 + $0x40] sm:$0xff]
        %v1960 = vld [vmem:[%s1950 + $0x48] sm:$0xff]
        %v1961 = vld [vmem:[%s1950 + $0x50] sm:$0xff]
        %v1962 = vld [vmem:[%s1950 + $0x58] sm:$0xff]
        %v1963 = vld [vmem:[%s1950 + $0x60] sm:$0xff]
        %v1964 = vld [vmem:[%s1950 + $0x68] sm:$0xff]
        %v1965 = vld [vmem:[%s1950 + $0x70] sm:$0xff]
        %v1966 = vld [vmem:[%s1950 + $0x78] sm:$0xff]
        %1967 = vmatprep.subr.mxu0 0.0
        %1968 = vmatpush1.msra.mxu0 %v1951
        %1969 = vmatprep.subr.mxu0 0.0
        %1970 = vmatpush1.msra.mxu0 %v1952
        %1971 = vmatprep.subr.mxu0 0.0
        %1972 = vmatpush1.msra.mxu0 %v1953
        %1973 = vmatprep.subr.mxu0 0.0
        %1974 = vmatpush1.msra.mxu0 %v1954
        %1975 = vmatprep.subr.mxu0 0.0
        %1976 = vmatpush1.msra.mxu0 %v1955
        %1977 = vmatprep.subr.mxu0 0.0
        %1978 = vmatpush1.msra.mxu0 %v1956
        %1979 = vmatprep.subr.mxu0 0.0
        %1980 = vmatpush1.msra.mxu0 %v1957
        %1981 = vmatprep.subr.mxu0 0.0
        %1982 = vmatpush1.msra.mxu0 %v1958
        %1983 = vmatprep.subr.mxu0 0.0
        %1984 = vmatpush1.msra.mxu0 %v1959
        %1985 = vmatprep.subr.mxu0 0.0
        %1986 = vmatpush1.msra.mxu0 %v1960
        %1987 = vmatprep.subr.mxu0 0.0
        %1988 = vmatpush1.msra.mxu0 %v1961
        %1989 = vmatprep.subr.mxu0 0.0
        %1990 = vmatpush1.msra.mxu0 %v1962
        %1991 = vmatprep.subr.mxu0 0.0
        %1992 = vmatpush1.msra.mxu0 %v1963
        %1993 = vmatprep.subr.mxu0 0.0
        %1994 = vmatpush1.msra.mxu0 %v1964
        %1995 = vmatprep.subr.mxu0 0.0
        %1996 = vmatpush1.msra.mxu0 %v1965
        %1997 = vmatprep.subr.mxu0 0.0
        %1998 = vmatpush1.msra.mxu0 %v1966
        %1999 = vmatprep.subr.mxu0 0.0
        %2000 = vmatpush1.msra.mxu0 0.0
        %2001 = vmatprep.subr.mxu0 0.0
        %2002 = vmatpush1.msra.mxu0 0.0
        %2003 = vmatprep.subr.mxu0 0.0
        %2004 = vmatpush1.msra.mxu0 0.0
        %2005 = vmatprep.subr.mxu0 0.0
        %2006 = vmatpush1.msra.mxu0 0.0
        %2007 = vmatprep.subr.mxu0 0.0
        %2008 = vmatpush1.msra.mxu0 0.0
        %2009 = vmatprep.subr.mxu0 0.0
        %2010 = vmatpush1.msra.mxu0 0.0
        %2011 = vmatprep.subr.mxu0 0.0
        %2012 = vmatpush1.msra.mxu0 0.0
        %2013 = vmatprep.subr.mxu0 0.0
        %2014 = vmatpush1.msra.mxu0 0.0
        %2015 = vmatprep.subr.mxu0 0.0
        %2016 = vmatpush1.msra.mxu0 0.0
        %2017 = vmatprep.subr.mxu0 0.0
        %2018 = vmatpush1.msra.mxu0 0.0
        %2019 = vmatprep.subr.mxu0 0.0
        %2020 = vmatpush1.msra.mxu0 0.0
        %2021 = vmatprep.subr.mxu0 0.0
        %2022 = vmatpush1.msra.mxu0 0.0
        %2023 = vmatprep.subr.mxu0 0.0
        %2024 = vmatpush1.msra.mxu0 0.0
        %2025 = vmatprep.subr.mxu0 0.0
        %2026 = vmatpush1.msra.mxu0 0.0
        %2027 = vmatprep.subr.mxu0 0.0
        %2028 = vmatpush1.msra.mxu0 0.0
        %2029 = vmatprep.subr.mxu0 0.0
        %2030 = vmatpush1.msra.mxu0 0.0
        %2031 = vmatprep.mubr.f32.mxu0 0.0
        %2032 = vmatmul.mubr.f32.gmra.mrb[0].mxu0 %v1918
        %v2033 = vpop.f32.mrb[0].mxu0
        %v2034 = vadd.f32 0.0, %v2033
        %v2035 = vpop.f32.mrb[0].mxu0
        %2036 = vmatprep.mubr.f32.mxu0 0.0
        %2037 = vmatmul.mubr.f32.gmra.mrb[0].mxu0 %v1919
        %v2038 = vpop.f32.mrb[0].mxu0
        %v2039 = vadd.f32 0.0, %v2038
        %v2040 = vpop.f32.mrb[0].mxu0
        %2041 = vmatprep.mubr.f32.mxu0 0.0
        %2042 = vmatmul.mubr.f32.gmra.mrb[0].mxu0 %v1920
        %v2043 = vpop.f32.mrb[0].mxu0
        %v2044 = vadd.f32 0.0, %v2043
        %v2045 = vpop.f32.mrb[0].mxu0
        %2046 = vmatprep.mubr.f32.mxu0 0.0
        %2047 = vmatmul.mubr.f32.gmra.mrb[0].mxu0 %v1921
        %v2048 = vpop.f32.mrb[0].mxu0
        %v2049 = vadd.f32 0.0, %v2048
        %v2050 = vpop.f32.mrb[0].mxu0
        %2051 = vmatprep.mubr.f32.mxu0 0.0
        %2052 = vmatmul.mubr.f32.gmra.mrb[0].mxu0 %v1922
        %v2053 = vpop.f32.mrb[0].mxu0
        %v2054 = vadd.f32 0.0, %v2053
        %v2055 = vpop.f32.mrb[0].mxu0
        %2056 = vmatprep.mubr.f32.mxu0 0.0
        %2057 = vmatmul.mubr.f32.gmra.mrb[0].mxu0 %v1923
        %v2058 = vpop.f32.mrb[0].mxu0
        %v2059 = vadd.f32 0.0, %v2058
        %v2060 = vpop.f32.mrb[0].mxu0
        %2061 = vmatprep.mubr.f32.mxu0 0.0
        %2062 = vmatmul.mubr.f32.gmra.mrb[0].mxu0 %v1924
        %v2063 = vpop.f32.mrb[0].mxu0
        %v2064 = vadd.f32 0.0, %v2063
        %v2065 = vpop.f32.mrb[0].mxu0
        %2066 = vmatprep.mubr.f32.mxu0 0.0
        %2067 = vmatmul.mubr.f32.gmra.mrb[0].mxu0 %v1925
        %v2068 = vpop.f32.mrb[0].mxu0
        %v2069 = vadd.f32 0.0, %v2068
        %v2070 = vpop.f32.mrb[0].mxu0
        %2071 = vmatprep.mubr.f32.mxu0 0.0
        %2072 = vmatmul.mubr.f32.gmra.mrb[0].mxu0 %v1926
        %v2073 = vpop.f32.mrb[0].mxu0
        %v2074 = vadd.f32 0.0, %v2073
        %v2075 = vpop.f32.mrb[0].mxu0
        %2076 = vmatprep.mubr.f32.mxu0 0.0
        %2077 = vmatmul.mubr.f32.gmra.mrb[0].mxu0 %v1927
        %v2078 = vpop.f32.mrb[0].mxu0
        %v2079 = vadd.f32 0.0, %v2078
        %v2080 = vpop.f32.mrb[0].mxu0
        %2081 = vmatprep.mubr.f32.mxu0 0.0
        %2082 = vmatmul.mubr.f32.gmra.mrb[0].mxu0 %v1928
        %v2083 = vpop.f32.mrb[0].mxu0
        %v2084 = vadd.f32 0.0, %v2083
        %v2085 = vpop.f32.mrb[0].mxu0
        %2086 = vmatprep.mubr.f32.mxu0 0.0
        %2087 = vmatmul.mubr.f32.gmra.mrb[0].mxu0 %v1929
        %v2088 = vpop.f32.mrb[0].mxu0
        %v2089 = vadd.f32 0.0, %v2088
        %v2090 = vpop.f32.mrb[0].mxu0
        %2091 = vmatprep.mubr.f32.mxu0 0.0
        %2092 = vmatmul.mubr.f32.gmra.mrb[0].mxu0 %v1930
        %v2093 = vpop.f32.mrb[0].mxu0
        %v2094 = vadd.f32 0.0, %v2093
        %v2095 = vpop.f32.mrb[0].mxu0
        %2096 = vmatprep.mubr.f32.mxu0 0.0
        %2097 = vmatmul.mubr.f32.gmra.mrb[0].mxu0 %v1931
        %v2098 = vpop.f32.mrb[0].mxu0
        %v2099 = vadd.f32 0.0, %v2098
        %v2100 = vpop.f32.mrb[0].mxu0
        %2101 = vmatprep.mubr.f32.mxu0 0.0
        %2102 = vmatmul.mubr.f32.gmra.mrb[0].mxu0 %v1932
        %v2103 = vpop.f32.mrb[0].mxu0
        %v2104 = vadd.f32 0.0, %v2103
        %v2105 = vpop.f32.mrb[0].mxu0
        %2106 = vmatprep.mubr.f32.mxu0 0.0
        %2107 = vmatmul.mubr.f32.gmra.mrb[0].mxu0 %v1933
        %v2108 = vpop.f32.mrb[0].mxu0
        %v2109 = vadd.f32 0.0, %v2108
        %v2110 = vpop.f32.mrb[0].mxu0
        %2111 = vmatprep.mubr.f32.mxu0 0.0
        %2112 = vmatmul.mubr.f32.gmra.mrb[0].mxu0 %v1934
        %v2113 = vpop.f32.mrb[0].mxu0
        %v2114 = vadd.f32 0.0, %v2113
        %v2115 = vpop.f32.mrb[0].mxu0
        %2116 = vmatprep.mubr.f32.mxu0 0.0
        %2117 = vmatmul.mubr.f32.gmra.mrb[0].mxu0 %v1935
        %v2118 = vpop.f32.mrb[0].mxu0
        %v2119 = vadd.f32 0.0, %v2118
        %v2120 = vpop.f32.mrb[0].mxu0
        %2121 = vmatprep.mubr.f32.mxu0 0.0
        %2122 = vmatmul.mubr.f32.gmra.mrb[0].mxu0 %v1936
        %v2123 = vpop.f32.mrb[0].mxu0
        %v2124 = vadd.f32 0.0, %v2123
        %v2125 = vpop.f32.mrb[0].mxu0
        %2126 = vmatprep.mubr.f32.mxu0 0.0
        %2127 = vmatmul.mubr.f32.gmra.mrb[0].mxu0 %v1937
        %v2128 = vpop.f32.mrb[0].mxu0
        %v2129 = vadd.f32 0.0, %v2128
        %v2130 = vpop.f32.mrb[0].mxu0
        %2131 = vmatprep.mubr.f32.mxu0 0.0
        %2132 = vmatmul.mubr.f32.gmra.mrb[0].mxu0 %v1938
        %v2133 = vpop.f32.mrb[0].mxu0
        %v2134 = vadd.f32 0.0, %v2133
        %v2135 = vpop.f32.mrb[0].mxu0
        %2136 = vmatprep.mubr.f32.mxu0 0.0
        %2137 = vmatmul.mubr.f32.gmra.mrb[0].mxu0 %v1939
        %v2138 = vpop.f32.mrb[0].mxu0
        %v2139 = vadd.f32 0.0, %v2138
        %v2140 = vpop.f32.mrb[0].mxu0
        %2141 = vmatprep.mubr.f32.mxu0 0.0
        %2142 = vmatmul.mubr.f32.gmra.mrb[0].mxu0 %v1940
        %v2143 = vpop.f32.mrb[0].mxu0
        %v2144 = vadd.f32 0.0, %v2143
        %v2145 = vpop.f32.mrb[0].mxu0
        %2146 = vmatprep.mubr.f32.mxu0 0.0
        %2147 = vmatmul.mubr.f32.gmra.mrb[0].mxu0 %v1941
        %v2148 = vpop.f32.mrb[0].mxu0
        %v2149 = vadd.f32 0.0, %v2148
        %v2150 = vpop.f32.mrb[0].mxu0
        %2151 = vmatprep.mubr.f32.mxu0 0.0
        %2152 = vmatmul.mubr.f32.gmra.mrb[0].mxu0 %v1942
        %v2153 = vpop.f32.mrb[0].mxu0
        %v2154 = vadd.f32 0.0, %v2153
        %v2155 = vpop.f32.mrb[0].mxu0
        %2156 = vmatprep.mubr.f32.mxu0 0.0
        %2157 = vmatmul.mubr.f32.gmra.mrb[0].mxu0 %v1943
        %v2158 = vpop.f32.mrb[0].mxu0
        %v2159 = vadd.f32 0.0, %v2158
        %v2160 = vpop.f32.mrb[0].mxu0
        %2161 = vmatprep.mubr.f32.mxu0 0.0
        %2162 = vmatmul.mubr.f32.gmra.mrb[0].mxu0 %v1944
        %v2163 = vpop.f32.mrb[0].mxu0
        %v2164 = vadd.f32 0.0, %v2163
        %v2165 = vpop.f32.mrb[0].mxu0
        %2166 = vmatprep.mubr.f32.mxu0 0.0
        %2167 = vmatmul.mubr.f32.gmra.mrb[0].mxu0 %v1945
        %v2168 = vpop.f32.mrb[0].mxu0
        %v2169 = vadd.f32 0.0, %v2168
        %v2170 = vpop.f32.mrb[0].mxu0
        %2171 = vmatprep.mubr.f32.mxu0 0.0
        %2172 = vmatmul.mubr.f32.gmra.mrb[0].mxu0 %v1946
        %v2173 = vpop.f32.mrb[0].mxu0
        %v2174 = vadd.f32 0.0, %v2173
        %v2175 = vpop.f32.mrb[0].mxu0
        %2176 = vmatprep.mubr.f32.mxu0 0.0
        %2177 = vmatmul.mubr.f32.gmra.mrb[0].mxu0 %v1947
        %v2178 = vpop.f32.mrb[0].mxu0
        %v2179 = vadd.f32 0.0, %v2178
        %v2180 = vpop.f32.mrb[0].mxu0
        %2181 = vmatprep.mubr.f32.mxu0 0.0
        %2182 = vmatmul.mubr.f32.gmra.mrb[0].mxu0 %v1948
        %v2183 = vpop.f32.mrb[0].mxu0
        %v2184 = vadd.f32 0.0, %v2183
        %v2185 = vpop.f32.mrb[0].mxu0
        %2186 = vmatprep.mubr.f32.mxu0 0.0
        %2187 = vmatmul.mubr.f32.gmra.mrb[0].mxu0 %v1949
        %v2188 = vpop.f32.mrb[0].mxu0
        %v2189 = vadd.f32 0.0, %v2188
        %v2190 = vpop.f32.mrb[0].mxu0
        %2191 = vdwg.mxu0
        %v2192 = vadd.f32 %v1886, %v2034
        %v2193 = vadd.f32 %v1887, %v2039
        %v2194 = vadd.f32 %v1888, %v2044
        %v2195 = vadd.f32 %v1889, %v2049
        %v2196 = vadd.f32 %v1890, %v2054
        %v2197 = vadd.f32 %v1891, %v2059
        %v2198 = vadd.f32 %v1892, %v2064
        %v2199 = vadd.f32 %v1893, %v2069
        %v2200 = vadd.f32 %v1894, %v2074
        %v2201 = vadd.f32 %v1895, %v2079
        %v2202 = vadd.f32 %v1896, %v2084
        %v2203 = vadd.f32 %v1897, %v2089
        %v2204 = vadd.f32 %v1898, %v2094
        %v2205 = vadd.f32 %v1899, %v2099
        %v2206 = vadd.f32 %v1900, %v2104
        %v2207 = vadd.f32 %v1901, %v2109
        %v2208 = vadd.f32 %v1902, %v2114
        %v2209 = vadd.f32 %v1903, %v2119
        %v2210 = vadd.f32 %v1904, %v2124
        %v2211 = vadd.f32 %v1905, %v2129
        %v2212 = vadd.f32 %v1906, %v2134
        %v2213 = vadd.f32 %v1907, %v2139
        %v2214 = vadd.f32 %v1908, %v2144
        %v2215 = vadd.f32 %v1909, %v2149
        %v2216 = vadd.f32 %v1910, %v2154
        %v2217 = vadd.f32 %v1911, %v2159
        %v2218 = vadd.f32 %v1912, %v2164
        %v2219 = vadd.f32 %v1913, %v2169
        %v2220 = vadd.f32 %v1914, %v2174
        %v2221 = vadd.f32 %v1915, %v2179
        %v2222 = vadd.f32 %v1916, %v2184
        %v2223 = vadd.f32 %v1917, %v2189
        %2224 = vst [vmem:[#allocation3] sm:$0xff] %v2192
        %2225 = vst [vmem:[#allocation3 + $0x8] sm:$0xff] %v2193
        %2226 = vst [vmem:[#allocation3 + $0x10] sm:$0xff] %v2194
        %2227 = vst [vmem:[#allocation3 + $0x18] sm:$0xff] %v2195
        %2228 = vst [vmem:[#allocation3 + $0x20] sm:$0xff] %v2196
        %2229 = vst [vmem:[#allocation3 + $0x28] sm:$0xff] %v2197
        %2230 = vst [vmem:[#allocation3 + $0x30] sm:$0xff] %v2198
        %2231 = vst [vmem:[#allocation3 + $0x38] sm:$0xff] %v2199
        %2232 = vst [vmem:[#allocation3 + $0x40] sm:$0xff] %v2200
        %2233 = vst [vmem:[#allocation3 + $0x48] sm:$0xff] %v2201
        %2234 = vst [vmem:[#allocation3 + $0x50] sm:$0xff] %v2202
        %2235 = vst [vmem:[#allocation3 + $0x58] sm:$0xff] %v2203
        %2236 = vst [vmem:[#allocation3 + $0x60] sm:$0xff] %v2204
        %2237 = vst [vmem:[#allocation3 + $0x68] sm:$0xff] %v2205
        %2238 = vst [vmem:[#allocation3 + $0x70] sm:$0xff] %v2206
        %2239 = vst [vmem:[#allocation3 + $0x78] sm:$0xff] %v2207
        %2240 = vst [vmem:[#allocation3 + $0x80] sm:$0xff] %v2208
        %2241 = vst [vmem:[#allocation3 + $0x88] sm:$0xff] %v2209
        %2242 = vst [vmem:[#allocation3 + $0x90] sm:$0xff] %v2210
        %2243 = vst [vmem:[#allocation3 + $0x98] sm:$0xff] %v2211
        %2244 = vst [vmem:[#allocation3 + $0xa0] sm:$0xff] %v2212
        %2245 = vst [vmem:[#allocation3 + $0xa8] sm:$0xff] %v2213
        %2246 = vst [vmem:[#allocation3 + $0xb0] sm:$0xff] %v2214
        %2247 = vst [vmem:[#allocation3 + $0xb8] sm:$0xff] %v2215
        %2248 = vst [vmem:[#allocation3 + $0xc0] sm:$0xff] %v2216
        %2249 = vst [vmem:[#allocation3 + $0xc8] sm:$0xff] %v2217
        %2250 = vst [vmem:[#allocation3 + $0xd0] sm:$0xff] %v2218
        %2251 = vst [vmem:[#allocation3 + $0xd8] sm:$0xff] %v2219
        %2252 = vst [vmem:[#allocation3 + $0xe0] sm:$0xff] %v2220
        %2253 = vst [vmem:[#allocation3 + $0xe8] sm:$0xff] %v2221
        %2254 = vst [vmem:[#allocation3 + $0xf0] sm:$0xff] %v2222
        %2255 = vst [vmem:[#allocation3 + $0xf8] sm:$0xff] %v2223
        %v2256 = vld [vmem:[#allocation3] sm:$0xff]
        %v2257 = vld [vmem:[#allocation3 + $0x8] sm:$0xff]
        %v2258 = vld [vmem:[#allocation3 + $0x10] sm:$0xff]
        %v2259 = vld [vmem:[#allocation3 + $0x18] sm:$0xff]
        %v2260 = vld [vmem:[#allocation3 + $0x20] sm:$0xff]
        %v2261 = vld [vmem:[#allocation3 + $0x28] sm:$0xff]
        %v2262 = vld [vmem:[#allocation3 + $0x30] sm:$0xff]
        %v2263 = vld [vmem:[#allocation3 + $0x38] sm:$0xff]
        %v2264 = vld [vmem:[#allocation3 + $0x40] sm:$0xff]
        %v2265 = vld [vmem:[#allocation3 + $0x48] sm:$0xff]
        %v2266 = vld [vmem:[#allocation3 + $0x50] sm:$0xff]
        %v2267 = vld [vmem:[#allocation3 + $0x58] sm:$0xff]
        %v2268 = vld [vmem:[#allocation3 + $0x60] sm:$0xff]
        %v2269 = vld [vmem:[#allocation3 + $0x68] sm:$0xff]
        %v2270 = vld [vmem:[#allocation3 + $0x70] sm:$0xff]
        %v2271 = vld [vmem:[#allocation3 + $0x78] sm:$0xff]
        %v2272 = vld [vmem:[#allocation3 + $0x80] sm:$0xff]
        %v2273 = vld [vmem:[#allocation3 + $0x88] sm:$0xff]
        %v2274 = vld [vmem:[#allocation3 + $0x90] sm:$0xff]
        %v2275 = vld [vmem:[#allocation3 + $0x98] sm:$0xff]
        %v2276 = vld [vmem:[#allocation3 + $0xa0] sm:$0xff]
        %v2277 = vld [vmem:[#allocation3 + $0xa8] sm:$0xff]
        %v2278 = vld [vmem:[#allocation3 + $0xb0] sm:$0xff]
        %v2279 = vld [vmem:[#allocation3 + $0xb8] sm:$0xff]
        %v2280 = vld [vmem:[#allocation3 + $0xc0] sm:$0xff]
        %v2281 = vld [vmem:[#allocation3 + $0xc8] sm:$0xff]
        %v2282 = vld [vmem:[#allocation3 + $0xd0] sm:$0xff]
        %v2283 = vld [vmem:[#allocation3 + $0xd8] sm:$0xff]
        %v2284 = vld [vmem:[#allocation3 + $0xe0] sm:$0xff]
        %v2285 = vld [vmem:[#allocation3 + $0xe8] sm:$0xff]
        %v2286 = vld [vmem:[#allocation3 + $0xf0] sm:$0xff]
        %v2287 = vld [vmem:[#allocation3 + $0xf8] sm:$0xff]
        %v2288 = vld [vmem:[%s808 + $0x1] sm:$0xff]
        %v2289 = vld [vmem:[%s808 + $0x9] sm:$0xff]
        %v2290 = vld [vmem:[%s808 + $0x19] sm:$0xff]
        %v2291 = vld [vmem:[%s808 + $0x21] sm:$0xff]
        %v2292 = vld [vmem:[%s808 + $0x31] sm:$0xff]
        %v2293 = vld [vmem:[%s808 + $0x39] sm:$0xff]
        %v2294 = vld [vmem:[%s808 + $0x49] sm:$0xff]
        %v2295 = vld [vmem:[%s808 + $0x51] sm:$0xff]
        %v2296 = vld [vmem:[%s808 + $0x61] sm:$0xff]
        %v2297 = vld [vmem:[%s808 + $0x69] sm:$0xff]
        %v2298 = vld [vmem:[%s808 + $0x79] sm:$0xff]
        %v2299 = vld [vmem:[%s808 + $0x81] sm:$0xff]
        %v2300 = vld [vmem:[%s808 + $0x91] sm:$0xff]
        %v2301 = vld [vmem:[%s808 + $0x99] sm:$0xff]
        %v2302 = vld [vmem:[%s808 + $0xa9] sm:$0xff]
        %v2303 = vld [vmem:[%s808 + $0xb1] sm:$0xff]
        %v2304 = vld [vmem:[%s808 + $0xc1] sm:$0xff]
        %v2305 = vld [vmem:[%s808 + $0xc9] sm:$0xff]
        %v2306 = vld [vmem:[%s808 + $0xd9] sm:$0xff]
        %v2307 = vld [vmem:[%s808 + $0xe1] sm:$0xff]
        %v2308 = vld [vmem:[%s808 + $0xf1] sm:$0xff]
        %v2309 = vld [vmem:[%s808 + $0xf9] sm:$0xff]
        %v2310 = vld [vmem:[%s808 + $0x109] sm:$0xff]
        %v2311 = vld [vmem:[%s808 + $0x111] sm:$0xff]
        %v2312 = vld [vmem:[%s808 + $0x121] sm:$0xff]
        %v2313 = vld [vmem:[%s808 + $0x129] sm:$0xff]
        %v2314 = vld [vmem:[%s808 + $0x139] sm:$0xff]
        %v2315 = vld [vmem:[%s808 + $0x141] sm:$0xff]
        %v2316 = vld [vmem:[%s808 + $0x151] sm:$0xff]
        %v2317 = vld [vmem:[%s808 + $0x159] sm:$0xff]
        %v2318 = vld [vmem:[%s808 + $0x169] sm:$0xff]
        %v2319 = vld [vmem:[%s808 + $0x171] sm:$0xff]
        %s2320 = scalar_lea.vmem [#allocation4], 512
        %v2321 = vld [vmem:[%s2320] sm:$0xff]
        %v2322 = vld [vmem:[%s2320 + $0x8] sm:$0xff]
        %v2323 = vld [vmem:[%s2320 + $0x10] sm:$0xff]
        %v2324 = vld [vmem:[%s2320 + $0x18] sm:$0xff]
        %v2325 = vld [vmem:[%s2320 + $0x20] sm:$0xff]
        %v2326 = vld [vmem:[%s2320 + $0x28] sm:$0xff]
        %v2327 = vld [vmem:[%s2320 + $0x30] sm:$0xff]
        %v2328 = vld [vmem:[%s2320 + $0x38] sm:$0xff]
        %v2329 = vld [vmem:[%s2320 + $0x40] sm:$0xff]
        %v2330 = vld [vmem:[%s2320 + $0x48] sm:$0xff]
        %v2331 = vld [vmem:[%s2320 + $0x50] sm:$0xff]
        %v2332 = vld [vmem:[%s2320 + $0x58] sm:$0xff]
        %v2333 = vld [vmem:[%s2320 + $0x60] sm:$0xff]
        %v2334 = vld [vmem:[%s2320 + $0x68] sm:$0xff]
        %v2335 = vld [vmem:[%s2320 + $0x70] sm:$0xff]
        %v2336 = vld [vmem:[%s2320 + $0x78] sm:$0xff]
        %2337 = vmatprep.subr.mxu0 0.0
        %2338 = vmatpush1.msra.mxu0 %v2321
        %2339 = vmatprep.subr.mxu0 0.0
        %2340 = vmatpush1.msra.mxu0 %v2322
        %2341 = vmatprep.subr.mxu0 0.0
        %2342 = vmatpush1.msra.mxu0 %v2323
        %2343 = vmatprep.subr.mxu0 0.0
        %2344 = vmatpush1.msra.mxu0 %v2324
        %2345 = vmatprep.subr.mxu0 0.0
        %2346 = vmatpush1.msra.mxu0 %v2325
        %2347 = vmatprep.subr.mxu0 0.0
        %2348 = vmatpush1.msra.mxu0 %v2326
        %2349 = vmatprep.subr.mxu0 0.0
        %2350 = vmatpush1.msra.mxu0 %v2327
        %2351 = vmatprep.subr.mxu0 0.0
        %2352 = vmatpush1.msra.mxu0 %v2328
        %2353 = vmatprep.subr.mxu0 0.0
        %2354 = vmatpush1.msra.mxu0 %v2329
        %2355 = vmatprep.subr.mxu0 0.0
        %2356 = vmatpush1.msra.mxu0 %v2330
        %2357 = vmatprep.subr.mxu0 0.0
        %2358 = vmatpush1.msra.mxu0 %v2331
        %2359 = vmatprep.subr.mxu0 0.0
        %2360 = vmatpush1.msra.mxu0 %v2332
        %2361 = vmatprep.subr.mxu0 0.0
        %2362 = vmatpush1.msra.mxu0 %v2333
        %2363 = vmatprep.subr.mxu0 0.0
        %2364 = vmatpush1.msra.mxu0 %v2334
        %2365 = vmatprep.subr.mxu0 0.0
        %2366 = vmatpush1.msra.mxu0 %v2335
        %2367 = vmatprep.subr.mxu0 0.0
        %2368 = vmatpush1.msra.mxu0 %v2336
        %2369 = vmatprep.subr.mxu0 0.0
        %2370 = vmatpush1.msra.mxu0 0.0
        %2371 = vmatprep.subr.mxu0 0.0
        %2372 = vmatpush1.msra.mxu0 0.0
        %2373 = vmatprep.subr.mxu0 0.0
        %2374 = vmatpush1.msra.mxu0 0.0
        %2375 = vmatprep.subr.mxu0 0.0
        %2376 = vmatpush1.msra.mxu0 0.0
        %2377 = vmatprep.subr.mxu0 0.0
        %2378 = vmatpush1.msra.mxu0 0.0
        %2379 = vmatprep.subr.mxu0 0.0
        %2380 = vmatpush1.msra.mxu0 0.0
        %2381 = vmatprep.subr.mxu0 0.0
        %2382 = vmatpush1.msra.mxu0 0.0
        %2383 = vmatprep.subr.mxu0 0.0
        %2384 = vmatpush1.msra.mxu0 0.0
        %2385 = vmatprep.subr.mxu0 0.0
        %2386 = vmatpush1.msra.mxu0 0.0
        %2387 = vmatprep.subr.mxu0 0.0
        %2388 = vmatpush1.msra.mxu0 0.0
        %2389 = vmatprep.subr.mxu0 0.0
        %2390 = vmatpush1.msra.mxu0 0.0
        %2391 = vmatprep.subr.mxu0 0.0
        %2392 = vmatpush1.msra.mxu0 0.0
        %2393 = vmatprep.subr.mxu0 0.0
        %2394 = vmatpush1.msra.mxu0 0.0
        %2395 = vmatprep.subr.mxu0 0.0
        %2396 = vmatpush1.msra.mxu0 0.0
        %2397 = vmatprep.subr.mxu0 0.0
        %2398 = vmatpush1.msra.mxu0 0.0
        %2399 = vmatprep.subr.mxu0 0.0
        %2400 = vmatpush1.msra.mxu0 0.0
        %2401 = vmatprep.mubr.f32.mxu0 0.0
        %2402 = vmatmul.mubr.f32.gmra.mrb[0].mxu0 %v2288
        %v2403 = vpop.f32.mrb[0].mxu0
        %v2404 = vadd.f32 0.0, %v2403
        %v2405 = vpop.f32.mrb[0].mxu0
        %2406 = vmatprep.mubr.f32.mxu0 0.0
        %2407 = vmatmul.mubr.f32.gmra.mrb[0].mxu0 %v2289
        %v2408 = vpop.f32.mrb[0].mxu0
        %v2409 = vadd.f32 0.0, %v2408
        %v2410 = vpop.f32.mrb[0].mxu0
        %2411 = vmatprep.mubr.f32.mxu0 0.0
        %2412 = vmatmul.mubr.f32.gmra.mrb[0].mxu0 %v2290
        %v2413 = vpop.f32.mrb[0].mxu0
        %v2414 = vadd.f32 0.0, %v2413
        %v2415 = vpop.f32.mrb[0].mxu0
        %2416 = vmatprep.mubr.f32.mxu0 0.0
        %2417 = vmatmul.mubr.f32.gmra.mrb[0].mxu0 %v2291
        %v2418 = vpop.f32.mrb[0].mxu0
        %v2419 = vadd.f32 0.0, %v2418
        %v2420 = vpop.f32.mrb[0].mxu0
        %2421 = vmatprep.mubr.f32.mxu0 0.0
        %2422 = vmatmul.mubr.f32.gmra.mrb[0].mxu0 %v2292
        %v2423 = vpop.f32.mrb[0].mxu0
        %v2424 = vadd.f32 0.0, %v2423
        %v2425 = vpop.f32.mrb[0].mxu0
        %2426 = vmatprep.mubr.f32.mxu0 0.0
        %2427 = vmatmul.mubr.f32.gmra.mrb[0].mxu0 %v2293
        %v2428 = vpop.f32.mrb[0].mxu0
        %v2429 = vadd.f32 0.0, %v2428
        %v2430 = vpop.f32.mrb[0].mxu0
        %2431 = vmatprep.mubr.f32.mxu0 0.0
        %2432 = vmatmul.mubr.f32.gmra.mrb[0].mxu0 %v2294
        %v2433 = vpop.f32.mrb[0].mxu0
        %v2434 = vadd.f32 0.0, %v2433
        %v2435 = vpop.f32.mrb[0].mxu0
        %2436 = vmatprep.mubr.f32.mxu0 0.0
        %2437 = vmatmul.mubr.f32.gmra.mrb[0].mxu0 %v2295
        %v2438 = vpop.f32.mrb[0].mxu0
        %v2439 = vadd.f32 0.0, %v2438
        %v2440 = vpop.f32.mrb[0].mxu0
        %2441 = vmatprep.mubr.f32.mxu0 0.0
        %2442 = vmatmul.mubr.f32.gmra.mrb[0].mxu0 %v2296
        %v2443 = vpop.f32.mrb[0].mxu0
        %v2444 = vadd.f32 0.0, %v2443
        %v2445 = vpop.f32.mrb[0].mxu0
        %2446 = vmatprep.mubr.f32.mxu0 0.0
        %2447 = vmatmul.mubr.f32.gmra.mrb[0].mxu0 %v2297
        %v2448 = vpop.f32.mrb[0].mxu0
        %v2449 = vadd.f32 0.0, %v2448
        %v2450 = vpop.f32.mrb[0].mxu0
        %2451 = vmatprep.mubr.f32.mxu0 0.0
        %2452 = vmatmul.mubr.f32.gmra.mrb[0].mxu0 %v2298
        %v2453 = vpop.f32.mrb[0].mxu0
        %v2454 = vadd.f32 0.0, %v2453
        %v2455 = vpop.f32.mrb[0].mxu0
        %2456 = vmatprep.mubr.f32.mxu0 0.0
        %2457 = vmatmul.mubr.f32.gmra.mrb[0].mxu0 %v2299
        %v2458 = vpop.f32.mrb[0].mxu0
        %v2459 = vadd.f32 0.0, %v2458
        %v2460 = vpop.f32.mrb[0].mxu0
        %2461 = vmatprep.mubr.f32.mxu0 0.0
        %2462 = vmatmul.mubr.f32.gmra.mrb[0].mxu0 %v2300
        %v2463 = vpop.f32.mrb[0].mxu0
        %v2464 = vadd.f32 0.0, %v2463
        %v2465 = vpop.f32.mrb[0].mxu0
        %2466 = vmatprep.mubr.f32.mxu0 0.0
        %2467 = vmatmul.mubr.f32.gmra.mrb[0].mxu0 %v2301
        %v2468 = vpop.f32.mrb[0].mxu0
        %v2469 = vadd.f32 0.0, %v2468
        %v2470 = vpop.f32.mrb[0].mxu0
        %2471 = vmatprep.mubr.f32.mxu0 0.0
        %2472 = vmatmul.mubr.f32.gmra.mrb[0].mxu0 %v2302
        %v2473 = vpop.f32.mrb[0].mxu0
        %v2474 = vadd.f32 0.0, %v2473
        %v2475 = vpop.f32.mrb[0].mxu0
        %2476 = vmatprep.mubr.f32.mxu0 0.0
        %2477 = vmatmul.mubr.f32.gmra.mrb[0].mxu0 %v2303
        %v2478 = vpop.f32.mrb[0].mxu0
        %v2479 = vadd.f32 0.0, %v2478
        %v2480 = vpop.f32.mrb[0].mxu0
        %2481 = vmatprep.mubr.f32.mxu0 0.0
        %2482 = vmatmul.mubr.f32.gmra.mrb[0].mxu0 %v2304
        %v2483 = vpop.f32.mrb[0].mxu0
        %v2484 = vadd.f32 0.0, %v2483
        %v2485 = vpop.f32.mrb[0].mxu0
        %2486 = vmatprep.mubr.f32.mxu0 0.0
        %2487 = vmatmul.mubr.f32.gmra.mrb[0].mxu0 %v2305
        %v2488 = vpop.f32.mrb[0].mxu0
        %v2489 = vadd.f32 0.0, %v2488
        %v2490 = vpop.f32.mrb[0].mxu0
        %2491 = vmatprep.mubr.f32.mxu0 0.0
        %2492 = vmatmul.mubr.f32.gmra.mrb[0].mxu0 %v2306
        %v2493 = vpop.f32.mrb[0].mxu0
        %v2494 = vadd.f32 0.0, %v2493
        %v2495 = vpop.f32.mrb[0].mxu0
        %2496 = vmatprep.mubr.f32.mxu0 0.0
        %2497 = vmatmul.mubr.f32.gmra.mrb[0].mxu0 %v2307
        %v2498 = vpop.f32.mrb[0].mxu0
        %v2499 = vadd.f32 0.0, %v2498
        %v2500 = vpop.f32.mrb[0].mxu0
        %2501 = vmatprep.mubr.f32.mxu0 0.0
        %2502 = vmatmul.mubr.f32.gmra.mrb[0].mxu0 %v2308
        %v2503 = vpop.f32.mrb[0].mxu0
        %v2504 = vadd.f32 0.0, %v2503
        %v2505 = vpop.f32.mrb[0].mxu0
        %2506 = vmatprep.mubr.f32.mxu0 0.0
        %2507 = vmatmul.mubr.f32.gmra.mrb[0].mxu0 %v2309
        %v2508 = vpop.f32.mrb[0].mxu0
        %v2509 = vadd.f32 0.0, %v2508
        %v2510 = vpop.f32.mrb[0].mxu0
        %2511 = vmatprep.mubr.f32.mxu0 0.0
        %2512 = vmatmul.mubr.f32.gmra.mrb[0].mxu0 %v2310
        %v2513 = vpop.f32.mrb[0].mxu0
        %v2514 = vadd.f32 0.0, %v2513
        %v2515 = vpop.f32.mrb[0].mxu0
        %2516 = vmatprep.mubr.f32.mxu0 0.0
        %2517 = vmatmul.mubr.f32.gmra.mrb[0].mxu0 %v2311
        %v2518 = vpop.f32.mrb[0].mxu0
        %v2519 = vadd.f32 0.0, %v2518
        %v2520 = vpop.f32.mrb[0].mxu0
        %2521 = vmatprep.mubr.f32.mxu0 0.0
        %2522 = vmatmul.mubr.f32.gmra.mrb[0].mxu0 %v2312
        %v2523 = vpop.f32.mrb[0].mxu0
        %v2524 = vadd.f32 0.0, %v2523
        %v2525 = vpop.f32.mrb[0].mxu0
        %2526 = vmatprep.mubr.f32.mxu0 0.0
        %2527 = vmatmul.mubr.f32.gmra.mrb[0].mxu0 %v2313
        %v2528 = vpop.f32.mrb[0].mxu0
        %v2529 = vadd.f32 0.0, %v2528
        %v2530 = vpop.f32.mrb[0].mxu0
        %2531 = vmatprep.mubr.f32.mxu0 0.0
        %2532 = vmatmul.mubr.f32.gmra.mrb[0].mxu0 %v2314
        %v2533 = vpop.f32.mrb[0].mxu0
        %v2534 = vadd.f32 0.0, %v2533
        %v2535 = vpop.f32.mrb[0].mxu0
        %2536 = vmatprep.mubr.f32.mxu0 0.0
        %2537 = vmatmul.mubr.f32.gmra.mrb[0].mxu0 %v2315
        %v2538 = vpop.f32.mrb[0].mxu0
        %v2539 = vadd.f32 0.0, %v2538
        %v2540 = vpop.f32.mrb[0].mxu0
        %2541 = vmatprep.mubr.f32.mxu0 0.0
        %2542 = vmatmul.mubr.f32.gmra.mrb[0].mxu0 %v2316
        %v2543 = vpop.f32.mrb[0].mxu0
        %v2544 = vadd.f32 0.0, %v2543
        %v2545 = vpop.f32.mrb[0].mxu0
        %2546 = vmatprep.mubr.f32.mxu0 0.0
        %2547 = vmatmul.mubr.f32.gmra.mrb[0].mxu0 %v2317
        %v2548 = vpop.f32.mrb[0].mxu0
        %v2549 = vadd.f32 0.0, %v2548
        %v2550 = vpop.f32.mrb[0].mxu0
        %2551 = vmatprep.mubr.f32.mxu0 0.0
        %2552 = vmatmul.mubr.f32.gmra.mrb[0].mxu0 %v2318
        %v2553 = vpop.f32.mrb[0].mxu0
        %v2554 = vadd.f32 0.0, %v2553
        %v2555 = vpop.f32.mrb[0].mxu0
        %2556 = vmatprep.mubr.f32.mxu0 0.0
        %2557 = vmatmul.mubr.f32.gmra.mrb[0].mxu0 %v2319
        %v2558 = vpop.f32.mrb[0].mxu0
        %v2559 = vadd.f32 0.0, %v2558
        %v2560 = vpop.f32.mrb[0].mxu0
        %2561 = vdwg.mxu0
        %v2562 = vadd.f32 %v2256, %v2404
        %v2563 = vadd.f32 %v2257, %v2409
        %v2564 = vadd.f32 %v2258, %v2414
        %v2565 = vadd.f32 %v2259, %v2419
        %v2566 = vadd.f32 %v2260, %v2424
        %v2567 = vadd.f32 %v2261, %v2429
        %v2568 = vadd.f32 %v2262, %v2434
        %v2569 = vadd.f32 %v2263, %v2439
        %v2570 = vadd.f32 %v2264, %v2444
        %v2571 = vadd.f32 %v2265, %v2449
        %v2572 = vadd.f32 %v2266, %v2454
        %v2573 = vadd.f32 %v2267, %v2459
        %v2574 = vadd.f32 %v2268, %v2464
        %v2575 = vadd.f32 %v2269, %v2469
        %v2576 = vadd.f32 %v2270, %v2474
        %v2577 = vadd.f32 %v2271, %v2479
        %v2578 = vadd.f32 %v2272, %v2484
        %v2579 = vadd.f32 %v2273, %v2489
        %v2580 = vadd.f32 %v2274, %v2494
        %v2581 = vadd.f32 %v2275, %v2499
        %v2582 = vadd.f32 %v2276, %v2504
        %v2583 = vadd.f32 %v2277, %v2509
        %v2584 = vadd.f32 %v2278, %v2514
        %v2585 = vadd.f32 %v2279, %v2519
        %v2586 = vadd.f32 %v2280, %v2524
        %v2587 = vadd.f32 %v2281, %v2529
        %v2588 = vadd.f32 %v2282, %v2534
        %v2589 = vadd.f32 %v2283, %v2539
        %v2590 = vadd.f32 %v2284, %v2544
        %v2591 = vadd.f32 %v2285, %v2549
        %v2592 = vadd.f32 %v2286, %v2554
        %v2593 = vadd.f32 %v2287, %v2559
        %2594 = vst [vmem:[#allocation3] sm:$0xff] %v2562
        %2595 = vst [vmem:[#allocation3 + $0x8] sm:$0xff] %v2563
        %2596 = vst [vmem:[#allocation3 + $0x10] sm:$0xff] %v2564
        %2597 = vst [vmem:[#allocation3 + $0x18] sm:$0xff] %v2565
        %2598 = vst [vmem:[#allocation3 + $0x20] sm:$0xff] %v2566
        %2599 = vst [vmem:[#allocation3 + $0x28] sm:$0xff] %v2567
        %2600 = vst [vmem:[#allocation3 + $0x30] sm:$0xff] %v2568
        %2601 = vst [vmem:[#allocation3 + $0x38] sm:$0xff] %v2569
        %2602 = vst [vmem:[#allocation3 + $0x40] sm:$0xff] %v2570
        %2603 = vst [vmem:[#allocation3 + $0x48] sm:$0xff] %v2571
        %2604 = vst [vmem:[#allocation3 + $0x50] sm:$0xff] %v2572
        %2605 = vst [vmem:[#allocation3 + $0x58] sm:$0xff] %v2573
        %2606 = vst [vmem:[#allocation3 + $0x60] sm:$0xff] %v2574
        %2607 = vst [vmem:[#allocation3 + $0x68] sm:$0xff] %v2575
        %2608 = vst [vmem:[#allocation3 + $0x70] sm:$0xff] %v2576
        %2609 = vst [vmem:[#allocation3 + $0x78] sm:$0xff] %v2577
        %2610 = vst [vmem:[#allocation3 + $0x80] sm:$0xff] %v2578
        %2611 = vst [vmem:[#allocation3 + $0x88] sm:$0xff] %v2579
        %2612 = vst [vmem:[#allocation3 + $0x90] sm:$0xff] %v2580
        %2613 = vst [vmem:[#allocation3 + $0x98] sm:$0xff] %v2581
        %2614 = vst [vmem:[#allocation3 + $0xa0] sm:$0xff] %v2582
        %2615 = vst [vmem:[#allocation3 + $0xa8] sm:$0xff] %v2583
        %2616 = vst [vmem:[#allocation3 + $0xb0] sm:$0xff] %v2584
        %2617 = vst [vmem:[#allocation3 + $0xb8] sm:$0xff] %v2585
        %2618 = vst [vmem:[#allocation3 + $0xc0] sm:$0xff] %v2586
        %2619 = vst [vmem:[#allocation3 + $0xc8] sm:$0xff] %v2587
        %2620 = vst [vmem:[#allocation3 + $0xd0] sm:$0xff] %v2588
        %2621 = vst [vmem:[#allocation3 + $0xd8] sm:$0xff] %v2589
        %2622 = vst [vmem:[#allocation3 + $0xe0] sm:$0xff] %v2590
        %2623 = vst [vmem:[#allocation3 + $0xe8] sm:$0xff] %v2591
        %2624 = vst [vmem:[#allocation3 + $0xf0] sm:$0xff] %v2592
        %2625 = vst [vmem:[#allocation3 + $0xf8] sm:$0xff] %v2593
        %v2626 = vld [vmem:[#allocation3] sm:$0xff]
        %v2627 = vld [vmem:[#allocation3 + $0x8] sm:$0xff]
        %v2628 = vld [vmem:[#allocation3 + $0x10] sm:$0xff]
        %v2629 = vld [vmem:[#allocation3 + $0x18] sm:$0xff]
        %v2630 = vld [vmem:[#allocation3 + $0x20] sm:$0xff]
        %v2631 = vld [vmem:[#allocation3 + $0x28] sm:$0xff]
        %v2632 = vld [vmem:[#allocation3 + $0x30] sm:$0xff]
        %v2633 = vld [vmem:[#allocation3 + $0x38] sm:$0xff]
        %v2634 = vld [vmem:[#allocation3 + $0x40] sm:$0xff]
        %v2635 = vld [vmem:[#allocation3 + $0x48] sm:$0xff]
        %v2636 = vld [vmem:[#allocation3 + $0x50] sm:$0xff]
        %v2637 = vld [vmem:[#allocation3 + $0x58] sm:$0xff]
        %v2638 = vld [vmem:[#allocation3 + $0x60] sm:$0xff]
        %v2639 = vld [vmem:[#allocation3 + $0x68] sm:$0xff]
        %v2640 = vld [vmem:[#allocation3 + $0x70] sm:$0xff]
        %v2641 = vld [vmem:[#allocation3 + $0x78] sm:$0xff]
        %v2642 = vld [vmem:[#allocation3 + $0x80] sm:$0xff]
        %v2643 = vld [vmem:[#allocation3 + $0x88] sm:$0xff]
        %v2644 = vld [vmem:[#allocation3 + $0x90] sm:$0xff]
        %v2645 = vld [vmem:[#allocation3 + $0x98] sm:$0xff]
        %v2646 = vld [vmem:[#allocation3 + $0xa0] sm:$0xff]
        %v2647 = vld [vmem:[#allocation3 + $0xa8] sm:$0xff]
        %v2648 = vld [vmem:[#allocation3 + $0xb0] sm:$0xff]
        %v2649 = vld [vmem:[#allocation3 + $0xb8] sm:$0xff]
        %v2650 = vld [vmem:[#allocation3 + $0xc0] sm:$0xff]
        %v2651 = vld [vmem:[#allocation3 + $0xc8] sm:$0xff]
        %v2652 = vld [vmem:[#allocation3 + $0xd0] sm:$0xff]
        %v2653 = vld [vmem:[#allocation3 + $0xd8] sm:$0xff]
        %v2654 = vld [vmem:[#allocation3 + $0xe0] sm:$0xff]
        %v2655 = vld [vmem:[#allocation3 + $0xe8] sm:$0xff]
        %v2656 = vld [vmem:[#allocation3 + $0xf0] sm:$0xff]
        %v2657 = vld [vmem:[#allocation3 + $0xf8] sm:$0xff]
        %v2658 = vld [vmem:[%s808 + $0x2] sm:$0xff]
        %v2659 = vld [vmem:[%s808 + $0xa] sm:$0xff]
        %v2660 = vld [vmem:[%s808 + $0x1a] sm:$0xff]
        %v2661 = vld [vmem:[%s808 + $0x22] sm:$0xff]
        %v2662 = vld [vmem:[%s808 + $0x32] sm:$0xff]
        %v2663 = vld [vmem:[%s808 + $0x3a] sm:$0xff]
        %v2664 = vld [vmem:[%s808 + $0x4a] sm:$0xff]
        %v2665 = vld [vmem:[%s808 + $0x52] sm:$0xff]
        %v2666 = vld [vmem:[%s808 + $0x62] sm:$0xff]
        %v2667 = vld [vmem:[%s808 + $0x6a] sm:$0xff]
        %v2668 = vld [vmem:[%s808 + $0x7a] sm:$0xff]
        %v2669 = vld [vmem:[%s808 + $0x82] sm:$0xff]
        %v2670 = vld [vmem:[%s808 + $0x92] sm:$0xff]
        %v2671 = vld [vmem:[%s808 + $0x9a] sm:$0xff]
        %v2672 = vld [vmem:[%s808 + $0xaa] sm:$0xff]
        %v2673 = vld [vmem:[%s808 + $0xb2] sm:$0xff]
        %v2674 = vld [vmem:[%s808 + $0xc2] sm:$0xff]
        %v2675 = vld [vmem:[%s808 + $0xca] sm:$0xff]
        %v2676 = vld [vmem:[%s808 + $0xda] sm:$0xff]
        %v2677 = vld [vmem:[%s808 + $0xe2] sm:$0xff]
        %v2678 = vld [vmem:[%s808 + $0xf2] sm:$0xff]
        %v2679 = vld [vmem:[%s808 + $0xfa] sm:$0xff]
        %v2680 = vld [vmem:[%s808 + $0x10a] sm:$0xff]
        %v2681 = vld [vmem:[%s808 + $0x112] sm:$0xff]
        %v2682 = vld [vmem:[%s808 + $0x122] sm:$0xff]
        %v2683 = vld [vmem:[%s808 + $0x12a] sm:$0xff]
        %v2684 = vld [vmem:[%s808 + $0x13a] sm:$0xff]
        %v2685 = vld [vmem:[%s808 + $0x142] sm:$0xff]
        %v2686 = vld [vmem:[%s808 + $0x152] sm:$0xff]
        %v2687 = vld [vmem:[%s808 + $0x15a] sm:$0xff]
        %v2688 = vld [vmem:[%s808 + $0x16a] sm:$0xff]
        %v2689 = vld [vmem:[%s808 + $0x172] sm:$0xff]
        %s2690 = scalar_lea.vmem [#allocation4], 640
        %v2691 = vld [vmem:[%s2690] sm:$0xff]
        %v2692 = vld [vmem:[%s2690 + $0x8] sm:$0xff]
        %v2693 = vld [vmem:[%s2690 + $0x10] sm:$0xff]
        %v2694 = vld [vmem:[%s2690 + $0x18] sm:$0xff]
        %v2695 = vld [vmem:[%s2690 + $0x20] sm:$0xff]
        %v2696 = vld [vmem:[%s2690 + $0x28] sm:$0xff]
        %v2697 = vld [vmem:[%s2690 + $0x30] sm:$0xff]
        %v2698 = vld [vmem:[%s2690 + $0x38] sm:$0xff]
        %v2699 = vld [vmem:[%s2690 + $0x40] sm:$0xff]
        %v2700 = vld [vmem:[%s2690 + $0x48] sm:$0xff]
        %v2701 = vld [vmem:[%s2690 + $0x50] sm:$0xff]
        %v2702 = vld [vmem:[%s2690 + $0x58] sm:$0xff]
        %v2703 = vld [vmem:[%s2690 + $0x60] sm:$0xff]
        %v2704 = vld [vmem:[%s2690 + $0x68] sm:$0xff]
        %v2705 = vld [vmem:[%s2690 + $0x70] sm:$0xff]
        %v2706 = vld [vmem:[%s2690 + $0x78] sm:$0xff]
        %2707 = vmatprep.subr.mxu0 0.0
        %2708 = vmatpush1.msra.mxu0 %v2691
        %2709 = vmatprep.subr.mxu0 0.0
        %2710 = vmatpush1.msra.mxu0 %v2692
        %2711 = vmatprep.subr.mxu0 0.0
        %2712 = vmatpush1.msra.mxu0 %v2693
        %2713 = vmatprep.subr.mxu0 0.0
        %2714 = vmatpush1.msra.mxu0 %v2694
        %2715 = vmatprep.subr.mxu0 0.0
        %2716 = vmatpush1.msra.mxu0 %v2695
        %2717 = vmatprep.subr.mxu0 0.0
        %2718 = vmatpush1.msra.mxu0 %v2696
        %2719 = vmatprep.subr.mxu0 0.0
        %2720 = vmatpush1.msra.mxu0 %v2697
        %2721 = vmatprep.subr.mxu0 0.0
        %2722 = vmatpush1.msra.mxu0 %v2698
        %2723 = vmatprep.subr.mxu0 0.0
        %2724 = vmatpush1.msra.mxu0 %v2699
        %2725 = vmatprep.subr.mxu0 0.0
        %2726 = vmatpush1.msra.mxu0 %v2700
        %2727 = vmatprep.subr.mxu0 0.0
        %2728 = vmatpush1.msra.mxu0 %v2701
        %2729 = vmatprep.subr.mxu0 0.0
        %2730 = vmatpush1.msra.mxu0 %v2702
        %2731 = vmatprep.subr.mxu0 0.0
        %2732 = vmatpush1.msra.mxu0 %v2703
        %2733 = vmatprep.subr.mxu0 0.0
        %2734 = vmatpush1.msra.mxu0 %v2704
        %2735 = vmatprep.subr.mxu0 0.0
        %2736 = vmatpush1.msra.mxu0 %v2705
        %2737 = vmatprep.subr.mxu0 0.0
        %2738 = vmatpush1.msra.mxu0 %v2706
        %2739 = vmatprep.subr.mxu0 0.0
        %2740 = vmatpush1.msra.mxu0 0.0
        %2741 = vmatprep.subr.mxu0 0.0
        %2742 = vmatpush1.msra.mxu0 0.0
        %2743 = vmatprep.subr.mxu0 0.0
        %2744 = vmatpush1.msra.mxu0 0.0
        %2745 = vmatprep.subr.mxu0 0.0
        %2746 = vmatpush1.msra.mxu0 0.0
        %2747 = vmatprep.subr.mxu0 0.0
        %2748 = vmatpush1.msra.mxu0 0.0
        %2749 = vmatprep.subr.mxu0 0.0
        %2750 = vmatpush1.msra.mxu0 0.0
        %2751 = vmatprep.subr.mxu0 0.0
        %2752 = vmatpush1.msra.mxu0 0.0
        %2753 = vmatprep.subr.mxu0 0.0
        %2754 = vmatpush1.msra.mxu0 0.0
        %2755 = vmatprep.subr.mxu0 0.0
        %2756 = vmatpush1.msra.mxu0 0.0
        %2757 = vmatprep.subr.mxu0 0.0
        %2758 = vmatpush1.msra.mxu0 0.0
        %2759 = vmatprep.subr.mxu0 0.0
        %2760 = vmatpush1.msra.mxu0 0.0
        %2761 = vmatprep.subr.mxu0 0.0
        %2762 = vmatpush1.msra.mxu0 0.0
        %2763 = vmatprep.subr.mxu0 0.0
        %2764 = vmatpush1.msra.mxu0 0.0
        %2765 = vmatprep.subr.mxu0 0.0
        %2766 = vmatpush1.msra.mxu0 0.0
        %2767 = vmatprep.subr.mxu0 0.0
        %2768 = vmatpush1.msra.mxu0 0.0
        %2769 = vmatprep.subr.mxu0 0.0
        %2770 = vmatpush1.msra.mxu0 0.0
        %2771 = vmatprep.mubr.f32.mxu0 0.0
        %2772 = vmatmul.mubr.f32.gmra.mrb[0].mxu0 %v2658
        %v2773 = vpop.f32.mrb[0].mxu0
        %v2774 = vadd.f32 0.0, %v2773
        %v2775 = vpop.f32.mrb[0].mxu0
        %2776 = vmatprep.mubr.f32.mxu0 0.0
        %2777 = vmatmul.mubr.f32.gmra.mrb[0].mxu0 %v2659
        %v2778 = vpop.f32.mrb[0].mxu0
        %v2779 = vadd.f32 0.0, %v2778
        %v2780 = vpop.f32.mrb[0].mxu0
        %2781 = vmatprep.mubr.f32.mxu0 0.0
        %2782 = vmatmul.mubr.f32.gmra.mrb[0].mxu0 %v2660
        %v2783 = vpop.f32.mrb[0].mxu0
        %v2784 = vadd.f32 0.0, %v2783
        %v2785 = vpop.f32.mrb[0].mxu0
        %2786 = vmatprep.mubr.f32.mxu0 0.0
        %2787 = vmatmul.mubr.f32.gmra.mrb[0].mxu0 %v2661
        %v2788 = vpop.f32.mrb[0].mxu0
        %v2789 = vadd.f32 0.0, %v2788
        %v2790 = vpop.f32.mrb[0].mxu0
        %2791 = vmatprep.mubr.f32.mxu0 0.0
        %2792 = vmatmul.mubr.f32.gmra.mrb[0].mxu0 %v2662
        %v2793 = vpop.f32.mrb[0].mxu0
        %v2794 = vadd.f32 0.0, %v2793
        %v2795 = vpop.f32.mrb[0].mxu0
        %2796 = vmatprep.mubr.f32.mxu0 0.0
        %2797 = vmatmul.mubr.f32.gmra.mrb[0].mxu0 %v2663
        %v2798 = vpop.f32.mrb[0].mxu0
        %v2799 = vadd.f32 0.0, %v2798
        %v2800 = vpop.f32.mrb[0].mxu0
        %2801 = vmatprep.mubr.f32.mxu0 0.0
        %2802 = vmatmul.mubr.f32.gmra.mrb[0].mxu0 %v2664
        %v2803 = vpop.f32.mrb[0].mxu0
        %v2804 = vadd.f32 0.0, %v2803
        %v2805 = vpop.f32.mrb[0].mxu0
        %2806 = vmatprep.mubr.f32.mxu0 0.0
        %2807 = vmatmul.mubr.f32.gmra.mrb[0].mxu0 %v2665
        %v2808 = vpop.f32.mrb[0].mxu0
        %v2809 = vadd.f32 0.0, %v2808
        %v2810 = vpop.f32.mrb[0].mxu0
        %2811 = vmatprep.mubr.f32.mxu0 0.0
        %2812 = vmatmul.mubr.f32.gmra.mrb[0].mxu0 %v2666
        %v2813 = vpop.f32.mrb[0].mxu0
        %v2814 = vadd.f32 0.0, %v2813
        %v2815 = vpop.f32.mrb[0].mxu0
        %2816 = vmatprep.mubr.f32.mxu0 0.0
        %2817 = vmatmul.mubr.f32.gmra.mrb[0].mxu0 %v2667
        %v2818 = vpop.f32.mrb[0].mxu0
        %v2819 = vadd.f32 0.0, %v2818
        %v2820 = vpop.f32.mrb[0].mxu0
        %2821 = vmatprep.mubr.f32.mxu0 0.0
        %2822 = vmatmul.mubr.f32.gmra.mrb[0].mxu0 %v2668
        %v2823 = vpop.f32.mrb[0].mxu0
        %v2824 = vadd.f32 0.0, %v2823
        %v2825 = vpop.f32.mrb[0].mxu0
        %2826 = vmatprep.mubr.f32.mxu0 0.0
        %2827 = vmatmul.mubr.f32.gmra.mrb[0].mxu0 %v2669
        %v2828 = vpop.f32.mrb[0].mxu0
        %v2829 = vadd.f32 0.0, %v2828
        %v2830 = vpop.f32.mrb[0].mxu0
        %2831 = vmatprep.mubr.f32.mxu0 0.0
        %2832 = vmatmul.mubr.f32.gmra.mrb[0].mxu0 %v2670
        %v2833 = vpop.f32.mrb[0].mxu0
        %v2834 = vadd.f32 0.0, %v2833
        %v2835 = vpop.f32.mrb[0].mxu0
        %2836 = vmatprep.mubr.f32.mxu0 0.0
        %2837 = vmatmul.mubr.f32.gmra.mrb[0].mxu0 %v2671
        %v2838 = vpop.f32.mrb[0].mxu0
        %v2839 = vadd.f32 0.0, %v2838
        %v2840 = vpop.f32.mrb[0].mxu0
        %2841 = vmatprep.mubr.f32.mxu0 0.0
        %2842 = vmatmul.mubr.f32.gmra.mrb[0].mxu0 %v2672
        %v2843 = vpop.f32.mrb[0].mxu0
        %v2844 = vadd.f32 0.0, %v2843
        %v2845 = vpop.f32.mrb[0].mxu0
        %2846 = vmatprep.mubr.f32.mxu0 0.0
        %2847 = vmatmul.mubr.f32.gmra.mrb[0].mxu0 %v2673
        %v2848 = vpop.f32.mrb[0].mxu0
        %v2849 = vadd.f32 0.0, %v2848
        %v2850 = vpop.f32.mrb[0].mxu0
        %2851 = vmatprep.mubr.f32.mxu0 0.0
        %2852 = vmatmul.mubr.f32.gmra.mrb[0].mxu0 %v2674
        %v2853 = vpop.f32.mrb[0].mxu0
        %v2854 = vadd.f32 0.0, %v2853
        %v2855 = vpop.f32.mrb[0].mxu0
        %2856 = vmatprep.mubr.f32.mxu0 0.0
        %2857 = vmatmul.mubr.f32.gmra.mrb[0].mxu0 %v2675
        %v2858 = vpop.f32.mrb[0].mxu0
        %v2859 = vadd.f32 0.0, %v2858
        %v2860 = vpop.f32.mrb[0].mxu0
        %2861 = vmatprep.mubr.f32.mxu0 0.0
        %2862 = vmatmul.mubr.f32.gmra.mrb[0].mxu0 %v2676
        %v2863 = vpop.f32.mrb[0].mxu0
        %v2864 = vadd.f32 0.0, %v2863
        %v2865 = vpop.f32.mrb[0].mxu0
        %2866 = vmatprep.mubr.f32.mxu0 0.0
        %2867 = vmatmul.mubr.f32.gmra.mrb[0].mxu0 %v2677
        %v2868 = vpop.f32.mrb[0].mxu0
        %v2869 = vadd.f32 0.0, %v2868
        %v2870 = vpop.f32.mrb[0].mxu0
        %2871 = vmatprep.mubr.f32.mxu0 0.0
        %2872 = vmatmul.mubr.f32.gmra.mrb[0].mxu0 %v2678
        %v2873 = vpop.f32.mrb[0].mxu0
        %v2874 = vadd.f32 0.0, %v2873
        %v2875 = vpop.f32.mrb[0].mxu0
        %2876 = vmatprep.mubr.f32.mxu0 0.0
        %2877 = vmatmul.mubr.f32.gmra.mrb[0].mxu0 %v2679
        %v2878 = vpop.f32.mrb[0].mxu0
        %v2879 = vadd.f32 0.0, %v2878
        %v2880 = vpop.f32.mrb[0].mxu0
        %2881 = vmatprep.mubr.f32.mxu0 0.0
        %2882 = vmatmul.mubr.f32.gmra.mrb[0].mxu0 %v2680
        %v2883 = vpop.f32.mrb[0].mxu0
        %v2884 = vadd.f32 0.0, %v2883
        %v2885 = vpop.f32.mrb[0].mxu0
        %2886 = vmatprep.mubr.f32.mxu0 0.0
        %2887 = vmatmul.mubr.f32.gmra.mrb[0].mxu0 %v2681
        %v2888 = vpop.f32.mrb[0].mxu0
        %v2889 = vadd.f32 0.0, %v2888
        %v2890 = vpop.f32.mrb[0].mxu0
        %2891 = vmatprep.mubr.f32.mxu0 0.0
        %2892 = vmatmul.mubr.f32.gmra.mrb[0].mxu0 %v2682
        %v2893 = vpop.f32.mrb[0].mxu0
        %v2894 = vadd.f32 0.0, %v2893
        %v2895 = vpop.f32.mrb[0].mxu0
        %2896 = vmatprep.mubr.f32.mxu0 0.0
        %2897 = vmatmul.mubr.f32.gmra.mrb[0].mxu0 %v2683
        %v2898 = vpop.f32.mrb[0].mxu0
        %v2899 = vadd.f32 0.0, %v2898
        %v2900 = vpop.f32.mrb[0].mxu0
        %2901 = vmatprep.mubr.f32.mxu0 0.0
        %2902 = vmatmul.mubr.f32.gmra.mrb[0].mxu0 %v2684
        %v2903 = vpop.f32.mrb[0].mxu0
        %v2904 = vadd.f32 0.0, %v2903
        %v2905 = vpop.f32.mrb[0].mxu0
        %2906 = vmatprep.mubr.f32.mxu0 0.0
        %2907 = vmatmul.mubr.f32.gmra.mrb[0].mxu0 %v2685
        %v2908 = vpop.f32.mrb[0].mxu0
        %v2909 = vadd.f32 0.0, %v2908
        %v2910 = vpop.f32.mrb[0].mxu0
        %2911 = vmatprep.mubr.f32.mxu0 0.0
        %2912 = vmatmul.mubr.f32.gmra.mrb[0].mxu0 %v2686
        %v2913 = vpop.f32.mrb[0].mxu0
        %v2914 = vadd.f32 0.0, %v2913
        %v2915 = vpop.f32.mrb[0].mxu0
        %2916 = vmatprep.mubr.f32.mxu0 0.0
        %2917 = vmatmul.mubr.f32.gmra.mrb[0].mxu0 %v2687
        %v2918 = vpop.f32.mrb[0].mxu0
        %v2919 = vadd.f32 0.0, %v2918
        %v2920 = vpop.f32.mrb[0].mxu0
        %2921 = vmatprep.mubr.f32.mxu0 0.0
        %2922 = vmatmul.mubr.f32.gmra.mrb[0].mxu0 %v2688
        %v2923 = vpop.f32.mrb[0].mxu0
        %v2924 = vadd.f32 0.0, %v2923
        %v2925 = vpop.f32.mrb[0].mxu0
        %2926 = vmatprep.mubr.f32.mxu0 0.0
        %2927 = vmatmul.mubr.f32.gmra.mrb[0].mxu0 %v2689
        %v2928 = vpop.f32.mrb[0].mxu0
        %v2929 = vadd.f32 0.0, %v2928
        %v2930 = vpop.f32.mrb[0].mxu0
        %2931 = vdwg.mxu0
        %v2932 = vadd.f32 %v2626, %v2774
        %v2933 = vadd.f32 %v2627, %v2779
        %v2934 = vadd.f32 %v2628, %v2784
        %v2935 = vadd.f32 %v2629, %v2789
        %v2936 = vadd.f32 %v2630, %v2794
        %v2937 = vadd.f32 %v2631, %v2799
        %v2938 = vadd.f32 %v2632, %v2804
        %v2939 = vadd.f32 %v2633, %v2809
        %v2940 = vadd.f32 %v2634, %v2814
        %v2941 = vadd.f32 %v2635, %v2819
        %v2942 = vadd.f32 %v2636, %v2824
        %v2943 = vadd.f32 %v2637, %v2829
        %v2944 = vadd.f32 %v2638, %v2834
        %v2945 = vadd.f32 %v2639, %v2839
        %v2946 = vadd.f32 %v2640, %v2844
        %v2947 = vadd.f32 %v2641, %v2849
        %v2948 = vadd.f32 %v2642, %v2854
        %v2949 = vadd.f32 %v2643, %v2859
        %v2950 = vadd.f32 %v2644, %v2864
        %v2951 = vadd.f32 %v2645, %v2869
        %v2952 = vadd.f32 %v2646, %v2874
        %v2953 = vadd.f32 %v2647, %v2879
        %v2954 = vadd.f32 %v2648, %v2884
        %v2955 = vadd.f32 %v2649, %v2889
        %v2956 = vadd.f32 %v2650, %v2894
        %v2957 = vadd.f32 %v2651, %v2899
        %v2958 = vadd.f32 %v2652, %v2904
        %v2959 = vadd.f32 %v2653, %v2909
        %v2960 = vadd.f32 %v2654, %v2914
        %v2961 = vadd.f32 %v2655, %v2919
        %v2962 = vadd.f32 %v2656, %v2924
        %v2963 = vadd.f32 %v2657, %v2929
        %2964 = vst [vmem:[#allocation3] sm:$0xff] %v2932
        %2965 = vst [vmem:[#allocation3 + $0x8] sm:$0xff] %v2933
        %2966 = vst [vmem:[#allocation3 + $0x10] sm:$0xff] %v2934
        %2967 = vst [vmem:[#allocation3 + $0x18] sm:$0xff] %v2935
        %2968 = vst [vmem:[#allocation3 + $0x20] sm:$0xff] %v2936
        %2969 = vst [vmem:[#allocation3 + $0x28] sm:$0xff] %v2937
        %2970 = vst [vmem:[#allocation3 + $0x30] sm:$0xff] %v2938
        %2971 = vst [vmem:[#allocation3 + $0x38] sm:$0xff] %v2939
        %2972 = vst [vmem:[#allocation3 + $0x40] sm:$0xff] %v2940
        %2973 = vst [vmem:[#allocation3 + $0x48] sm:$0xff] %v2941
        %2974 = vst [vmem:[#allocation3 + $0x50] sm:$0xff] %v2942
        %2975 = vst [vmem:[#allocation3 + $0x58] sm:$0xff] %v2943
        %2976 = vst [vmem:[#allocation3 + $0x60] sm:$0xff] %v2944
        %2977 = vst [vmem:[#allocation3 + $0x68] sm:$0xff] %v2945
        %2978 = vst [vmem:[#allocation3 + $0x70] sm:$0xff] %v2946
        %2979 = vst [vmem:[#allocation3 + $0x78] sm:$0xff] %v2947
        %2980 = vst [vmem:[#allocation3 + $0x80] sm:$0xff] %v2948
        %2981 = vst [vmem:[#allocation3 + $0x88] sm:$0xff] %v2949
        %2982 = vst [vmem:[#allocation3 + $0x90] sm:$0xff] %v2950
        %2983 = vst [vmem:[#allocation3 + $0x98] sm:$0xff] %v2951
        %2984 = vst [vmem:[#allocation3 + $0xa0] sm:$0xff] %v2952
        %2985 = vst [vmem:[#allocation3 + $0xa8] sm:$0xff] %v2953
        %2986 = vst [vmem:[#allocation3 + $0xb0] sm:$0xff] %v2954
        %2987 = vst [vmem:[#allocation3 + $0xb8] sm:$0xff] %v2955
        %2988 = vst [vmem:[#allocation3 + $0xc0] sm:$0xff] %v2956
        %2989 = vst [vmem:[#allocation3 + $0xc8] sm:$0xff] %v2957
        %2990 = vst [vmem:[#allocation3 + $0xd0] sm:$0xff] %v2958
        %2991 = vst [vmem:[#allocation3 + $0xd8] sm:$0xff] %v2959
        %2992 = vst [vmem:[#allocation3 + $0xe0] sm:$0xff] %v2960
        %2993 = vst [vmem:[#allocation3 + $0xe8] sm:$0xff] %v2961
        %2994 = vst [vmem:[#allocation3 + $0xf0] sm:$0xff] %v2962
        %2995 = vst [vmem:[#allocation3 + $0xf8] sm:$0xff] %v2963
        %v2996 = vld [vmem:[#allocation3] sm:$0xff]
        %v2997 = vld [vmem:[#allocation3 + $0x8] sm:$0xff]
        %v2998 = vld [vmem:[#allocation3 + $0x10] sm:$0xff]
        %v2999 = vld [vmem:[#allocation3 + $0x18] sm:$0xff]
        %v3000 = vld [vmem:[#allocation3 + $0x20] sm:$0xff]
        %v3001 = vld [vmem:[#allocation3 + $0x28] sm:$0xff]
        %v3002 = vld [vmem:[#allocation3 + $0x30] sm:$0xff]
        %v3003 = vld [vmem:[#allocation3 + $0x38] sm:$0xff]
        %v3004 = vld [vmem:[#allocation3 + $0x40] sm:$0xff]
        %v3005 = vld [vmem:[#allocation3 + $0x48] sm:$0xff]
        %v3006 = vld [vmem:[#allocation3 + $0x50] sm:$0xff]
        %v3007 = vld [vmem:[#allocation3 + $0x58] sm:$0xff]
        %v3008 = vld [vmem:[#allocation3 + $0x60] sm:$0xff]
        %v3009 = vld [vmem:[#allocation3 + $0x68] sm:$0xff]
        %v3010 = vld [vmem:[#allocation3 + $0x70] sm:$0xff]
        %v3011 = vld [vmem:[#allocation3 + $0x78] sm:$0xff]
        %v3012 = vld [vmem:[#allocation3 + $0x80] sm:$0xff]
        %v3013 = vld [vmem:[#allocation3 + $0x88] sm:$0xff]
        %v3014 = vld [vmem:[#allocation3 + $0x90] sm:$0xff]
        %v3015 = vld [vmem:[#allocation3 + $0x98] sm:$0xff]
        %v3016 = vld [vmem:[#allocation3 + $0xa0] sm:$0xff]
        %v3017 = vld [vmem:[#allocation3 + $0xa8] sm:$0xff]
        %v3018 = vld [vmem:[#allocation3 + $0xb0] sm:$0xff]
        %v3019 = vld [vmem:[#allocation3 + $0xb8] sm:$0xff]
        %v3020 = vld [vmem:[#allocation3 + $0xc0] sm:$0xff]
        %v3021 = vld [vmem:[#allocation3 + $0xc8] sm:$0xff]
        %v3022 = vld [vmem:[#allocation3 + $0xd0] sm:$0xff]
        %v3023 = vld [vmem:[#allocation3 + $0xd8] sm:$0xff]
        %v3024 = vld [vmem:[#allocation3 + $0xe0] sm:$0xff]
        %v3025 = vld [vmem:[#allocation3 + $0xe8] sm:$0xff]
        %v3026 = vld [vmem:[#allocation3 + $0xf0] sm:$0xff]
        %v3027 = vld [vmem:[#allocation3 + $0xf8] sm:$0xff]
        %s3028 = scalar_lea.vmem [#allocation2], 48
        %v3029 = vld [vmem:[%s3028] sm:$0xff]
        %v3030 = vld [vmem:[%s3028 + $0x8] sm:$0xff]
        %v3031 = vld [vmem:[%s3028 + $0x18] sm:$0xff]
        %v3032 = vld [vmem:[%s3028 + $0x20] sm:$0xff]
        %v3033 = vld [vmem:[%s3028 + $0x30] sm:$0xff]
        %v3034 = vld [vmem:[%s3028 + $0x38] sm:$0xff]
        %v3035 = vld [vmem:[%s3028 + $0x48] sm:$0xff]
        %v3036 = vld [vmem:[%s3028 + $0x50] sm:$0xff]
        %v3037 = vld [vmem:[%s3028 + $0x60] sm:$0xff]
        %v3038 = vld [vmem:[%s3028 + $0x68] sm:$0xff]
        %v3039 = vld [vmem:[%s3028 + $0x78] sm:$0xff]
        %v3040 = vld [vmem:[%s3028 + $0x80] sm:$0xff]
        %v3041 = vld [vmem:[%s3028 + $0x90] sm:$0xff]
        %v3042 = vld [vmem:[%s3028 + $0x98] sm:$0xff]
        %v3043 = vld [vmem:[%s3028 + $0xa8] sm:$0xff]
        %v3044 = vld [vmem:[%s3028 + $0xb0] sm:$0xff]
        %v3045 = vld [vmem:[%s3028 + $0xc0] sm:$0xff]
        %v3046 = vld [vmem:[%s3028 + $0xc8] sm:$0xff]
        %v3047 = vld [vmem:[%s3028 + $0xd8] sm:$0xff]
        %v3048 = vld [vmem:[%s3028 + $0xe0] sm:$0xff]
        %v3049 = vld [vmem:[%s3028 + $0xf0] sm:$0xff]
        %v3050 = vld [vmem:[%s3028 + $0xf8] sm:$0xff]
        %v3051 = vld [vmem:[%s3028 + $0x108] sm:$0xff]
        %v3052 = vld [vmem:[%s3028 + $0x110] sm:$0xff]
        %v3053 = vld [vmem:[%s3028 + $0x120] sm:$0xff]
        %v3054 = vld [vmem:[%s3028 + $0x128] sm:$0xff]
        %v3055 = vld [vmem:[%s3028 + $0x138] sm:$0xff]
        %v3056 = vld [vmem:[%s3028 + $0x140] sm:$0xff]
        %v3057 = vld [vmem:[%s3028 + $0x150] sm:$0xff]
        %v3058 = vld [vmem:[%s3028 + $0x158] sm:$0xff]
        %v3059 = vld [vmem:[%s3028 + $0x168] sm:$0xff]
        %v3060 = vld [vmem:[%s3028 + $0x170] sm:$0xff]
        %s3061 = scalar_lea.vmem [#allocation4], 768
        %v3062 = vld [vmem:[%s3061] sm:$0xff]
        %v3063 = vld [vmem:[%s3061 + $0x8] sm:$0xff]
        %v3064 = vld [vmem:[%s3061 + $0x10] sm:$0xff]
        %v3065 = vld [vmem:[%s3061 + $0x18] sm:$0xff]
        %v3066 = vld [vmem:[%s3061 + $0x20] sm:$0xff]
        %v3067 = vld [vmem:[%s3061 + $0x28] sm:$0xff]
        %v3068 = vld [vmem:[%s3061 + $0x30] sm:$0xff]
        %v3069 = vld [vmem:[%s3061 + $0x38] sm:$0xff]
        %v3070 = vld [vmem:[%s3061 + $0x40] sm:$0xff]
        %v3071 = vld [vmem:[%s3061 + $0x48] sm:$0xff]
        %v3072 = vld [vmem:[%s3061 + $0x50] sm:$0xff]
        %v3073 = vld [vmem:[%s3061 + $0x58] sm:$0xff]
        %v3074 = vld [vmem:[%s3061 + $0x60] sm:$0xff]
        %v3075 = vld [vmem:[%s3061 + $0x68] sm:$0xff]
        %v3076 = vld [vmem:[%s3061 + $0x70] sm:$0xff]
        %v3077 = vld [vmem:[%s3061 + $0x78] sm:$0xff]
        %3078 = vmatprep.subr.mxu0 0.0
        %3079 = vmatpush1.msra.mxu0 %v3062
        %3080 = vmatprep.subr.mxu0 0.0
        %3081 = vmatpush1.msra.mxu0 %v3063
        %3082 = vmatprep.subr.mxu0 0.0
        %3083 = vmatpush1.msra.mxu0 %v3064
        %3084 = vmatprep.subr.mxu0 0.0
        %3085 = vmatpush1.msra.mxu0 %v3065
        %3086 = vmatprep.subr.mxu0 0.0
        %3087 = vmatpush1.msra.mxu0 %v3066
        %3088 = vmatprep.subr.mxu0 0.0
        %3089 = vmatpush1.msra.mxu0 %v3067
        %3090 = vmatprep.subr.mxu0 0.0
        %3091 = vmatpush1.msra.mxu0 %v3068
        %3092 = vmatprep.subr.mxu0 0.0
        %3093 = vmatpush1.msra.mxu0 %v3069
        %3094 = vmatprep.subr.mxu0 0.0
        %3095 = vmatpush1.msra.mxu0 %v3070
        %3096 = vmatprep.subr.mxu0 0.0
        %3097 = vmatpush1.msra.mxu0 %v3071
        %3098 = vmatprep.subr.mxu0 0.0
        %3099 = vmatpush1.msra.mxu0 %v3072
        %3100 = vmatprep.subr.mxu0 0.0
        %3101 = vmatpush1.msra.mxu0 %v3073
        %3102 = vmatprep.subr.mxu0 0.0
        %3103 = vmatpush1.msra.mxu0 %v3074
        %3104 = vmatprep.subr.mxu0 0.0
        %3105 = vmatpush1.msra.mxu0 %v3075
        %3106 = vmatprep.subr.mxu0 0.0
        %3107 = vmatpush1.msra.mxu0 %v3076
        %3108 = vmatprep.subr.mxu0 0.0
        %3109 = vmatpush1.msra.mxu0 %v3077
        %3110 = vmatprep.subr.mxu0 0.0
        %3111 = vmatpush1.msra.mxu0 0.0
        %3112 = vmatprep.subr.mxu0 0.0
        %3113 = vmatpush1.msra.mxu0 0.0
        %3114 = vmatprep.subr.mxu0 0.0
        %3115 = vmatpush1.msra.mxu0 0.0
        %3116 = vmatprep.subr.mxu0 0.0
        %3117 = vmatpush1.msra.mxu0 0.0
        %3118 = vmatprep.subr.mxu0 0.0
        %3119 = vmatpush1.msra.mxu0 0.0
        %3120 = vmatprep.subr.mxu0 0.0
        %3121 = vmatpush1.msra.mxu0 0.0
        %3122 = vmatprep.subr.mxu0 0.0
        %3123 = vmatpush1.msra.mxu0 0.0
        %3124 = vmatprep.subr.mxu0 0.0
        %3125 = vmatpush1.msra.mxu0 0.0
        %3126 = vmatprep.subr.mxu0 0.0
        %3127 = vmatpush1.msra.mxu0 0.0
        %3128 = vmatprep.subr.mxu0 0.0
        %3129 = vmatpush1.msra.mxu0 0.0
        %3130 = vmatprep.subr.mxu0 0.0
        %3131 = vmatpush1.msra.mxu0 0.0
        %3132 = vmatprep.subr.mxu0 0.0
        %3133 = vmatpush1.msra.mxu0 0.0
        %3134 = vmatprep.subr.mxu0 0.0
        %3135 = vmatpush1.msra.mxu0 0.0
        %3136 = vmatprep.subr.mxu0 0.0
        %3137 = vmatpush1.msra.mxu0 0.0
        %3138 = vmatprep.subr.mxu0 0.0
        %3139 = vmatpush1.msra.mxu0 0.0
        %3140 = vmatprep.subr.mxu0 0.0
        %3141 = vmatpush1.msra.mxu0 0.0
        %3142 = vmatprep.mubr.f32.mxu0 0.0
        %3143 = vmatmul.mubr.f32.gmra.mrb[0].mxu0 %v3029
        %v3144 = vpop.f32.mrb[0].mxu0
        %v3145 = vadd.f32 0.0, %v3144
        %v3146 = vpop.f32.mrb[0].mxu0
        %3147 = vmatprep.mubr.f32.mxu0 0.0
        %3148 = vmatmul.mubr.f32.gmra.mrb[0].mxu0 %v3030
        %v3149 = vpop.f32.mrb[0].mxu0
        %v3150 = vadd.f32 0.0, %v3149
        %v3151 = vpop.f32.mrb[0].mxu0
        %3152 = vmatprep.mubr.f32.mxu0 0.0
        %3153 = vmatmul.mubr.f32.gmra.mrb[0].mxu0 %v3031
        %v3154 = vpop.f32.mrb[0].mxu0
        %v3155 = vadd.f32 0.0, %v3154
        %v3156 = vpop.f32.mrb[0].mxu0
        %3157 = vmatprep.mubr.f32.mxu0 0.0
        %3158 = vmatmul.mubr.f32.gmra.mrb[0].mxu0 %v3032
        %v3159 = vpop.f32.mrb[0].mxu0
        %v3160 = vadd.f32 0.0, %v3159
        %v3161 = vpop.f32.mrb[0].mxu0
        %3162 = vmatprep.mubr.f32.mxu0 0.0
        %3163 = vmatmul.mubr.f32.gmra.mrb[0].mxu0 %v3033
        %v3164 = vpop.f32.mrb[0].mxu0
        %v3165 = vadd.f32 0.0, %v3164
        %v3166 = vpop.f32.mrb[0].mxu0
        %3167 = vmatprep.mubr.f32.mxu0 0.0
        %3168 = vmatmul.mubr.f32.gmra.mrb[0].mxu0 %v3034
        %v3169 = vpop.f32.mrb[0].mxu0
        %v3170 = vadd.f32 0.0, %v3169
        %v3171 = vpop.f32.mrb[0].mxu0
        %3172 = vmatprep.mubr.f32.mxu0 0.0
        %3173 = vmatmul.mubr.f32.gmra.mrb[0].mxu0 %v3035
        %v3174 = vpop.f32.mrb[0].mxu0
        %v3175 = vadd.f32 0.0, %v3174
        %v3176 = vpop.f32.mrb[0].mxu0
        %3177 = vmatprep.mubr.f32.mxu0 0.0
        %3178 = vmatmul.mubr.f32.gmra.mrb[0].mxu0 %v3036
        %v3179 = vpop.f32.mrb[0].mxu0
        %v3180 = vadd.f32 0.0, %v3179
        %v3181 = vpop.f32.mrb[0].mxu0
        %3182 = vmatprep.mubr.f32.mxu0 0.0
        %3183 = vmatmul.mubr.f32.gmra.mrb[0].mxu0 %v3037
        %v3184 = vpop.f32.mrb[0].mxu0
        %v3185 = vadd.f32 0.0, %v3184
        %v3186 = vpop.f32.mrb[0].mxu0
        %3187 = vmatprep.mubr.f32.mxu0 0.0
        %3188 = vmatmul.mubr.f32.gmra.mrb[0].mxu0 %v3038
        %v3189 = vpop.f32.mrb[0].mxu0
        %v3190 = vadd.f32 0.0, %v3189
        %v3191 = vpop.f32.mrb[0].mxu0
        %3192 = vmatprep.mubr.f32.mxu0 0.0
        %3193 = vmatmul.mubr.f32.gmra.mrb[0].mxu0 %v3039
        %v3194 = vpop.f32.mrb[0].mxu0
        %v3195 = vadd.f32 0.0, %v3194
        %v3196 = vpop.f32.mrb[0].mxu0
        %3197 = vmatprep.mubr.f32.mxu0 0.0
        %3198 = vmatmul.mubr.f32.gmra.mrb[0].mxu0 %v3040
        %v3199 = vpop.f32.mrb[0].mxu0
        %v3200 = vadd.f32 0.0, %v3199
        %v3201 = vpop.f32.mrb[0].mxu0
        %3202 = vmatprep.mubr.f32.mxu0 0.0
        %3203 = vmatmul.mubr.f32.gmra.mrb[0].mxu0 %v3041
        %v3204 = vpop.f32.mrb[0].mxu0
        %v3205 = vadd.f32 0.0, %v3204
        %v3206 = vpop.f32.mrb[0].mxu0
        %3207 = vmatprep.mubr.f32.mxu0 0.0
        %3208 = vmatmul.mubr.f32.gmra.mrb[0].mxu0 %v3042
        %v3209 = vpop.f32.mrb[0].mxu0
        %v3210 = vadd.f32 0.0, %v3209
        %v3211 = vpop.f32.mrb[0].mxu0
        %3212 = vmatprep.mubr.f32.mxu0 0.0
        %3213 = vmatmul.mubr.f32.gmra.mrb[0].mxu0 %v3043
        %v3214 = vpop.f32.mrb[0].mxu0
        %v3215 = vadd.f32 0.0, %v3214
        %v3216 = vpop.f32.mrb[0].mxu0
        %3217 = vmatprep.mubr.f32.mxu0 0.0
        %3218 = vmatmul.mubr.f32.gmra.mrb[0].mxu0 %v3044
        %v3219 = vpop.f32.mrb[0].mxu0
        %v3220 = vadd.f32 0.0, %v3219
        %v3221 = vpop.f32.mrb[0].mxu0
        %3222 = vmatprep.mubr.f32.mxu0 0.0
        %3223 = vmatmul.mubr.f32.gmra.mrb[0].mxu0 %v3045
        %v3224 = vpop.f32.mrb[0].mxu0
        %v3225 = vadd.f32 0.0, %v3224
        %v3226 = vpop.f32.mrb[0].mxu0
        %3227 = vmatprep.mubr.f32.mxu0 0.0
        %3228 = vmatmul.mubr.f32.gmra.mrb[0].mxu0 %v3046
        %v3229 = vpop.f32.mrb[0].mxu0
        %v3230 = vadd.f32 0.0, %v3229
        %v3231 = vpop.f32.mrb[0].mxu0
        %3232 = vmatprep.mubr.f32.mxu0 0.0
        %3233 = vmatmul.mubr.f32.gmra.mrb[0].mxu0 %v3047
        %v3234 = vpop.f32.mrb[0].mxu0
        %v3235 = vadd.f32 0.0, %v3234
        %v3236 = vpop.f32.mrb[0].mxu0
        %3237 = vmatprep.mubr.f32.mxu0 0.0
        %3238 = vmatmul.mubr.f32.gmra.mrb[0].mxu0 %v3048
        %v3239 = vpop.f32.mrb[0].mxu0
        %v3240 = vadd.f32 0.0, %v3239
        %v3241 = vpop.f32.mrb[0].mxu0
        %3242 = vmatprep.mubr.f32.mxu0 0.0
        %3243 = vmatmul.mubr.f32.gmra.mrb[0].mxu0 %v3049
        %v3244 = vpop.f32.mrb[0].mxu0
        %v3245 = vadd.f32 0.0, %v3244
        %v3246 = vpop.f32.mrb[0].mxu0
        %3247 = vmatprep.mubr.f32.mxu0 0.0
        %3248 = vmatmul.mubr.f32.gmra.mrb[0].mxu0 %v3050
        %v3249 = vpop.f32.mrb[0].mxu0
        %v3250 = vadd.f32 0.0, %v3249
        %v3251 = vpop.f32.mrb[0].mxu0
        %3252 = vmatprep.mubr.f32.mxu0 0.0
        %3253 = vmatmul.mubr.f32.gmra.mrb[0].mxu0 %v3051
        %v3254 = vpop.f32.mrb[0].mxu0
        %v3255 = vadd.f32 0.0, %v3254
        %v3256 = vpop.f32.mrb[0].mxu0
        %3257 = vmatprep.mubr.f32.mxu0 0.0
        %3258 = vmatmul.mubr.f32.gmra.mrb[0].mxu0 %v3052
        %v3259 = vpop.f32.mrb[0].mxu0
        %v3260 = vadd.f32 0.0, %v3259
        %v3261 = vpop.f32.mrb[0].mxu0
        %3262 = vmatprep.mubr.f32.mxu0 0.0
        %3263 = vmatmul.mubr.f32.gmra.mrb[0].mxu0 %v3053
        %v3264 = vpop.f32.mrb[0].mxu0
        %v3265 = vadd.f32 0.0, %v3264
        %v3266 = vpop.f32.mrb[0].mxu0
        %3267 = vmatprep.mubr.f32.mxu0 0.0
        %3268 = vmatmul.mubr.f32.gmra.mrb[0].mxu0 %v3054
        %v3269 = vpop.f32.mrb[0].mxu0
        %v3270 = vadd.f32 0.0, %v3269
        %v3271 = vpop.f32.mrb[0].mxu0
        %3272 = vmatprep.mubr.f32.mxu0 0.0
        %3273 = vmatmul.mubr.f32.gmra.mrb[0].mxu0 %v3055
        %v3274 = vpop.f32.mrb[0].mxu0
        %v3275 = vadd.f32 0.0, %v3274
        %v3276 = vpop.f32.mrb[0].mxu0
        %3277 = vmatprep.mubr.f32.mxu0 0.0
        %3278 = vmatmul.mubr.f32.gmra.mrb[0].mxu0 %v3056
        %v3279 = vpop.f32.mrb[0].mxu0
        %v3280 = vadd.f32 0.0, %v3279
        %v3281 = vpop.f32.mrb[0].mxu0
        %3282 = vmatprep.mubr.f32.mxu0 0.0
        %3283 = vmatmul.mubr.f32.gmra.mrb[0].mxu0 %v3057
        %v3284 = vpop.f32.mrb[0].mxu0
        %v3285 = vadd.f32 0.0, %v3284
        %v3286 = vpop.f32.mrb[0].mxu0
        %3287 = vmatprep.mubr.f32.mxu0 0.0
        %3288 = vmatmul.mubr.f32.gmra.mrb[0].mxu0 %v3058
        %v3289 = vpop.f32.mrb[0].mxu0
        %v3290 = vadd.f32 0.0, %v3289
        %v3291 = vpop.f32.mrb[0].mxu0
        %3292 = vmatprep.mubr.f32.mxu0 0.0
        %3293 = vmatmul.mubr.f32.gmra.mrb[0].mxu0 %v3059
        %v3294 = vpop.f32.mrb[0].mxu0
        %v3295 = vadd.f32 0.0, %v3294
        %v3296 = vpop.f32.mrb[0].mxu0
        %3297 = vmatprep.mubr.f32.mxu0 0.0
        %3298 = vmatmul.mubr.f32.gmra.mrb[0].mxu0 %v3060
        %v3299 = vpop.f32.mrb[0].mxu0
        %v3300 = vadd.f32 0.0, %v3299
        %v3301 = vpop.f32.mrb[0].mxu0
        %3302 = vdwg.mxu0
        %v3303 = vadd.f32 %v2996, %v3145
        %v3304 = vadd.f32 %v2997, %v3150
        %v3305 = vadd.f32 %v2998, %v3155
        %v3306 = vadd.f32 %v2999, %v3160
        %v3307 = vadd.f32 %v3000, %v3165
        %v3308 = vadd.f32 %v3001, %v3170
        %v3309 = vadd.f32 %v3002, %v3175
        %v3310 = vadd.f32 %v3003, %v3180
        %v3311 = vadd.f32 %v3004, %v3185
        %v3312 = vadd.f32 %v3005, %v3190
        %v3313 = vadd.f32 %v3006, %v3195
        %v3314 = vadd.f32 %v3007, %v3200
        %v3315 = vadd.f32 %v3008, %v3205
        %v3316 = vadd.f32 %v3009, %v3210
        %v3317 = vadd.f32 %v3010, %v3215
        %v3318 = vadd.f32 %v3011, %v3220
        %v3319 = vadd.f32 %v3012, %v3225
        %v3320 = vadd.f32 %v3013, %v3230
        %v3321 = vadd.f32 %v3014, %v3235
        %v3322 = vadd.f32 %v3015, %v3240
        %v3323 = vadd.f32 %v3016, %v3245
        %v3324 = vadd.f32 %v3017, %v3250
        %v3325 = vadd.f32 %v3018, %v3255
        %v3326 = vadd.f32 %v3019, %v3260
        %v3327 = vadd.f32 %v3020, %v3265
        %v3328 = vadd.f32 %v3021, %v3270
        %v3329 = vadd.f32 %v3022, %v3275
        %v3330 = vadd.f32 %v3023, %v3280
        %v3331 = vadd.f32 %v3024, %v3285
        %v3332 = vadd.f32 %v3025, %v3290
        %v3333 = vadd.f32 %v3026, %v3295
        %v3334 = vadd.f32 %v3027, %v3300
        %3335 = vst [vmem:[#allocation3] sm:$0xff] %v3303
        %3336 = vst [vmem:[#allocation3 + $0x8] sm:$0xff] %v3304
        %3337 = vst [vmem:[#allocation3 + $0x10] sm:$0xff] %v3305
        %3338 = vst [vmem:[#allocation3 + $0x18] sm:$0xff] %v3306
        %3339 = vst [vmem:[#allocation3 + $0x20] sm:$0xff] %v3307
        %3340 = vst [vmem:[#allocation3 + $0x28] sm:$0xff] %v3308
        %3341 = vst [vmem:[#allocation3 + $0x30] sm:$0xff] %v3309
        %3342 = vst [vmem:[#allocation3 + $0x38] sm:$0xff] %v3310
        %3343 = vst [vmem:[#allocation3 + $0x40] sm:$0xff] %v3311
        %3344 = vst [vmem:[#allocation3 + $0x48] sm:$0xff] %v3312
        %3345 = vst [vmem:[#allocation3 + $0x50] sm:$0xff] %v3313
        %3346 = vst [vmem:[#allocation3 + $0x58] sm:$0xff] %v3314
        %3347 = vst [vmem:[#allocation3 + $0x60] sm:$0xff] %v3315
        %3348 = vst [vmem:[#allocation3 + $0x68] sm:$0xff] %v3316
        %3349 = vst [vmem:[#allocation3 + $0x70] sm:$0xff] %v3317
        %3350 = vst [vmem:[#allocation3 + $0x78] sm:$0xff] %v3318
        %3351 = vst [vmem:[#allocation3 + $0x80] sm:$0xff] %v3319
        %3352 = vst [vmem:[#allocation3 + $0x88] sm:$0xff] %v3320
        %3353 = vst [vmem:[#allocation3 + $0x90] sm:$0xff] %v3321
        %3354 = vst [vmem:[#allocation3 + $0x98] sm:$0xff] %v3322
        %3355 = vst [vmem:[#allocation3 + $0xa0] sm:$0xff] %v3323
        %3356 = vst [vmem:[#allocation3 + $0xa8] sm:$0xff] %v3324
        %3357 = vst [vmem:[#allocation3 + $0xb0] sm:$0xff] %v3325
        %3358 = vst [vmem:[#allocation3 + $0xb8] sm:$0xff] %v3326
        %3359 = vst [vmem:[#allocation3 + $0xc0] sm:$0xff] %v3327
        %3360 = vst [vmem:[#allocation3 + $0xc8] sm:$0xff] %v3328
        %3361 = vst [vmem:[#allocation3 + $0xd0] sm:$0xff] %v3329
        %3362 = vst [vmem:[#allocation3 + $0xd8] sm:$0xff] %v3330
        %3363 = vst [vmem:[#allocation3 + $0xe0] sm:$0xff] %v3331
        %3364 = vst [vmem:[#allocation3 + $0xe8] sm:$0xff] %v3332
        %3365 = vst [vmem:[#allocation3 + $0xf0] sm:$0xff] %v3333
        %3366 = vst [vmem:[#allocation3 + $0xf8] sm:$0xff] %v3334
        %v3367 = vld [vmem:[#allocation3] sm:$0xff]
        %v3368 = vld [vmem:[#allocation3 + $0x8] sm:$0xff]
        %v3369 = vld [vmem:[#allocation3 + $0x10] sm:$0xff]
        %v3370 = vld [vmem:[#allocation3 + $0x18] sm:$0xff]
        %v3371 = vld [vmem:[#allocation3 + $0x20] sm:$0xff]
        %v3372 = vld [vmem:[#allocation3 + $0x28] sm:$0xff]
        %v3373 = vld [vmem:[#allocation3 + $0x30] sm:$0xff]
        %v3374 = vld [vmem:[#allocation3 + $0x38] sm:$0xff]
        %v3375 = vld [vmem:[#allocation3 + $0x40] sm:$0xff]
        %v3376 = vld [vmem:[#allocation3 + $0x48] sm:$0xff]
        %v3377 = vld [vmem:[#allocation3 + $0x50] sm:$0xff]
        %v3378 = vld [vmem:[#allocation3 + $0x58] sm:$0xff]
        %v3379 = vld [vmem:[#allocation3 + $0x60] sm:$0xff]
        %v3380 = vld [vmem:[#allocation3 + $0x68] sm:$0xff]
        %v3381 = vld [vmem:[#allocation3 + $0x70] sm:$0xff]
        %v3382 = vld [vmem:[#allocation3 + $0x78] sm:$0xff]
        %v3383 = vld [vmem:[#allocation3 + $0x80] sm:$0xff]
        %v3384 = vld [vmem:[#allocation3 + $0x88] sm:$0xff]
        %v3385 = vld [vmem:[#allocation3 + $0x90] sm:$0xff]
        %v3386 = vld [vmem:[#allocation3 + $0x98] sm:$0xff]
        %v3387 = vld [vmem:[#allocation3 + $0xa0] sm:$0xff]
        %v3388 = vld [vmem:[#allocation3 + $0xa8] sm:$0xff]
        %v3389 = vld [vmem:[#allocation3 + $0xb0] sm:$0xff]
        %v3390 = vld [vmem:[#allocation3 + $0xb8] sm:$0xff]
        %v3391 = vld [vmem:[#allocation3 + $0xc0] sm:$0xff]
        %v3392 = vld [vmem:[#allocation3 + $0xc8] sm:$0xff]
        %v3393 = vld [vmem:[#allocation3 + $0xd0] sm:$0xff]
        %v3394 = vld [vmem:[#allocation3 + $0xd8] sm:$0xff]
        %v3395 = vld [vmem:[#allocation3 + $0xe0] sm:$0xff]
        %v3396 = vld [vmem:[#allocation3 + $0xe8] sm:$0xff]
        %v3397 = vld [vmem:[#allocation3 + $0xf0] sm:$0xff]
        %v3398 = vld [vmem:[#allocation3 + $0xf8] sm:$0xff]
        %v3399 = vld [vmem:[%s3028 + $0x1] sm:$0xff]
        %v3400 = vld [vmem:[%s3028 + $0x9] sm:$0xff]
        %v3401 = vld [vmem:[%s3028 + $0x19] sm:$0xff]
        %v3402 = vld [vmem:[%s3028 + $0x21] sm:$0xff]
        %v3403 = vld [vmem:[%s3028 + $0x31] sm:$0xff]
        %v3404 = vld [vmem:[%s3028 + $0x39] sm:$0xff]
        %v3405 = vld [vmem:[%s3028 + $0x49] sm:$0xff]
        %v3406 = vld [vmem:[%s3028 + $0x51] sm:$0xff]
        %v3407 = vld [vmem:[%s3028 + $0x61] sm:$0xff]
        %v3408 = vld [vmem:[%s3028 + $0x69] sm:$0xff]
        %v3409 = vld [vmem:[%s3028 + $0x79] sm:$0xff]
        %v3410 = vld [vmem:[%s3028 + $0x81] sm:$0xff]
        %v3411 = vld [vmem:[%s3028 + $0x91] sm:$0xff]
        %v3412 = vld [vmem:[%s3028 + $0x99] sm:$0xff]
        %v3413 = vld [vmem:[%s3028 + $0xa9] sm:$0xff]
        %v3414 = vld [vmem:[%s3028 + $0xb1] sm:$0xff]
        %v3415 = vld [vmem:[%s3028 + $0xc1] sm:$0xff]
        %v3416 = vld [vmem:[%s3028 + $0xc9] sm:$0xff]
        %v3417 = vld [vmem:[%s3028 + $0xd9] sm:$0xff]
        %v3418 = vld [vmem:[%s3028 + $0xe1] sm:$0xff]
        %v3419 = vld [vmem:[%s3028 + $0xf1] sm:$0xff]
        %v3420 = vld [vmem:[%s3028 + $0xf9] sm:$0xff]
        %v3421 = vld [vmem:[%s3028 + $0x109] sm:$0xff]
        %v3422 = vld [vmem:[%s3028 + $0x111] sm:$0xff]
        %v3423 = vld [vmem:[%s3028 + $0x121] sm:$0xff]
        %v3424 = vld [vmem:[%s3028 + $0x129] sm:$0xff]
        %v3425 = vld [vmem:[%s3028 + $0x139] sm:$0xff]
        %v3426 = vld [vmem:[%s3028 + $0x141] sm:$0xff]
        %v3427 = vld [vmem:[%s3028 + $0x151] sm:$0xff]
        %v3428 = vld [vmem:[%s3028 + $0x159] sm:$0xff]
        %v3429 = vld [vmem:[%s3028 + $0x169] sm:$0xff]
        %v3430 = vld [vmem:[%s3028 + $0x171] sm:$0xff]
        %s3431 = scalar_lea.vmem [#allocation4], 896
        %v3432 = vld [vmem:[%s3431] sm:$0xff]
        %v3433 = vld [vmem:[%s3431 + $0x8] sm:$0xff]
        %v3434 = vld [vmem:[%s3431 + $0x10] sm:$0xff]
        %v3435 = vld [vmem:[%s3431 + $0x18] sm:$0xff]
        %v3436 = vld [vmem:[%s3431 + $0x20] sm:$0xff]
        %v3437 = vld [vmem:[%s3431 + $0x28] sm:$0xff]
        %v3438 = vld [vmem:[%s3431 + $0x30] sm:$0xff]
        %v3439 = vld [vmem:[%s3431 + $0x38] sm:$0xff]
        %v3440 = vld [vmem:[%s3431 + $0x40] sm:$0xff]
        %v3441 = vld [vmem:[%s3431 + $0x48] sm:$0xff]
        %v3442 = vld [vmem:[%s3431 + $0x50] sm:$0xff]
        %v3443 = vld [vmem:[%s3431 + $0x58] sm:$0xff]
        %v3444 = vld [vmem:[%s3431 + $0x60] sm:$0xff]
        %v3445 = vld [vmem:[%s3431 + $0x68] sm:$0xff]
        %v3446 = vld [vmem:[%s3431 + $0x70] sm:$0xff]
        %v3447 = vld [vmem:[%s3431 + $0x78] sm:$0xff]
        %3448 = vmatprep.subr.mxu0 0.0
        %3449 = vmatpush1.msra.mxu0 %v3432
        %3450 = vmatprep.subr.mxu0 0.0
        %3451 = vmatpush1.msra.mxu0 %v3433
        %3452 = vmatprep.subr.mxu0 0.0
        %3453 = vmatpush1.msra.mxu0 %v3434
        %3454 = vmatprep.subr.mxu0 0.0
        %3455 = vmatpush1.msra.mxu0 %v3435
        %3456 = vmatprep.subr.mxu0 0.0
        %3457 = vmatpush1.msra.mxu0 %v3436
        %3458 = vmatprep.subr.mxu0 0.0
        %3459 = vmatpush1.msra.mxu0 %v3437
        %3460 = vmatprep.subr.mxu0 0.0
        %3461 = vmatpush1.msra.mxu0 %v3438
        %3462 = vmatprep.subr.mxu0 0.0
        %3463 = vmatpush1.msra.mxu0 %v3439
        %3464 = vmatprep.subr.mxu0 0.0
        %3465 = vmatpush1.msra.mxu0 %v3440
        %3466 = vmatprep.subr.mxu0 0.0
        %3467 = vmatpush1.msra.mxu0 %v3441
        %3468 = vmatprep.subr.mxu0 0.0
        %3469 = vmatpush1.msra.mxu0 %v3442
        %3470 = vmatprep.subr.mxu0 0.0
        %3471 = vmatpush1.msra.mxu0 %v3443
        %3472 = vmatprep.subr.mxu0 0.0
        %3473 = vmatpush1.msra.mxu0 %v3444
        %3474 = vmatprep.subr.mxu0 0.0
        %3475 = vmatpush1.msra.mxu0 %v3445
        %3476 = vmatprep.subr.mxu0 0.0
        %3477 = vmatpush1.msra.mxu0 %v3446
        %3478 = vmatprep.subr.mxu0 0.0
        %3479 = vmatpush1.msra.mxu0 %v3447
        %3480 = vmatprep.subr.mxu0 0.0
        %3481 = vmatpush1.msra.mxu0 0.0
        %3482 = vmatprep.subr.mxu0 0.0
        %3483 = vmatpush1.msra.mxu0 0.0
        %3484 = vmatprep.subr.mxu0 0.0
        %3485 = vmatpush1.msra.mxu0 0.0
        %3486 = vmatprep.subr.mxu0 0.0
        %3487 = vmatpush1.msra.mxu0 0.0
        %3488 = vmatprep.subr.mxu0 0.0
        %3489 = vmatpush1.msra.mxu0 0.0
        %3490 = vmatprep.subr.mxu0 0.0
        %3491 = vmatpush1.msra.mxu0 0.0
        %3492 = vmatprep.subr.mxu0 0.0
        %3493 = vmatpush1.msra.mxu0 0.0
        %3494 = vmatprep.subr.mxu0 0.0
        %3495 = vmatpush1.msra.mxu0 0.0
        %3496 = vmatprep.subr.mxu0 0.0
        %3497 = vmatpush1.msra.mxu0 0.0
        %3498 = vmatprep.subr.mxu0 0.0
        %3499 = vmatpush1.msra.mxu0 0.0
        %3500 = vmatprep.subr.mxu0 0.0
        %3501 = vmatpush1.msra.mxu0 0.0
        %3502 = vmatprep.subr.mxu0 0.0
        %3503 = vmatpush1.msra.mxu0 0.0
        %3504 = vmatprep.subr.mxu0 0.0
        %3505 = vmatpush1.msra.mxu0 0.0
        %3506 = vmatprep.subr.mxu0 0.0
        %3507 = vmatpush1.msra.mxu0 0.0
        %3508 = vmatprep.subr.mxu0 0.0
        %3509 = vmatpush1.msra.mxu0 0.0
        %3510 = vmatprep.subr.mxu0 0.0
        %3511 = vmatpush1.msra.mxu0 0.0
        %3512 = vmatprep.mubr.f32.mxu0 0.0
        %3513 = vmatmul.mubr.f32.gmra.mrb[0].mxu0 %v3399
        %v3514 = vpop.f32.mrb[0].mxu0
        %v3515 = vadd.f32 0.0, %v3514
        %v3516 = vpop.f32.mrb[0].mxu0
        %3517 = vmatprep.mubr.f32.mxu0 0.0
        %3518 = vmatmul.mubr.f32.gmra.mrb[0].mxu0 %v3400
        %v3519 = vpop.f32.mrb[0].mxu0
        %v3520 = vadd.f32 0.0, %v3519
        %v3521 = vpop.f32.mrb[0].mxu0
        %3522 = vmatprep.mubr.f32.mxu0 0.0
        %3523 = vmatmul.mubr.f32.gmra.mrb[0].mxu0 %v3401
        %v3524 = vpop.f32.mrb[0].mxu0
        %v3525 = vadd.f32 0.0, %v3524
        %v3526 = vpop.f32.mrb[0].mxu0
        %3527 = vmatprep.mubr.f32.mxu0 0.0
        %3528 = vmatmul.mubr.f32.gmra.mrb[0].mxu0 %v3402
        %v3529 = vpop.f32.mrb[0].mxu0
        %v3530 = vadd.f32 0.0, %v3529
        %v3531 = vpop.f32.mrb[0].mxu0
        %3532 = vmatprep.mubr.f32.mxu0 0.0
        %3533 = vmatmul.mubr.f32.gmra.mrb[0].mxu0 %v3403
        %v3534 = vpop.f32.mrb[0].mxu0
        %v3535 = vadd.f32 0.0, %v3534
        %v3536 = vpop.f32.mrb[0].mxu0
        %3537 = vmatprep.mubr.f32.mxu0 0.0
        %3538 = vmatmul.mubr.f32.gmra.mrb[0].mxu0 %v3404
        %v3539 = vpop.f32.mrb[0].mxu0
        %v3540 = vadd.f32 0.0, %v3539
        %v3541 = vpop.f32.mrb[0].mxu0
        %3542 = vmatprep.mubr.f32.mxu0 0.0
        %3543 = vmatmul.mubr.f32.gmra.mrb[0].mxu0 %v3405
        %v3544 = vpop.f32.mrb[0].mxu0
        %v3545 = vadd.f32 0.0, %v3544
        %v3546 = vpop.f32.mrb[0].mxu0
        %3547 = vmatprep.mubr.f32.mxu0 0.0
        %3548 = vmatmul.mubr.f32.gmra.mrb[0].mxu0 %v3406
        %v3549 = vpop.f32.mrb[0].mxu0
        %v3550 = vadd.f32 0.0, %v3549
        %v3551 = vpop.f32.mrb[0].mxu0
        %3552 = vmatprep.mubr.f32.mxu0 0.0
        %3553 = vmatmul.mubr.f32.gmra.mrb[0].mxu0 %v3407
        %v3554 = vpop.f32.mrb[0].mxu0
        %v3555 = vadd.f32 0.0, %v3554
        %v3556 = vpop.f32.mrb[0].mxu0
        %3557 = vmatprep.mubr.f32.mxu0 0.0
        %3558 = vmatmul.mubr.f32.gmra.mrb[0].mxu0 %v3408
        %v3559 = vpop.f32.mrb[0].mxu0
        %v3560 = vadd.f32 0.0, %v3559
        %v3561 = vpop.f32.mrb[0].mxu0
        %3562 = vmatprep.mubr.f32.mxu0 0.0
        %3563 = vmatmul.mubr.f32.gmra.mrb[0].mxu0 %v3409
        %v3564 = vpop.f32.mrb[0].mxu0
        %v3565 = vadd.f32 0.0, %v3564
        %v3566 = vpop.f32.mrb[0].mxu0
        %3567 = vmatprep.mubr.f32.mxu0 0.0
        %3568 = vmatmul.mubr.f32.gmra.mrb[0].mxu0 %v3410
        %v3569 = vpop.f32.mrb[0].mxu0
        %v3570 = vadd.f32 0.0, %v3569
        %v3571 = vpop.f32.mrb[0].mxu0
        %3572 = vmatprep.mubr.f32.mxu0 0.0
        %3573 = vmatmul.mubr.f32.gmra.mrb[0].mxu0 %v3411
        %v3574 = vpop.f32.mrb[0].mxu0
        %v3575 = vadd.f32 0.0, %v3574
        %v3576 = vpop.f32.mrb[0].mxu0
        %3577 = vmatprep.mubr.f32.mxu0 0.0
        %3578 = vmatmul.mubr.f32.gmra.mrb[0].mxu0 %v3412
        %v3579 = vpop.f32.mrb[0].mxu0
        %v3580 = vadd.f32 0.0, %v3579
        %v3581 = vpop.f32.mrb[0].mxu0
        %3582 = vmatprep.mubr.f32.mxu0 0.0
        %3583 = vmatmul.mubr.f32.gmra.mrb[0].mxu0 %v3413
        %v3584 = vpop.f32.mrb[0].mxu0
        %v3585 = vadd.f32 0.0, %v3584
        %v3586 = vpop.f32.mrb[0].mxu0
        %3587 = vmatprep.mubr.f32.mxu0 0.0
        %3588 = vmatmul.mubr.f32.gmra.mrb[0].mxu0 %v3414
        %v3589 = vpop.f32.mrb[0].mxu0
        %v3590 = vadd.f32 0.0, %v3589
        %v3591 = vpop.f32.mrb[0].mxu0
        %3592 = vmatprep.mubr.f32.mxu0 0.0
        %3593 = vmatmul.mubr.f32.gmra.mrb[0].mxu0 %v3415
        %v3594 = vpop.f32.mrb[0].mxu0
        %v3595 = vadd.f32 0.0, %v3594
        %v3596 = vpop.f32.mrb[0].mxu0
        %3597 = vmatprep.mubr.f32.mxu0 0.0
        %3598 = vmatmul.mubr.f32.gmra.mrb[0].mxu0 %v3416
        %v3599 = vpop.f32.mrb[0].mxu0
        %v3600 = vadd.f32 0.0, %v3599
        %v3601 = vpop.f32.mrb[0].mxu0
        %3602 = vmatprep.mubr.f32.mxu0 0.0
        %3603 = vmatmul.mubr.f32.gmra.mrb[0].mxu0 %v3417
        %v3604 = vpop.f32.mrb[0].mxu0
        %v3605 = vadd.f32 0.0, %v3604
        %v3606 = vpop.f32.mrb[0].mxu0
        %3607 = vmatprep.mubr.f32.mxu0 0.0
        %3608 = vmatmul.mubr.f32.gmra.mrb[0].mxu0 %v3418
        %v3609 = vpop.f32.mrb[0].mxu0
        %v3610 = vadd.f32 0.0, %v3609
        %v3611 = vpop.f32.mrb[0].mxu0
        %3612 = vmatprep.mubr.f32.mxu0 0.0
        %3613 = vmatmul.mubr.f32.gmra.mrb[0].mxu0 %v3419
        %v3614 = vpop.f32.mrb[0].mxu0
        %v3615 = vadd.f32 0.0, %v3614
        %v3616 = vpop.f32.mrb[0].mxu0
        %3617 = vmatprep.mubr.f32.mxu0 0.0
        %3618 = vmatmul.mubr.f32.gmra.mrb[0].mxu0 %v3420
        %v3619 = vpop.f32.mrb[0].mxu0
        %v3620 = vadd.f32 0.0, %v3619
        %v3621 = vpop.f32.mrb[0].mxu0
        %3622 = vmatprep.mubr.f32.mxu0 0.0
        %3623 = vmatmul.mubr.f32.gmra.mrb[0].mxu0 %v3421
        %v3624 = vpop.f32.mrb[0].mxu0
        %v3625 = vadd.f32 0.0, %v3624
        %v3626 = vpop.f32.mrb[0].mxu0
        %3627 = vmatprep.mubr.f32.mxu0 0.0
        %3628 = vmatmul.mubr.f32.gmra.mrb[0].mxu0 %v3422
        %v3629 = vpop.f32.mrb[0].mxu0
        %v3630 = vadd.f32 0.0, %v3629
        %v3631 = vpop.f32.mrb[0].mxu0
        %3632 = vmatprep.mubr.f32.mxu0 0.0
        %3633 = vmatmul.mubr.f32.gmra.mrb[0].mxu0 %v3423
        %v3634 = vpop.f32.mrb[0].mxu0
        %v3635 = vadd.f32 0.0, %v3634
        %v3636 = vpop.f32.mrb[0].mxu0
        %3637 = vmatprep.mubr.f32.mxu0 0.0
        %3638 = vmatmul.mubr.f32.gmra.mrb[0].mxu0 %v3424
        %v3639 = vpop.f32.mrb[0].mxu0
        %v3640 = vadd.f32 0.0, %v3639
        %v3641 = vpop.f32.mrb[0].mxu0
        %3642 = vmatprep.mubr.f32.mxu0 0.0
        %3643 = vmatmul.mubr.f32.gmra.mrb[0].mxu0 %v3425
        %v3644 = vpop.f32.mrb[0].mxu0
        %v3645 = vadd.f32 0.0, %v3644
        %v3646 = vpop.f32.mrb[0].mxu0
        %3647 = vmatprep.mubr.f32.mxu0 0.0
        %3648 = vmatmul.mubr.f32.gmra.mrb[0].mxu0 %v3426
        %v3649 = vpop.f32.mrb[0].mxu0
        %v3650 = vadd.f32 0.0, %v3649
        %v3651 = vpop.f32.mrb[0].mxu0
        %3652 = vmatprep.mubr.f32.mxu0 0.0
        %3653 = vmatmul.mubr.f32.gmra.mrb[0].mxu0 %v3427
        %v3654 = vpop.f32.mrb[0].mxu0
        %v3655 = vadd.f32 0.0, %v3654
        %v3656 = vpop.f32.mrb[0].mxu0
        %3657 = vmatprep.mubr.f32.mxu0 0.0
        %3658 = vmatmul.mubr.f32.gmra.mrb[0].mxu0 %v3428
        %v3659 = vpop.f32.mrb[0].mxu0
        %v3660 = vadd.f32 0.0, %v3659
        %v3661 = vpop.f32.mrb[0].mxu0
        %3662 = vmatprep.mubr.f32.mxu0 0.0
        %3663 = vmatmul.mubr.f32.gmra.mrb[0].mxu0 %v3429
        %v3664 = vpop.f32.mrb[0].mxu0
        %v3665 = vadd.f32 0.0, %v3664
        %v3666 = vpop.f32.mrb[0].mxu0
        %3667 = vmatprep.mubr.f32.mxu0 0.0
        %3668 = vmatmul.mubr.f32.gmra.mrb[0].mxu0 %v3430
        %v3669 = vpop.f32.mrb[0].mxu0
        %v3670 = vadd.f32 0.0, %v3669
        %v3671 = vpop.f32.mrb[0].mxu0
        %3672 = vdwg.mxu0
        %v3673 = vadd.f32 %v3367, %v3515
        %v3674 = vadd.f32 %v3368, %v3520
        %v3675 = vadd.f32 %v3369, %v3525
        %v3676 = vadd.f32 %v3370, %v3530
        %v3677 = vadd.f32 %v3371, %v3535
        %v3678 = vadd.f32 %v3372, %v3540
        %v3679 = vadd.f32 %v3373, %v3545
        %v3680 = vadd.f32 %v3374, %v3550
        %v3681 = vadd.f32 %v3375, %v3555
        %v3682 = vadd.f32 %v3376, %v3560
        %v3683 = vadd.f32 %v3377, %v3565
        %v3684 = vadd.f32 %v3378, %v3570
        %v3685 = vadd.f32 %v3379, %v3575
        %v3686 = vadd.f32 %v3380, %v3580
        %v3687 = vadd.f32 %v3381, %v3585
        %v3688 = vadd.f32 %v3382, %v3590
        %v3689 = vadd.f32 %v3383, %v3595
        %v3690 = vadd.f32 %v3384, %v3600
        %v3691 = vadd.f32 %v3385, %v3605
        %v3692 = vadd.f32 %v3386, %v3610
        %v3693 = vadd.f32 %v3387, %v3615
        %v3694 = vadd.f32 %v3388, %v3620
        %v3695 = vadd.f32 %v3389, %v3625
        %v3696 = vadd.f32 %v3390, %v3630
        %v3697 = vadd.f32 %v3391, %v3635
        %v3698 = vadd.f32 %v3392, %v3640
        %v3699 = vadd.f32 %v3393, %v3645
        %v3700 = vadd.f32 %v3394, %v3650
        %v3701 = vadd.f32 %v3395, %v3655
        %v3702 = vadd.f32 %v3396, %v3660
        %v3703 = vadd.f32 %v3397, %v3665
        %v3704 = vadd.f32 %v3398, %v3670
        %3705 = vst [vmem:[#allocation3] sm:$0xff] %v3673
        %3706 = vst [vmem:[#allocation3 + $0x8] sm:$0xff] %v3674
        %3707 = vst [vmem:[#allocation3 + $0x10] sm:$0xff] %v3675
        %3708 = vst [vmem:[#allocation3 + $0x18] sm:$0xff] %v3676
        %3709 = vst [vmem:[#allocation3 + $0x20] sm:$0xff] %v3677
        %3710 = vst [vmem:[#allocation3 + $0x28] sm:$0xff] %v3678
        %3711 = vst [vmem:[#allocation3 + $0x30] sm:$0xff] %v3679
        %3712 = vst [vmem:[#allocation3 + $0x38] sm:$0xff] %v3680
        %3713 = vst [vmem:[#allocation3 + $0x40] sm:$0xff] %v3681
        %3714 = vst [vmem:[#allocation3 + $0x48] sm:$0xff] %v3682
        %3715 = vst [vmem:[#allocation3 + $0x50] sm:$0xff] %v3683
        %3716 = vst [vmem:[#allocation3 + $0x58] sm:$0xff] %v3684
        %3717 = vst [vmem:[#allocation3 + $0x60] sm:$0xff] %v3685
        %3718 = vst [vmem:[#allocation3 + $0x68] sm:$0xff] %v3686
        %3719 = vst [vmem:[#allocation3 + $0x70] sm:$0xff] %v3687
        %3720 = vst [vmem:[#allocation3 + $0x78] sm:$0xff] %v3688
        %3721 = vst [vmem:[#allocation3 + $0x80] sm:$0xff] %v3689
        %3722 = vst [vmem:[#allocation3 + $0x88] sm:$0xff] %v3690
        %3723 = vst [vmem:[#allocation3 + $0x90] sm:$0xff] %v3691
        %3724 = vst [vmem:[#allocation3 + $0x98] sm:$0xff] %v3692
        %3725 = vst [vmem:[#allocation3 + $0xa0] sm:$0xff] %v3693
        %3726 = vst [vmem:[#allocation3 + $0xa8] sm:$0xff] %v3694
        %3727 = vst [vmem:[#allocation3 + $0xb0] sm:$0xff] %v3695
        %3728 = vst [vmem:[#allocation3 + $0xb8] sm:$0xff] %v3696
        %3729 = vst [vmem:[#allocation3 + $0xc0] sm:$0xff] %v3697
        %3730 = vst [vmem:[#allocation3 + $0xc8] sm:$0xff] %v3698
        %3731 = vst [vmem:[#allocation3 + $0xd0] sm:$0xff] %v3699
        %3732 = vst [vmem:[#allocation3 + $0xd8] sm:$0xff] %v3700
        %3733 = vst [vmem:[#allocation3 + $0xe0] sm:$0xff] %v3701
        %3734 = vst [vmem:[#allocation3 + $0xe8] sm:$0xff] %v3702
        %3735 = vst [vmem:[#allocation3 + $0xf0] sm:$0xff] %v3703
        %3736 = vst [vmem:[#allocation3 + $0xf8] sm:$0xff] %v3704
        %v3737 = vld [vmem:[#allocation3] sm:$0xff]
        %v3738 = vld [vmem:[#allocation3 + $0x8] sm:$0xff]
        %v3739 = vld [vmem:[#allocation3 + $0x10] sm:$0xff]
        %v3740 = vld [vmem:[#allocation3 + $0x18] sm:$0xff]
        %v3741 = vld [vmem:[#allocation3 + $0x20] sm:$0xff]
        %v3742 = vld [vmem:[#allocation3 + $0x28] sm:$0xff]
        %v3743 = vld [vmem:[#allocation3 + $0x30] sm:$0xff]
        %v3744 = vld [vmem:[#allocation3 + $0x38] sm:$0xff]
        %v3745 = vld [vmem:[#allocation3 + $0x40] sm:$0xff]
        %v3746 = vld [vmem:[#allocation3 + $0x48] sm:$0xff]
        %v3747 = vld [vmem:[#allocation3 + $0x50] sm:$0xff]
        %v3748 = vld [vmem:[#allocation3 + $0x58] sm:$0xff]
        %v3749 = vld [vmem:[#allocation3 + $0x60] sm:$0xff]
        %v3750 = vld [vmem:[#allocation3 + $0x68] sm:$0xff]
        %v3751 = vld [vmem:[#allocation3 + $0x70] sm:$0xff]
        %v3752 = vld [vmem:[#allocation3 + $0x78] sm:$0xff]
        %v3753 = vld [vmem:[#allocation3 + $0x80] sm:$0xff]
        %v3754 = vld [vmem:[#allocation3 + $0x88] sm:$0xff]
        %v3755 = vld [vmem:[#allocation3 + $0x90] sm:$0xff]
        %v3756 = vld [vmem:[#allocation3 + $0x98] sm:$0xff]
        %v3757 = vld [vmem:[#allocation3 + $0xa0] sm:$0xff]
        %v3758 = vld [vmem:[#allocation3 + $0xa8] sm:$0xff]
        %v3759 = vld [vmem:[#allocation3 + $0xb0] sm:$0xff]
        %v3760 = vld [vmem:[#allocation3 + $0xb8] sm:$0xff]
        %v3761 = vld [vmem:[#allocation3 + $0xc0] sm:$0xff]
        %v3762 = vld [vmem:[#allocation3 + $0xc8] sm:$0xff]
        %v3763 = vld [vmem:[#allocation3 + $0xd0] sm:$0xff]
        %v3764 = vld [vmem:[#allocation3 + $0xd8] sm:$0xff]
        %v3765 = vld [vmem:[#allocation3 + $0xe0] sm:$0xff]
        %v3766 = vld [vmem:[#allocation3 + $0xe8] sm:$0xff]
        %v3767 = vld [vmem:[#allocation3 + $0xf0] sm:$0xff]
        %v3768 = vld [vmem:[#allocation3 + $0xf8] sm:$0xff]
        %v3769 = vld [vmem:[%s3028 + $0x2] sm:$0xff]
        %v3770 = vld [vmem:[%s3028 + $0xa] sm:$0xff]
        %v3771 = vld [vmem:[%s3028 + $0x1a] sm:$0xff]
        %v3772 = vld [vmem:[%s3028 + $0x22] sm:$0xff]
        %v3773 = vld [vmem:[%s3028 + $0x32] sm:$0xff]
        %v3774 = vld [vmem:[%s3028 + $0x3a] sm:$0xff]
        %v3775 = vld [vmem:[%s3028 + $0x4a] sm:$0xff]
        %v3776 = vld [vmem:[%s3028 + $0x52] sm:$0xff]
        %v3777 = vld [vmem:[%s3028 + $0x62] sm:$0xff]
        %v3778 = vld [vmem:[%s3028 + $0x6a] sm:$0xff]
        %v3779 = vld [vmem:[%s3028 + $0x7a] sm:$0xff]
        %v3780 = vld [vmem:[%s3028 + $0x82] sm:$0xff]
        %v3781 = vld [vmem:[%s3028 + $0x92] sm:$0xff]
        %v3782 = vld [vmem:[%s3028 + $0x9a] sm:$0xff]
        %v3783 = vld [vmem:[%s3028 + $0xaa] sm:$0xff]
        %v3784 = vld [vmem:[%s3028 + $0xb2] sm:$0xff]
        %v3785 = vld [vmem:[%s3028 + $0xc2] sm:$0xff]
        %v3786 = vld [vmem:[%s3028 + $0xca] sm:$0xff]
        %v3787 = vld [vmem:[%s3028 + $0xda] sm:$0xff]
        %v3788 = vld [vmem:[%s3028 + $0xe2] sm:$0xff]
        %v3789 = vld [vmem:[%s3028 + $0xf2] sm:$0xff]
        %v3790 = vld [vmem:[%s3028 + $0xfa] sm:$0xff]
        %v3791 = vld [vmem:[%s3028 + $0x10a] sm:$0xff]
        %v3792 = vld [vmem:[%s3028 + $0x112] sm:$0xff]
        %v3793 = vld [vmem:[%s3028 + $0x122] sm:$0xff]
        %v3794 = vld [vmem:[%s3028 + $0x12a] sm:$0xff]
        %v3795 = vld [vmem:[%s3028 + $0x13a] sm:$0xff]
        %v3796 = vld [vmem:[%s3028 + $0x142] sm:$0xff]
        %v3797 = vld [vmem:[%s3028 + $0x152] sm:$0xff]
        %v3798 = vld [vmem:[%s3028 + $0x15a] sm:$0xff]
        %v3799 = vld [vmem:[%s3028 + $0x16a] sm:$0xff]
        %v3800 = vld [vmem:[%s3028 + $0x172] sm:$0xff]
        %s3801 = scalar_lea.vmem [#allocation4], 1024
        %v3802 = vld [vmem:[%s3801] sm:$0xff]
        %v3803 = vld [vmem:[%s3801 + $0x8] sm:$0xff]
        %v3804 = vld [vmem:[%s3801 + $0x10] sm:$0xff]
        %v3805 = vld [vmem:[%s3801 + $0x18] sm:$0xff]
        %v3806 = vld [vmem:[%s3801 + $0x20] sm:$0xff]
        %v3807 = vld [vmem:[%s3801 + $0x28] sm:$0xff]
        %v3808 = vld [vmem:[%s3801 + $0x30] sm:$0xff]
        %v3809 = vld [vmem:[%s3801 + $0x38] sm:$0xff]
        %v3810 = vld [vmem:[%s3801 + $0x40] sm:$0xff]
        %v3811 = vld [vmem:[%s3801 + $0x48] sm:$0xff]
        %v3812 = vld [vmem:[%s3801 + $0x50] sm:$0xff]
        %v3813 = vld [vmem:[%s3801 + $0x58] sm:$0xff]
        %v3814 = vld [vmem:[%s3801 + $0x60] sm:$0xff]
        %v3815 = vld [vmem:[%s3801 + $0x68] sm:$0xff]
        %v3816 = vld [vmem:[%s3801 + $0x70] sm:$0xff]
        %v3817 = vld [vmem:[%s3801 + $0x78] sm:$0xff]
        %3818 = vmatprep.subr.mxu0 0.0
        %3819 = vmatpush1.msra.mxu0 %v3802
        %3820 = vmatprep.subr.mxu0 0.0
        %3821 = vmatpush1.msra.mxu0 %v3803
        %3822 = vmatprep.subr.mxu0 0.0
        %3823 = vmatpush1.msra.mxu0 %v3804
        %3824 = vmatprep.subr.mxu0 0.0
        %3825 = vmatpush1.msra.mxu0 %v3805
        %3826 = vmatprep.subr.mxu0 0.0
        %3827 = vmatpush1.msra.mxu0 %v3806
        %3828 = vmatprep.subr.mxu0 0.0
        %3829 = vmatpush1.msra.mxu0 %v3807
        %3830 = vmatprep.subr.mxu0 0.0
        %3831 = vmatpush1.msra.mxu0 %v3808
        %3832 = vmatprep.subr.mxu0 0.0
        %3833 = vmatpush1.msra.mxu0 %v3809
        %3834 = vmatprep.subr.mxu0 0.0
        %3835 = vmatpush1.msra.mxu0 %v3810
        %3836 = vmatprep.subr.mxu0 0.0
        %3837 = vmatpush1.msra.mxu0 %v3811
        %3838 = vmatprep.subr.mxu0 0.0
        %3839 = vmatpush1.msra.mxu0 %v3812
        %3840 = vmatprep.subr.mxu0 0.0
        %3841 = vmatpush1.msra.mxu0 %v3813
        %3842 = vmatprep.subr.mxu0 0.0
        %3843 = vmatpush1.msra.mxu0 %v3814
        %3844 = vmatprep.subr.mxu0 0.0
        %3845 = vmatpush1.msra.mxu0 %v3815
        %3846 = vmatprep.subr.mxu0 0.0
        %3847 = vmatpush1.msra.mxu0 %v3816
        %3848 = vmatprep.subr.mxu0 0.0
        %3849 = vmatpush1.msra.mxu0 %v3817
        %3850 = vmatprep.subr.mxu0 0.0
        %3851 = vmatpush1.msra.mxu0 0.0
        %3852 = vmatprep.subr.mxu0 0.0
        %3853 = vmatpush1.msra.mxu0 0.0
        %3854 = vmatprep.subr.mxu0 0.0
        %3855 = vmatpush1.msra.mxu0 0.0
        %3856 = vmatprep.subr.mxu0 0.0
        %3857 = vmatpush1.msra.mxu0 0.0
        %3858 = vmatprep.subr.mxu0 0.0
        %3859 = vmatpush1.msra.mxu0 0.0
        %3860 = vmatprep.subr.mxu0 0.0
        %3861 = vmatpush1.msra.mxu0 0.0
        %3862 = vmatprep.subr.mxu0 0.0
        %3863 = vmatpush1.msra.mxu0 0.0
        %3864 = vmatprep.subr.mxu0 0.0
        %3865 = vmatpush1.msra.mxu0 0.0
        %3866 = vmatprep.subr.mxu0 0.0
        %3867 = vmatpush1.msra.mxu0 0.0
        %3868 = vmatprep.subr.mxu0 0.0
        %3869 = vmatpush1.msra.mxu0 0.0
        %3870 = vmatprep.subr.mxu0 0.0
        %3871 = vmatpush1.msra.mxu0 0.0
        %3872 = vmatprep.subr.mxu0 0.0
        %3873 = vmatpush1.msra.mxu0 0.0
        %3874 = vmatprep.subr.mxu0 0.0
        %3875 = vmatpush1.msra.mxu0 0.0
        %3876 = vmatprep.subr.mxu0 0.0
        %3877 = vmatpush1.msra.mxu0 0.0
        %3878 = vmatprep.subr.mxu0 0.0
        %3879 = vmatpush1.msra.mxu0 0.0
        %3880 = vmatprep.subr.mxu0 0.0
        %3881 = vmatpush1.msra.mxu0 0.0
        %3882 = vmatprep.mubr.f32.mxu0 0.0
        %3883 = vmatmul.mubr.f32.gmra.mrb[0].mxu0 %v3769
        %v3884 = vpop.f32.mrb[0].mxu0
        %v3885 = vadd.f32 0.0, %v3884
        %v3886 = vpop.f32.mrb[0].mxu0
        %3887 = vmatprep.mubr.f32.mxu0 0.0
        %3888 = vmatmul.mubr.f32.gmra.mrb[0].mxu0 %v3770
        %v3889 = vpop.f32.mrb[0].mxu0
        %v3890 = vadd.f32 0.0, %v3889
        %v3891 = vpop.f32.mrb[0].mxu0
        %3892 = vmatprep.mubr.f32.mxu0 0.0
        %3893 = vmatmul.mubr.f32.gmra.mrb[0].mxu0 %v3771
        %v3894 = vpop.f32.mrb[0].mxu0
        %v3895 = vadd.f32 0.0, %v3894
        %v3896 = vpop.f32.mrb[0].mxu0
        %3897 = vmatprep.mubr.f32.mxu0 0.0
        %3898 = vmatmul.mubr.f32.gmra.mrb[0].mxu0 %v3772
        %v3899 = vpop.f32.mrb[0].mxu0
        %v3900 = vadd.f32 0.0, %v3899
        %v3901 = vpop.f32.mrb[0].mxu0
        %3902 = vmatprep.mubr.f32.mxu0 0.0
        %3903 = vmatmul.mubr.f32.gmra.mrb[0].mxu0 %v3773
        %v3904 = vpop.f32.mrb[0].mxu0
        %v3905 = vadd.f32 0.0, %v3904
        %v3906 = vpop.f32.mrb[0].mxu0
        %3907 = vmatprep.mubr.f32.mxu0 0.0
        %3908 = vmatmul.mubr.f32.gmra.mrb[0].mxu0 %v3774
        %v3909 = vpop.f32.mrb[0].mxu0
        %v3910 = vadd.f32 0.0, %v3909
        %v3911 = vpop.f32.mrb[0].mxu0
        %3912 = vmatprep.mubr.f32.mxu0 0.0
        %3913 = vmatmul.mubr.f32.gmra.mrb[0].mxu0 %v3775
        %v3914 = vpop.f32.mrb[0].mxu0
        %v3915 = vadd.f32 0.0, %v3914
        %v3916 = vpop.f32.mrb[0].mxu0
        %3917 = vmatprep.mubr.f32.mxu0 0.0
        %3918 = vmatmul.mubr.f32.gmra.mrb[0].mxu0 %v3776
        %v3919 = vpop.f32.mrb[0].mxu0
        %v3920 = vadd.f32 0.0, %v3919
        %v3921 = vpop.f32.mrb[0].mxu0
        %3922 = vmatprep.mubr.f32.mxu0 0.0
        %3923 = vmatmul.mubr.f32.gmra.mrb[0].mxu0 %v3777
        %v3924 = vpop.f32.mrb[0].mxu0
        %v3925 = vadd.f32 0.0, %v3924
        %v3926 = vpop.f32.mrb[0].mxu0
        %3927 = vmatprep.mubr.f32.mxu0 0.0
        %3928 = vmatmul.mubr.f32.gmra.mrb[0].mxu0 %v3778
        %v3929 = vpop.f32.mrb[0].mxu0
        %v3930 = vadd.f32 0.0, %v3929
        %v3931 = vpop.f32.mrb[0].mxu0
        %3932 = vmatprep.mubr.f32.mxu0 0.0
        %3933 = vmatmul.mubr.f32.gmra.mrb[0].mxu0 %v3779
        %v3934 = vpop.f32.mrb[0].mxu0
        %v3935 = vadd.f32 0.0, %v3934
        %v3936 = vpop.f32.mrb[0].mxu0
        %3937 = vmatprep.mubr.f32.mxu0 0.0
        %3938 = vmatmul.mubr.f32.gmra.mrb[0].mxu0 %v3780
        %v3939 = vpop.f32.mrb[0].mxu0
        %v3940 = vadd.f32 0.0, %v3939
        %v3941 = vpop.f32.mrb[0].mxu0
        %3942 = vmatprep.mubr.f32.mxu0 0.0
        %3943 = vmatmul.mubr.f32.gmra.mrb[0].mxu0 %v3781
        %v3944 = vpop.f32.mrb[0].mxu0
        %v3945 = vadd.f32 0.0, %v3944
        %v3946 = vpop.f32.mrb[0].mxu0
        %3947 = vmatprep.mubr.f32.mxu0 0.0
        %3948 = vmatmul.mubr.f32.gmra.mrb[0].mxu0 %v3782
        %v3949 = vpop.f32.mrb[0].mxu0
        %v3950 = vadd.f32 0.0, %v3949
        %v3951 = vpop.f32.mrb[0].mxu0
        %3952 = vmatprep.mubr.f32.mxu0 0.0
        %3953 = vmatmul.mubr.f32.gmra.mrb[0].mxu0 %v3783
        %v3954 = vpop.f32.mrb[0].mxu0
        %v3955 = vadd.f32 0.0, %v3954
        %v3956 = vpop.f32.mrb[0].mxu0
        %3957 = vmatprep.mubr.f32.mxu0 0.0
        %3958 = vmatmul.mubr.f32.gmra.mrb[0].mxu0 %v3784
        %v3959 = vpop.f32.mrb[0].mxu0
        %v3960 = vadd.f32 0.0, %v3959
        %v3961 = vpop.f32.mrb[0].mxu0
        %3962 = vmatprep.mubr.f32.mxu0 0.0
        %3963 = vmatmul.mubr.f32.gmra.mrb[0].mxu0 %v3785
        %v3964 = vpop.f32.mrb[0].mxu0
        %v3965 = vadd.f32 0.0, %v3964
        %v3966 = vpop.f32.mrb[0].mxu0
        %3967 = vmatprep.mubr.f32.mxu0 0.0
        %3968 = vmatmul.mubr.f32.gmra.mrb[0].mxu0 %v3786
        %v3969 = vpop.f32.mrb[0].mxu0
        %v3970 = vadd.f32 0.0, %v3969
        %v3971 = vpop.f32.mrb[0].mxu0
        %3972 = vmatprep.mubr.f32.mxu0 0.0
        %3973 = vmatmul.mubr.f32.gmra.mrb[0].mxu0 %v3787
        %v3974 = vpop.f32.mrb[0].mxu0
        %v3975 = vadd.f32 0.0, %v3974
        %v3976 = vpop.f32.mrb[0].mxu0
        %3977 = vmatprep.mubr.f32.mxu0 0.0
        %3978 = vmatmul.mubr.f32.gmra.mrb[0].mxu0 %v3788
        %v3979 = vpop.f32.mrb[0].mxu0
        %v3980 = vadd.f32 0.0, %v3979
        %v3981 = vpop.f32.mrb[0].mxu0
        %3982 = vmatprep.mubr.f32.mxu0 0.0
        %3983 = vmatmul.mubr.f32.gmra.mrb[0].mxu0 %v3789
        %v3984 = vpop.f32.mrb[0].mxu0
        %v3985 = vadd.f32 0.0, %v3984
        %v3986 = vpop.f32.mrb[0].mxu0
        %3987 = vmatprep.mubr.f32.mxu0 0.0
        %3988 = vmatmul.mubr.f32.gmra.mrb[0].mxu0 %v3790
        %v3989 = vpop.f32.mrb[0].mxu0
        %v3990 = vadd.f32 0.0, %v3989
        %v3991 = vpop.f32.mrb[0].mxu0
        %3992 = vmatprep.mubr.f32.mxu0 0.0
        %3993 = vmatmul.mubr.f32.gmra.mrb[0].mxu0 %v3791
        %v3994 = vpop.f32.mrb[0].mxu0
        %v3995 = vadd.f32 0.0, %v3994
        %v3996 = vpop.f32.mrb[0].mxu0
        %3997 = vmatprep.mubr.f32.mxu0 0.0
        %3998 = vmatmul.mubr.f32.gmra.mrb[0].mxu0 %v3792
        %v3999 = vpop.f32.mrb[0].mxu0
        %v4000 = vadd.f32 0.0, %v3999
        %v4001 = vpop.f32.mrb[0].mxu0
        %4002 = vmatprep.mubr.f32.mxu0 0.0
        %4003 = vmatmul.mubr.f32.gmra.mrb[0].mxu0 %v3793
        %v4004 = vpop.f32.mrb[0].mxu0
        %v4005 = vadd.f32 0.0, %v4004
        %v4006 = vpop.f32.mrb[0].mxu0
        %4007 = vmatprep.mubr.f32.mxu0 0.0
        %4008 = vmatmul.mubr.f32.gmra.mrb[0].mxu0 %v3794
        %v4009 = vpop.f32.mrb[0].mxu0
        %v4010 = vadd.f32 0.0, %v4009
        %v4011 = vpop.f32.mrb[0].mxu0
        %4012 = vmatprep.mubr.f32.mxu0 0.0
        %4013 = vmatmul.mubr.f32.gmra.mrb[0].mxu0 %v3795
        %v4014 = vpop.f32.mrb[0].mxu0
        %v4015 = vadd.f32 0.0, %v4014
        %v4016 = vpop.f32.mrb[0].mxu0
        %4017 = vmatprep.mubr.f32.mxu0 0.0
        %4018 = vmatmul.mubr.f32.gmra.mrb[0].mxu0 %v3796
        %v4019 = vpop.f32.mrb[0].mxu0
        %v4020 = vadd.f32 0.0, %v4019
        %v4021 = vpop.f32.mrb[0].mxu0
        %4022 = vmatprep.mubr.f32.mxu0 0.0
        %4023 = vmatmul.mubr.f32.gmra.mrb[0].mxu0 %v3797
        %v4024 = vpop.f32.mrb[0].mxu0
        %v4025 = vadd.f32 0.0, %v4024
        %v4026 = vpop.f32.mrb[0].mxu0
        %4027 = vmatprep.mubr.f32.mxu0 0.0
        %4028 = vmatmul.mubr.f32.gmra.mrb[0].mxu0 %v3798
        %v4029 = vpop.f32.mrb[0].mxu0
        %v4030 = vadd.f32 0.0, %v4029
        %v4031 = vpop.f32.mrb[0].mxu0
        %4032 = vmatprep.mubr.f32.mxu0 0.0
        %4033 = vmatmul.mubr.f32.gmra.mrb[0].mxu0 %v3799
        %v4034 = vpop.f32.mrb[0].mxu0
        %v4035 = vadd.f32 0.0, %v4034
        %v4036 = vpop.f32.mrb[0].mxu0
        %4037 = vmatprep.mubr.f32.mxu0 0.0
        %4038 = vmatmul.mubr.f32.gmra.mrb[0].mxu0 %v3800
        %v4039 = vpop.f32.mrb[0].mxu0
        %v4040 = vadd.f32 0.0, %v4039
        %v4041 = vpop.f32.mrb[0].mxu0
        %4042 = vdwg.mxu0
        %v4043 = vadd.f32 %v3737, %v3885
        %v4044 = vadd.f32 %v3738, %v3890
        %v4045 = vadd.f32 %v3739, %v3895
        %v4046 = vadd.f32 %v3740, %v3900
        %v4047 = vadd.f32 %v3741, %v3905
        %v4048 = vadd.f32 %v3742, %v3910
        %v4049 = vadd.f32 %v3743, %v3915
        %v4050 = vadd.f32 %v3744, %v3920
        %v4051 = vadd.f32 %v3745, %v3925
        %v4052 = vadd.f32 %v3746, %v3930
        %v4053 = vadd.f32 %v3747, %v3935
        %v4054 = vadd.f32 %v3748, %v3940
        %v4055 = vadd.f32 %v3749, %v3945
        %v4056 = vadd.f32 %v3750, %v3950
        %v4057 = vadd.f32 %v3751, %v3955
        %v4058 = vadd.f32 %v3752, %v3960
        %v4059 = vadd.f32 %v3753, %v3965
        %v4060 = vadd.f32 %v3754, %v3970
        %v4061 = vadd.f32 %v3755, %v3975
        %v4062 = vadd.f32 %v3756, %v3980
        %v4063 = vadd.f32 %v3757, %v3985
        %v4064 = vadd.f32 %v3758, %v3990
        %v4065 = vadd.f32 %v3759, %v3995
        %v4066 = vadd.f32 %v3760, %v4000
        %v4067 = vadd.f32 %v3761, %v4005
        %v4068 = vadd.f32 %v3762, %v4010
        %v4069 = vadd.f32 %v3763, %v4015
        %v4070 = vadd.f32 %v3764, %v4020
        %v4071 = vadd.f32 %v3765, %v4025
        %v4072 = vadd.f32 %v3766, %v4030
        %v4073 = vadd.f32 %v3767, %v4035
        %v4074 = vadd.f32 %v3768, %v4040
        %4075 = vst [vmem:[#allocation3] sm:$0xff] %v4043
        %4076 = vst [vmem:[#allocation3 + $0x8] sm:$0xff] %v4044
        %4077 = vst [vmem:[#allocation3 + $0x10] sm:$0xff] %v4045
        %4078 = vst [vmem:[#allocation3 + $0x18] sm:$0xff] %v4046
        %4079 = vst [vmem:[#allocation3 + $0x20] sm:$0xff] %v4047
        %4080 = vst [vmem:[#allocation3 + $0x28] sm:$0xff] %v4048
        %4081 = vst [vmem:[#allocation3 + $0x30] sm:$0xff] %v4049
        %4082 = vst [vmem:[#allocation3 + $0x38] sm:$0xff] %v4050
        %4083 = vst [vmem:[#allocation3 + $0x40] sm:$0xff] %v4051
        %4084 = vst [vmem:[#allocation3 + $0x48] sm:$0xff] %v4052
        %4085 = vst [vmem:[#allocation3 + $0x50] sm:$0xff] %v4053
        %4086 = vst [vmem:[#allocation3 + $0x58] sm:$0xff] %v4054
        %4087 = vst [vmem:[#allocation3 + $0x60] sm:$0xff] %v4055
        %4088 = vst [vmem:[#allocation3 + $0x68] sm:$0xff] %v4056
        %4089 = vst [vmem:[#allocation3 + $0x70] sm:$0xff] %v4057
        %4090 = vst [vmem:[#allocation3 + $0x78] sm:$0xff] %v4058
        %4091 = vst [vmem:[#allocation3 + $0x80] sm:$0xff] %v4059
        %4092 = vst [vmem:[#allocation3 + $0x88] sm:$0xff] %v4060
        %4093 = vst [vmem:[#allocation3 + $0x90] sm:$0xff] %v4061
        %4094 = vst [vmem:[#allocation3 + $0x98] sm:$0xff] %v4062
        %4095 = vst [vmem:[#allocation3 + $0xa0] sm:$0xff] %v4063
        %4096 = vst [vmem:[#allocation3 + $0xa8] sm:$0xff] %v4064
        %4097 = vst [vmem:[#allocation3 + $0xb0] sm:$0xff] %v4065
        %4098 = vst [vmem:[#allocation3 + $0xb8] sm:$0xff] %v4066
        %4099 = vst [vmem:[#allocation3 + $0xc0] sm:$0xff] %v4067
        %4100 = vst [vmem:[#allocation3 + $0xc8] sm:$0xff] %v4068
        %4101 = vst [vmem:[#allocation3 + $0xd0] sm:$0xff] %v4069
        %4102 = vst [vmem:[#allocation3 + $0xd8] sm:$0xff] %v4070
        %4103 = vst [vmem:[#allocation3 + $0xe0] sm:$0xff] %v4071
        %4104 = vst [vmem:[#allocation3 + $0xe8] sm:$0xff] %v4072
        %4105 = vst [vmem:[#allocation3 + $0xf0] sm:$0xff] %v4073
        %4106 = vst [vmem:[#allocation3 + $0xf8] sm:$0xff] %v4074
        %v4107 = vld [vmem:[#allocation3] sm:$0xff]
        %v4108 = vld [vmem:[#allocation3 + $0x8] sm:$0xff]
        %v4109 = vld [vmem:[#allocation3 + $0x10] sm:$0xff]
        %v4110 = vld [vmem:[#allocation3 + $0x18] sm:$0xff]
        %v4111 = vld [vmem:[#allocation3 + $0x20] sm:$0xff]
        %v4112 = vld [vmem:[#allocation3 + $0x28] sm:$0xff]
        %v4113 = vld [vmem:[#allocation3 + $0x30] sm:$0xff]
        %v4114 = vld [vmem:[#allocation3 + $0x38] sm:$0xff]
        %v4115 = vld [vmem:[#allocation3 + $0x40] sm:$0xff]
        %v4116 = vld [vmem:[#allocation3 + $0x48] sm:$0xff]
        %v4117 = vld [vmem:[#allocation3 + $0x50] sm:$0xff]
        %v4118 = vld [vmem:[#allocation3 + $0x58] sm:$0xff]
        %v4119 = vld [vmem:[#allocation3 + $0x60] sm:$0xff]
        %v4120 = vld [vmem:[#allocation3 + $0x68] sm:$0xff]
        %v4121 = vld [vmem:[#allocation3 + $0x70] sm:$0xff]
        %v4122 = vld [vmem:[#allocation3 + $0x78] sm:$0xff]
        %v4123 = vld [vmem:[#allocation3 + $0x80] sm:$0xff]
        %v4124 = vld [vmem:[#allocation3 + $0x88] sm:$0xff]
        %v4125 = vld [vmem:[#allocation3 + $0x90] sm:$0xff]
        %v4126 = vld [vmem:[#allocation3 + $0x98] sm:$0xff]
        %v4127 = vld [vmem:[#allocation3 + $0xa0] sm:$0xff]
        %v4128 = vld [vmem:[#allocation3 + $0xa8] sm:$0xff]
        %v4129 = vld [vmem:[#allocation3 + $0xb0] sm:$0xff]
        %v4130 = vld [vmem:[#allocation3 + $0xb8] sm:$0xff]
        %v4131 = vld [vmem:[#allocation3 + $0xc0] sm:$0xff]
        %v4132 = vld [vmem:[#allocation3 + $0xc8] sm:$0xff]
        %v4133 = vld [vmem:[#allocation3 + $0xd0] sm:$0xff]
        %v4134 = vld [vmem:[#allocation3 + $0xd8] sm:$0xff]
        %v4135 = vld [vmem:[#allocation3 + $0xe0] sm:$0xff]
        %v4136 = vld [vmem:[#allocation3 + $0xe8] sm:$0xff]
        %v4137 = vld [vmem:[#allocation3 + $0xf0] sm:$0xff]
        %v4138 = vld [vmem:[#allocation3 + $0xf8] sm:$0xff]
        %v4139 = vld [vmem:[%s5] sm:$0x1]
        %v4141 = vlaneseq
        %v4142 = vshrl.u32 %v4141, 7
        %v4143 = vsub.s32 0, %v4142
        %v4144 = vrot.slane %v4139, %v4143
        %v4146 = vmul.f32 %v4107, %v4144
        %v4147 = vmul.f32 %v4108, %v4144
        %v4148 = vmul.f32 %v4109, %v4144
        %v4149 = vmul.f32 %v4110, %v4144
        %v4150 = vmul.f32 %v4111, %v4144
        %v4151 = vmul.f32 %v4112, %v4144
        %v4152 = vmul.f32 %v4113, %v4144
        %v4153 = vmul.f32 %v4114, %v4144
        %v4154 = vmul.f32 %v4115, %v4144
        %v4155 = vmul.f32 %v4116, %v4144
        %v4156 = vmul.f32 %v4117, %v4144
        %v4157 = vmul.f32 %v4118, %v4144
        %v4158 = vmul.f32 %v4119, %v4144
        %v4159 = vmul.f32 %v4120, %v4144
        %v4160 = vmul.f32 %v4121, %v4144
        %v4161 = vmul.f32 %v4122, %v4144
        %v4162 = vmul.f32 %v4123, %v4144
        %v4163 = vmul.f32 %v4124, %v4144
        %v4164 = vmul.f32 %v4125, %v4144
        %v4165 = vmul.f32 %v4126, %v4144
        %v4166 = vmul.f32 %v4127, %v4144
        %v4167 = vmul.f32 %v4128, %v4144
        %v4168 = vmul.f32 %v4129, %v4144
        %v4169 = vmul.f32 %v4130, %v4144
        %v4170 = vmul.f32 %v4131, %v4144
        %v4171 = vmul.f32 %v4132, %v4144
        %v4172 = vmul.f32 %v4133, %v4144
        %v4173 = vmul.f32 %v4134, %v4144
        %v4174 = vmul.f32 %v4135, %v4144
        %v4175 = vmul.f32 %v4136, %v4144
        %v4176 = vmul.f32 %v4137, %v4144
        %v4177 = vmul.f32 %v4138, %v4144
        %v4178 = vld [vmem:[%s6] sm:$0x1]
        %v4180 = vlaneseq
        %v4181 = vshrl.u32 %v4180, 7
        %v4182 = vsub.s32 0, %v4181
        %v4183 = vrot.slane %v4178, %v4182
        %v4185 = vadd.f32 %v4146, %v4183
        %v4186 = vadd.f32 %v4147, %v4183
        %v4187 = vadd.f32 %v4148, %v4183
        %v4188 = vadd.f32 %v4149, %v4183
        %v4189 = vadd.f32 %v4150, %v4183
        %v4190 = vadd.f32 %v4151, %v4183
        %v4191 = vadd.f32 %v4152, %v4183
        %v4192 = vadd.f32 %v4153, %v4183
        %v4193 = vadd.f32 %v4154, %v4183
        %v4194 = vadd.f32 %v4155, %v4183
        %v4195 = vadd.f32 %v4156, %v4183
        %v4196 = vadd.f32 %v4157, %v4183
        %v4197 = vadd.f32 %v4158, %v4183
        %v4198 = vadd.f32 %v4159, %v4183
        %v4199 = vadd.f32 %v4160, %v4183
        %v4200 = vadd.f32 %v4161, %v4183
        %v4201 = vadd.f32 %v4162, %v4183
        %v4202 = vadd.f32 %v4163, %v4183
        %v4203 = vadd.f32 %v4164, %v4183
        %v4204 = vadd.f32 %v4165, %v4183
        %v4205 = vadd.f32 %v4166, %v4183
        %v4206 = vadd.f32 %v4167, %v4183
        %v4207 = vadd.f32 %v4168, %v4183
        %v4208 = vadd.f32 %v4169, %v4183
        %v4209 = vadd.f32 %v4170, %v4183
        %v4210 = vadd.f32 %v4171, %v4183
        %v4211 = vadd.f32 %v4172, %v4183
        %v4212 = vadd.f32 %v4173, %v4183
        %v4213 = vadd.f32 %v4174, %v4183
        %v4214 = vadd.f32 %v4175, %v4183
        %v4215 = vadd.f32 %v4176, %v4183
        %v4216 = vadd.f32 %v4177, %v4183
        %v4217 = vmax.f32 %v4185, 0.0
        %v4218 = vmax.f32 %v4186, 0.0
        %v4219 = vmax.f32 %v4187, 0.0
        %v4220 = vmax.f32 %v4188, 0.0
        %v4221 = vmax.f32 %v4189, 0.0
        %v4222 = vmax.f32 %v4190, 0.0
        %v4223 = vmax.f32 %v4191, 0.0
        %v4224 = vmax.f32 %v4192, 0.0
        %v4225 = vmax.f32 %v4193, 0.0
        %v4226 = vmax.f32 %v4194, 0.0
        %v4227 = vmax.f32 %v4195, 0.0
        %v4228 = vmax.f32 %v4196, 0.0
        %v4229 = vmax.f32 %v4197, 0.0
        %v4230 = vmax.f32 %v4198, 0.0
        %v4231 = vmax.f32 %v4199, 0.0
        %v4232 = vmax.f32 %v4200, 0.0
        %v4233 = vmax.f32 %v4201, 0.0
        %v4234 = vmax.f32 %v4202, 0.0
        %v4235 = vmax.f32 %v4203, 0.0
        %v4236 = vmax.f32 %v4204, 0.0
        %v4237 = vmax.f32 %v4205, 0.0
        %v4238 = vmax.f32 %v4206, 0.0
        %v4239 = vmax.f32 %v4207, 0.0
        %v4240 = vmax.f32 %v4208, 0.0
        %v4241 = vmax.f32 %v4209, 0.0
        %v4242 = vmax.f32 %v4210, 0.0
        %v4243 = vmax.f32 %v4211, 0.0
        %v4244 = vmax.f32 %v4212, 0.0
        %v4245 = vmax.f32 %v4213, 0.0
        %v4246 = vmax.f32 %v4214, 0.0
        %v4247 = vmax.f32 %v4215, 0.0
        %v4248 = vmax.f32 %v4216, 0.0
        %4249 = vst [vmem:[%s286] sm:$0xff] %v4217
        %4250 = vst [vmem:[%s286 + $0x8] sm:$0xff] %v4218
        %4251 = vst [vmem:[%s286 + $0x10] sm:$0xff] %v4219
        %4252 = vst [vmem:[%s286 + $0x18] sm:$0xff] %v4220
        %4253 = vst [vmem:[%s286 + $0x20] sm:$0xff] %v4221
        %4254 = vst [vmem:[%s286 + $0x28] sm:$0xff] %v4222
        %4255 = vst [vmem:[%s286 + $0x30] sm:$0xff] %v4223
        %4256 = vst [vmem:[%s286 + $0x38] sm:$0xff] %v4224
        %4257 = vst [vmem:[%s286 + $0x40] sm:$0xff] %v4225
        %4258 = vst [vmem:[%s286 + $0x48] sm:$0xff] %v4226
        %4259 = vst [vmem:[%s286 + $0x50] sm:$0xff] %v4227
        %4260 = vst [vmem:[%s286 + $0x58] sm:$0xff] %v4228
        %4261 = vst [vmem:[%s286 + $0x60] sm:$0xff] %v4229
        %4262 = vst [vmem:[%s286 + $0x68] sm:$0xff] %v4230
        %4263 = vst [vmem:[%s286 + $0x70] sm:$0xff] %v4231
        %4264 = vst [vmem:[%s286 + $0x78] sm:$0xff] %v4232
        %4265 = vst [vmem:[%s286 + $0x80] sm:$0xff] %v4233
        %4266 = vst [vmem:[%s286 + $0x88] sm:$0xff] %v4234
        %4267 = vst [vmem:[%s286 + $0x90] sm:$0xff] %v4235
        %4268 = vst [vmem:[%s286 + $0x98] sm:$0xff] %v4236
        %4269 = vst [vmem:[%s286 + $0xa0] sm:$0xff] %v4237
        %4270 = vst [vmem:[%s286 + $0xa8] sm:$0xff] %v4238
        %4271 = vst [vmem:[%s286 + $0xb0] sm:$0xff] %v4239
        %4272 = vst [vmem:[%s286 + $0xb8] sm:$0xff] %v4240
        %4273 = vst [vmem:[%s286 + $0xc0] sm:$0xff] %v4241
        %4274 = vst [vmem:[%s286 + $0xc8] sm:$0xff] %v4242
        %4275 = vst [vmem:[%s286 + $0xd0] sm:$0xff] %v4243
        %4276 = vst [vmem:[%s286 + $0xd8] sm:$0xff] %v4244
        %4277 = vst [vmem:[%s286 + $0xe0] sm:$0xff] %v4245
        %4278 = vst [vmem:[%s286 + $0xe8] sm:$0xff] %v4246
        %4279 = vst [vmem:[%s286 + $0xf0] sm:$0xff] %v4247
        %4280 = vst [vmem:[%s286 + $0xf8] sm:$0xff] %v4248
        %s4281 = sand.u32 %s182, 1
        %s4282 = scalar_lea.sflag [#allocation6], %s4281
        %s4283 = sand.u32 %s182, 1
        %s4284 = smul.addr %s4283, 256
        %s4285 = scalar_lea.vmem [#allocation7], %s4284
        // Predicated region
        $region53: #{tpu_custom_call.1} parent=47 // pred_check
          %p4286 = pneg %p192
        $region54: #{tpu_custom_call.1} parent=47 // pred_check_branch
          %4288 = sbr.rel (%p4286) target = $region56
        $region55: #{tpu_custom_call.1} parent=47 // pred_region
          %s4290 = ssub.s32 4096, 4096
          %4291 = vsyncadd %s4282, %s4290
          %s4292 = smul.addr %s22, 32
          %s4293 = smul.addr %s4292, 128
          %s4294 = scalar_lea.hbm %s7, %s4293
          %s4295 = sshll.u32 %s4285, 4
          %s4296 = int_to_ptr.vmem [resolvable:$true] %s4295
          %4301 = dma.vmem_to_hbm [thread:$0]  %s4296, 4096, %s4294, %s4282, 128, 128, 8
        $region56: #{tpu_custom_call.1} parent=47 // pred_fallthru
          _
      $region48: #{tpu_custom_call.1} parent=5 // pred_fallthru
        _
      %p4302 = scmp.le.s32.totalorder 2, %s17
      // Predicated region
      $region57: #{tpu_custom_call.1} parent=5 // pred_check
        %p4303 = pneg %p4302
      $region58: #{tpu_custom_call.1} parent=5 // pred_check_branch
        %4305 = sbr.rel (%p4303) target = $region60
      $region59: #{tpu_custom_call.1} parent=5 // pred_region
        %s4306 = ssub.s32 %s17, 2
        // Predicated region
        $region61: #{tpu_custom_call.1} parent=59 // pred_check
          %p4307 = pneg %p198
        $region62: #{tpu_custom_call.1} parent=59 // pred_check_branch
          %4309 = sbr.rel (%p4307) target = $region64
        $region63: #{tpu_custom_call.1} parent=59 // pred_region
          %s4310 = sand.u32 %s183, 1
          %s4311 = scalar_lea.sflag [#allocation6], %s4310
          %s4312 = sand.u32 %s183, 1
          %s4313 = smul.addr %s4312, 256
          %s4314 = scalar_lea.vmem [#allocation7], %s4313
          %4315 = dma.done %s4311, 4096
        $region64: #{tpu_custom_call.1} parent=59 // pred_fallthru
          _
      $region60: #{tpu_custom_call.1} parent=5 // pred_fallthru
        _
    $region6: #{tpu_custom_call.1} parent=1 // loop_footer
      %s21 = sadd.s32 1, %s17
    $region7: #{tpu_custom_call.1} parent=1 // loop_footer_branch
      %16 = sbr.rel target = $region3
    $region8: #{tpu_custom_call.1} parent=1 // loop_exit
      _
    %4316 = vsyncpa [#allocation5], 1
    %s4317 = scalar_lea.sflag [#allocation5], 1
    %4318 = vsyncpa %s4317, 1
    %4319 = vsyncpa [#allocation6], 1
    %s4320 = scalar_lea.sflag [#allocation6], 1
    %4321 = vsyncpa %s4320, 1

</llo_original>
